<compile_context>
chip_gen: v7x
topology: tpu7x:2x2x1
jax: 0.10.0
libtpu: 0.0.40
codegen_flags: <defaults>
</compile_context>

<pallas_src>
import functools
import math

import jax
import jax.numpy as jnp
from jax import lax
from jax.experimental import pallas as pl
from jax.experimental.pallas import tpu as pltpu


def _layernorm_f32(x, w, b, eps=1e-5):
    # The CLIP LayerNorm subclass always computes in float32.
    x32 = x.astype(jnp.float32)
    mu = jnp.mean(x32, axis=-1, keepdims=True)
    var = jnp.mean(jnp.square(x32 - mu), axis=-1, keepdims=True)
    return (x32 - mu) * lax.rsqrt(var + eps) * w + b


def _residual_attention_block_kernel(
    x_ref,                      # (1, S, D)  full sequence for this batch elem
    ln1w_ref, ln1b_ref,         # (1, D) f32
    wq_ref, bq_ref,             # (D, D) bf16 (1/sqrt(hd) folded in), (1, D) f32
    wk_ref, bk_ref,             # (D, D) bf16, (1, D) f32
    wv_ref, bv_ref,             # (D, D) bf16, (1, D) f32
    wo_ref, bo_ref,             # (D, D) bf16, (1, D) f32
    ln2w_ref, ln2b_ref,         # (1, D) f32
    wfc_ref, bfc_ref,           # (D, 4D) bf16, (1, 4D) f32
    wpr_ref, bpr_ref,           # (4D, D) bf16, (1, D) f32
    o_ref,                      # (1, tq, D)
    k_cache_ref,                # VMEM scratch (S, D) bf16 — persists across tiles
    v_cache_ref,                # VMEM scratch (S, D) bf16 — persists across tiles
    attn_acc_ref,               # VMEM scratch (tq, D) f32 — per-head outputs
    *, n_head, tq,
):
    S = x_ref.shape[1]
    D = x_ref.shape[2]
    hd = D // n_head
    cdt = wq_ref.dtype          # matmul operand dtype (bf16)

    qi = pl.program_id(1)
    row0 = pl.multiple_of(qi * tq, tq)

    # ---- K / V projection over the full sequence: compute once per batch
    #      element (query-tile index 0) and cache in VMEM scratch. ----------
    @pl.when(qi == 0)
    def _():
        x_full = x_ref[0]                                    # (S, D)
        h_full = _layernorm_f32(x_full, ln1w_ref[...], ln1b_ref[...])
        h_c = h_full.astype(cdt)
        k_cache_ref[...] = (jnp.dot(h_c, wk_ref[...],
                                    preferred_element_type=jnp.float32)
                            + bk_ref[...]).astype(cdt)
        v_cache_ref[...] = (jnp.dot(h_c, wv_ref[...],
                                    preferred_element_type=jnp.float32)
                            + bv_ref[...]).astype(cdt)

    # ---- Q projection for this query tile (scale pre-folded) -------------
    x_tile = x_ref[0, pl.ds(row0, tq), :]                    # (tq, D)
    h_tile = _layernorm_f32(x_tile, ln1w_ref[...], ln1b_ref[...])
    q = jnp.dot(h_tile.astype(cdt), wq_ref[...],
                preferred_element_type=jnp.float32) + bq_ref[...]
    qb = q.astype(cdt)                                       # (tq, D)
    kb = k_cache_ref[...]                                    # (S, D) bf16
    vb = v_cache_ref[...]                                    # (S, D) bf16

    # ---- per-head attention; head outputs written to the VMEM slab -------
    for hh in range(n_head):
        c0 = hh * hd
        qh = qb[:, c0:c0 + hd]
        kh = kb[:, c0:c0 + hd]
        vh = vb[:, c0:c0 + hd]
        # q @ k^T without materializing a transpose (contract last dims).
        s = lax.dot_general(qh, kh, (((1,), (1,)), ((), ())),
                            preferred_element_type=jnp.float32)   # (tq, S)
        m = jnp.max(s, axis=-1, keepdims=True)
        e = jnp.exp(s - m)
        p = e * pl.reciprocal(jnp.sum(e, axis=-1, keepdims=True), approx=True)
        attn_acc_ref[:, c0:c0 + hd] = jnp.dot(p.astype(cdt), vh,
                                              preferred_element_type=jnp.float32)

    attn = jnp.dot(attn_acc_ref[...].astype(cdt), wo_ref[...],
                   preferred_element_type=jnp.float32) + bo_ref[...]

    # ---- residual 1 -------------------------------------------------------
    x1 = x_tile.astype(jnp.float32) + attn

    # ---- ln_2 + MLP with QuickGELU ----------------------------------------
    h2 = _layernorm_f32(x1, ln2w_ref[...], ln2b_ref[...])
    f = jnp.dot(h2.astype(cdt), wfc_ref[...],
                preferred_element_type=jnp.float32) + bfc_ref[...]
    f = f * jax.nn.sigmoid(1.702 * f)                        # QuickGELU (f32)
    f = jnp.dot(f.astype(cdt), wpr_ref[...],
                preferred_element_type=jnp.float32) + bpr_ref[...]

    # ---- residual 2 -------------------------------------------------------
    o_ref[0] = (x1 + f).astype(o_ref.dtype)


def _build_pallas_call(B, S, D, n_head, tq, x_dtype, compute_dtype,
                       weight_pipeline_mode):
    kernel = functools.partial(_residual_attention_block_kernel,
                               n_head=n_head, tq=tq)

    def const_spec(shape):
        # Grid-invariant block: single-buffer it when supported.
        zero_map = lambda b, qi: tuple(0 for _ in shape)
        if weight_pipeline_mode is None:
            return pl.BlockSpec(shape, zero_map)
        return pl.BlockSpec(shape, zero_map, pipeline_mode=weight_pipeline_mode)

    grid = (B, S // tq)

    # Resident-VMEM estimate (bytes): single-buffered bf16 weights, f32 biases,
    # double-buffered activation blocks, scratch, and the big f32 intermediates.
    weight_bytes = 2 * (12 * D * D)
    small_bytes = 4 * (16 * D)
    io_bytes = 4 * (S * D + tq * D) * 2
    scratch_bytes = 2 * (2 * S * D) + 4 * tq * D
    interm_bytes = 4 * (3 * S * D + 8 * tq * D + 2 * tq * S)
    vmem_limit = int(1.5 * (weight_bytes + small_bytes + io_bytes
                            + scratch_bytes + interm_bytes)) + (8 << 20)
    vmem_limit = max(32 << 20, min(100 << 20, vmem_limit))

    flops = B * (24 * S * D * D + 4 * S * S * D)
    transcendentals = B * S * (n_head * S + 4 * D)
    bytes_accessed = 2 * B * S * D * 4 + weight_bytes + small_bytes

    return pl.pallas_call(
        kernel,
        out_shape=jax.ShapeDtypeStruct((B, S, D), x_dtype),
        grid=grid,
        in_specs=[
            pl.BlockSpec((1, S, D), lambda b, qi: (b, 0, 0)),      # x (full seq)
            const_spec((1, D)), const_spec((1, D)),                # ln_1 w, b
            const_spec((D, D)), const_spec((1, D)),                # q proj W^T, b
            const_spec((D, D)), const_spec((1, D)),                # k proj W^T, b
            const_spec((D, D)), const_spec((1, D)),                # v proj W^T, b
            const_spec((D, D)), const_spec((1, D)),                # out proj W^T, b
            const_spec((1, D)), const_spec((1, D)),                # ln_2 w, b
            const_spec((D, 4 * D)), const_spec((1, 4 * D)),        # c_fc W^T, b
            const_spec((4 * D, D)), const_spec((1, D)),            # c_proj W^T, b
        ],
        out_specs=pl.BlockSpec((1, tq, D), lambda b, qi: (b, qi, 0)),
        scratch_shapes=[
            pltpu.VMEM((S, D), compute_dtype),    # K cache (per batch element)
            pltpu.VMEM((S, D), compute_dtype),    # V cache (per batch element)
            pltpu.VMEM((tq, D), jnp.float32),     # per-head attn output slab
        ],
        compiler_params=pltpu.CompilerParams(
            # Query-tile axis carries the cached K/V -> must be sequential.
            dimension_semantics=("parallel", "arbitrary"),
            vmem_limit_bytes=vmem_limit,
        ),
        cost_estimate=pl.CostEstimate(
            flops=flops,
            transcendentals=transcendentals,
            bytes_accessed=bytes_accessed,
        ),
    )


def residual_attention_block_bsd(x_bsd, kernel_params, n_head, *, tq=None,
                                 compute_dtype=jnp.bfloat16):
    """x_bsd: (batch, seq, d_model). Preferred entry point (no transposes)."""
    B, S, D = x_bsd.shape
    assert D % n_head == 0, "d_model must be divisible by n_head"
    if tq is None:
        tq = S
    assert S % tq == 0 and (tq == S or tq % 8 == 0), "bad query tile size"

    def run(weight_pipeline_mode):
        call = _build_pallas_call(B, S, D, n_head, tq, x_bsd.dtype,
                                  compute_dtype, weight_pipeline_mode)
        return call(x_bsd, *kernel_params)

    try:
        # Single-buffer the grid-invariant weights (halves resident weight VMEM).
        return run(pl.Buffered(1))
    except Exception:
        # Fallback for JAX builds that reject Buffered(1) on the TPU pipeline.
        return run(None)


def residual_attention_block(x_sbd, kernel_params, n_head, *, tq=None):
    """x_sbd: (seq, batch, d_model) — PyTorch layout. Returns same shape/dtype.

    Note: in a full model keep activations in (batch, seq, d_model) and call
    residual_attention_block_bsd directly to avoid these two HBM transposes.
    """
    x_bsd = jnp.transpose(x_sbd, (1, 0, 2))
    out = residual_attention_block_bsd(x_bsd, kernel_params, n_head, tq=tq)
    return jnp.transpose(out, (1, 0, 2))


def init_raw_params(key, d_model):
    """Deterministic synthetic parameters in the PyTorch module's shapes (f32)."""
    D = d_model
    ks = jax.random.split(key, 8)
    return {
        "in_proj_w": jax.random.normal(ks[0], (3 * D, D), jnp.float32) * 0.02,
        "in_proj_b": jax.random.normal(ks[1], (3 * D,), jnp.float32) * 0.02,
        "out_proj_w": jax.random.normal(ks[2], (D, D), jnp.float32) * 0.02,
        "out_proj_b": jax.random.normal(ks[3], (D,), jnp.float32) * 0.02,
        "c_fc_w": jax.random.normal(ks[4], (4 * D, D), jnp.float32) * 0.02,
        "c_fc_b": jax.random.normal(ks[5], (4 * D,), jnp.float32) * 0.02,
        "c_proj_w": jax.random.normal(ks[6], (D, 4 * D), jnp.float32) * 0.02,
        "c_proj_b": jax.random.normal(ks[7], (D,), jnp.float32) * 0.02,
        "ln_1_w": jnp.ones((D,), jnp.float32),
        "ln_1_b": jnp.zeros((D,), jnp.float32),
        "ln_2_w": jnp.ones((D,), jnp.float32),
        "ln_2_b": jnp.zeros((D,), jnp.float32),
    }


def prepare_params(raw, n_head, compute_dtype=jnp.bfloat16):
    """Host-side prep: transpose weights, split the packed in_proj into q/k/v,
    fold the 1/sqrt(hd) scale into the q projection, cast weights to bf16
    (biases and LayerNorm params stay f32)."""
    D = raw["ln_1_w"].shape[0]
    hd = D // n_head
    scale = 1.0 / math.sqrt(hd)
    f32 = jnp.float32
    wq = (raw["in_proj_w"][:D] * scale).T            # (D, D)
    bq = raw["in_proj_b"][:D] * scale
    wk = raw["in_proj_w"][D:2 * D].T                 # (D, D)
    bk = raw["in_proj_b"][D:2 * D]
    wv = raw["in_proj_w"][2 * D:].T                  # (D, D)
    bv = raw["in_proj_b"][2 * D:]
    return (
        raw["ln_1_w"].reshape(1, D).astype(f32),
        raw["ln_1_b"].reshape(1, D).astype(f32),
        wq.astype(compute_dtype), bq.reshape(1, D).astype(f32),
        wk.astype(compute_dtype), bk.reshape(1, D).astype(f32),
        wv.astype(compute_dtype), bv.reshape(1, D).astype(f32),
        raw["out_proj_w"].T.astype(compute_dtype),
        raw["out_proj_b"].reshape(1, D).astype(f32),
        raw["ln_2_w"].reshape(1, D).astype(f32),
        raw["ln_2_b"].reshape(1, D).astype(f32),
        raw["c_fc_w"].T.astype(compute_dtype),
        raw["c_fc_b"].reshape(1, 4 * D).astype(f32),
        raw["c_proj_w"].T.astype(compute_dtype),
        raw["c_proj_b"].reshape(1, D).astype(f32),
    )


def reference_forward(x_sbd, raw, n_head):
    """Pure-JAX f32 reference mirroring the PyTorch semantics."""
    S, B, D = x_sbd.shape
    hd = D // n_head

    def ln(x, w, b, eps=1e-5):
        mu = jnp.mean(x, -1, keepdims=True)
        var = jnp.mean((x - mu) ** 2, -1, keepdims=True)
        return (x - mu) / jnp.sqrt(var + eps) * w + b

    x = jnp.transpose(x_sbd, (1, 0, 2))              # (B, S, D)
    h = ln(x, raw["ln_1_w"], raw["ln_1_b"])
    qkv = h @ raw["in_proj_w"].T + raw["in_proj_b"]
    q, k, v = qkv[..., :D], qkv[..., D:2 * D], qkv[..., 2 * D:]
    q = q.reshape(B, S, n_head, hd).transpose(0, 2, 1, 3) / math.sqrt(hd)
    k = k.reshape(B, S, n_head, hd).transpose(0, 2, 1, 3)
    v = v.reshape(B, S, n_head, hd).transpose(0, 2, 1, 3)
    p = jax.nn.softmax(jnp.einsum("bhqd,bhkd->bhqk", q, k), axis=-1)
    a = jnp.einsum("bhqk,bhkd->bhqd", p, v).transpose(0, 2, 1, 3).reshape(B, S, D)
    a = a @ raw["out_proj_w"].T + raw["out_proj_b"]
    x = x + a
    h2 = ln(x, raw["ln_2_w"], raw["ln_2_b"])
    f = h2 @ raw["c_fc_w"].T + raw["c_fc_b"]
    f = f * jax.nn.sigmoid(1.702 * f)
    f = f @ raw["c_proj_w"].T + raw["c_proj_b"]
    x = x + f
    return jnp.transpose(x, (1, 0, 2))


if __name__ == "__main__":
    S, B, D, n_head = 16, 2, 32, 4
    key = jax.random.PRNGKey(0)
    kx, kp = jax.random.split(key)
    x = jax.random.normal(kx, (S, B, D), jnp.float32)

    raw = init_raw_params(kp, D)
    params = prepare_params(raw, n_head)

    # tq=8 exercises the sequence-tile grid axis (2 query tiles per batch elem)
    # and therefore the K/V VMEM cache reuse across tiles.
    out = residual_attention_block(x, params, n_head, tq=8)
    out = jax.block_until_ready(out)

    ref = reference_forward(x, raw, n_head)
    assert out.shape == (S, B, D)
    # bf16 matmul operands (f32 accumulation) + approx softmax reciprocal:
    # expect small, intentional divergence from the pure-f32 reference.
    assert jnp.allclose(out, ref, atol=1e-2, rtol=1e-2), "mismatch vs reference"
    print("KERNEL_OK")
</pallas_src>

<mosaic_0001>
module attributes {stable_mosaic.version = 11 : i64} {
  func.func @_residual_attention_block_kernel(%arg0: i32, %arg1: i32, %arg2: memref<1x16x32xf32, #tpu.memory_space<vmem>>, %arg3: memref<1x32xf32, #tpu.memory_space<vmem>>, %arg4: memref<1x32xf32, #tpu.memory_space<vmem>>, %arg5: memref<32x32xbf16, #tpu.memory_space<vmem>>, %arg6: memref<1x32xf32, #tpu.memory_space<vmem>>, %arg7: memref<32x32xbf16, #tpu.memory_space<vmem>>, %arg8: memref<1x32xf32, #tpu.memory_space<vmem>>, %arg9: memref<32x32xbf16, #tpu.memory_space<vmem>>, %arg10: memref<1x32xf32, #tpu.memory_space<vmem>>, %arg11: memref<32x32xbf16, #tpu.memory_space<vmem>>, %arg12: memref<1x32xf32, #tpu.memory_space<vmem>>, %arg13: memref<1x32xf32, #tpu.memory_space<vmem>>, %arg14: memref<1x32xf32, #tpu.memory_space<vmem>>, %arg15: memref<32x128xbf16, #tpu.memory_space<vmem>>, %arg16: memref<1x128xf32, #tpu.memory_space<vmem>>, %arg17: memref<128x32xbf16, #tpu.memory_space<vmem>>, %arg18: memref<1x32xf32, #tpu.memory_space<vmem>>, %arg19: memref<1x8x32xf32, #tpu.memory_space<vmem>>, %arg20: memref<16x32xbf16, #tpu.memory_space<vmem>>, %arg21: memref<16x32xbf16, #tpu.memory_space<vmem>>, %arg22: memref<8x32xf32, #tpu.memory_space<vmem>>) attributes {dimension_semantics = [#tpu.dimension_semantics<parallel>, #tpu.dimension_semantics<arbitrary>], iteration_bounds = array<i64: 2, 2>, scalar_prefetch = 0 : i64, scratch_operands = 3 : i64, tpu.core_type = #tpu.core_type<tc>, window_params = [{transform_indices = @transform_0, window_bounds = array<i64: 1, 16, 32>}, {pipeline_mode = #tpu.pipeline_mode<synchronous>, transform_indices = @transform_1, window_bounds = array<i64: 1, 32>}, {pipeline_mode = #tpu.pipeline_mode<synchronous>, transform_indices = @transform_2, window_bounds = array<i64: 1, 32>}, {pipeline_mode = #tpu.pipeline_mode<synchronous>, transform_indices = @transform_3, window_bounds = array<i64: 32, 32>}, {pipeline_mode = #tpu.pipeline_mode<synchronous>, transform_indices = @transform_4, window_bounds = array<i64: 1, 32>}, {pipeline_mode = #tpu.pipeline_mode<synchronous>, transform_indices = @transform_5, window_bounds = array<i64: 32, 32>}, {pipeline_mode = #tpu.pipeline_mode<synchronous>, transform_indices = @transform_6, window_bounds = array<i64: 1, 32>}, {pipeline_mode = #tpu.pipeline_mode<synchronous>, transform_indices = @transform_7, window_bounds = array<i64: 32, 32>}, {pipeline_mode = #tpu.pipeline_mode<synchronous>, transform_indices = @transform_8, window_bounds = array<i64: 1, 32>}, {pipeline_mode = #tpu.pipeline_mode<synchronous>, transform_indices = @transform_9, window_bounds = array<i64: 32, 32>}, {pipeline_mode = #tpu.pipeline_mode<synchronous>, transform_indices = @transform_10, window_bounds = array<i64: 1, 32>}, {pipeline_mode = #tpu.pipeline_mode<synchronous>, transform_indices = @transform_11, window_bounds = array<i64: 1, 32>}, {pipeline_mode = #tpu.pipeline_mode<synchronous>, transform_indices = @transform_12, window_bounds = array<i64: 1, 32>}, {pipeline_mode = #tpu.pipeline_mode<synchronous>, transform_indices = @transform_13, window_bounds = array<i64: 32, 128>}, {pipeline_mode = #tpu.pipeline_mode<synchronous>, transform_indices = @transform_14, window_bounds = array<i64: 1, 128>}, {pipeline_mode = #tpu.pipeline_mode<synchronous>, transform_indices = @transform_15, window_bounds = array<i64: 128, 32>}, {pipeline_mode = #tpu.pipeline_mode<synchronous>, transform_indices = @transform_16, window_bounds = array<i64: 1, 32>}, {transform_indices = @transform_17, window_bounds = array<i64: 1, 8, 32>}]} {
    %c8_i32 = arith.constant 8 : i32
    %0 = arith.muli %arg1, %c8_i32 : i32
    %1 = tpu.assume_multiple %0, 8 : i32
    %c0_i32 = arith.constant 0 : i32
    %2 = arith.cmpi eq, %arg1, %c0_i32 : i32
    %3 = arith.extui %2 : i1 to i32
    %c0_i32_0 = arith.constant 0 : i32
    %4 = arith.cmpi ne, %3, %c0_i32_0 : i32
    scf.if %4 {
      %c0_71 = arith.constant 0 : index
      %c0_72 = arith.constant 0 : index
      %c0_73 = arith.constant 0 : index
      %165 = vector.load %arg2[%c0_71, %c0_72, %c0_73] : memref<1x16x32xf32, #tpu.memory_space<vmem>>, vector<1x16x32xf32>
      %166 = vector.shape_cast %165 : vector<1x16x32xf32> to vector<16x32xf32>
      %c0_74 = arith.constant 0 : index
      %c0_75 = arith.constant 0 : index
      %167 = vector.load %arg3[%c0_74, %c0_75] : memref<1x32xf32, #tpu.memory_space<vmem>>, vector<1x32xf32>
      %c0_76 = arith.constant 0 : index
      %c0_77 = arith.constant 0 : index
      %168 = vector.load %arg4[%c0_76, %c0_77] : memref<1x32xf32, #tpu.memory_space<vmem>>, vector<1x32xf32>
      %cst_78 = arith.constant dense<0.000000e+00> : vector<16xf32>
      %169 = vector.multi_reduction <add>, %166, %cst_78 [1] : vector<16x32xf32> to vector<16xf32>
      %170 = vector.shape_cast %169 : vector<16xf32> to vector<16x1xf32>
      %cst_79 = arith.constant 3.200000e+01 : f32
      %171 = vector.broadcast %cst_79 : f32 to vector<16x1xf32>
      %172 = arith.divf %170, %171 : vector<16x1xf32>
      %173 = vector.broadcast %172 : vector<16x1xf32> to vector<16x32xf32>
      %174 = arith.subf %166, %173 : vector<16x32xf32>
      %175 = arith.mulf %174, %174 : vector<16x32xf32>
      %cst_80 = arith.constant dense<0.000000e+00> : vector<16xf32>
      %176 = vector.multi_reduction <add>, %175, %cst_80 [1] : vector<16x32xf32> to vector<16xf32>
      %177 = vector.shape_cast %176 : vector<16xf32> to vector<16x1xf32>
      %cst_81 = arith.constant 3.200000e+01 : f32
      %178 = vector.broadcast %cst_81 : f32 to vector<16x1xf32>
      %179 = arith.divf %177, %178 : vector<16x1xf32>
      %180 = vector.broadcast %172 : vector<16x1xf32> to vector<16x32xf32>
      %181 = arith.subf %166, %180 : vector<16x32xf32>
      %cst_82 = arith.constant 9.99999974E-6 : f32
      %182 = vector.broadcast %cst_82 : f32 to vector<16x1xf32>
      %183 = arith.addf %179, %182 : vector<16x1xf32>
      %184 = math.rsqrt %183 : vector<16x1xf32>
      %185 = vector.broadcast %184 : vector<16x1xf32> to vector<16x32xf32>
      %186 = arith.mulf %181, %185 : vector<16x32xf32>
      %187 = vector.broadcast %167 : vector<1x32xf32> to vector<16x32xf32>
      %188 = arith.mulf %186, %187 : vector<16x32xf32>
      %189 = vector.broadcast %168 : vector<1x32xf32> to vector<16x32xf32>
      %190 = arith.addf %188, %189 : vector<16x32xf32>
      %191 = arith.truncf %190 : vector<16x32xf32> to vector<16x32xbf16>
      %c0_83 = arith.constant 0 : index
      %c0_84 = arith.constant 0 : index
      %192 = vector.load %arg7[%c0_83, %c0_84] : memref<32x32xbf16, #tpu.memory_space<vmem>>, vector<32x32xbf16>
      %cst_85 = arith.constant dense<0.000000e+00> : vector<16x32xf32>
      %193 = tpu.matmul %191, %192, %cst_85 {dimension_numbers = #tpu.dot_dimension_numbers<[1], [0], [0], [1], [0, 0, 1, 1], [], []>} : vector<16x32xbf16>, vector<32x32xbf16>, vector<16x32xf32> -> vector<16x32xf32>
      %c0_86 = arith.constant 0 : index
      %c0_87 = arith.constant 0 : index
      %194 = vector.load %arg8[%c0_86, %c0_87] : memref<1x32xf32, #tpu.memory_space<vmem>>, vector<1x32xf32>
      %195 = vector.broadcast %194 : vector<1x32xf32> to vector<16x32xf32>
      %196 = arith.addf %193, %195 : vector<16x32xf32>
      %197 = arith.truncf %196 : vector<16x32xf32> to vector<16x32xbf16>
      %c0_88 = arith.constant 0 : index
      %c0_89 = arith.constant 0 : index
      %198 = vector.load %arg20[%c0_88, %c0_89] : memref<16x32xbf16, #tpu.memory_space<vmem>>, vector<16x32xbf16>
      tpu.vector_store %arg20[%c0_88, %c0_89], %197 {strides = array<i32>} : memref<16x32xbf16, #tpu.memory_space<vmem>>, vector<16x32xbf16>,
      %c0_90 = arith.constant 0 : index
      %c0_91 = arith.constant 0 : index
      %199 = vector.load %arg9[%c0_90, %c0_91] : memref<32x32xbf16, #tpu.memory_space<vmem>>, vector<32x32xbf16>
      %cst_92 = arith.constant dense<0.000000e+00> : vector<16x32xf32>
      %200 = tpu.matmul %191, %199, %cst_92 {dimension_numbers = #tpu.dot_dimension_numbers<[1], [0], [0], [1], [0, 0, 1, 1], [], []>} : vector<16x32xbf16>, vector<32x32xbf16>, vector<16x32xf32> -> vector<16x32xf32>
      %c0_93 = arith.constant 0 : index
      %c0_94 = arith.constant 0 : index
      %201 = vector.load %arg10[%c0_93, %c0_94] : memref<1x32xf32, #tpu.memory_space<vmem>>, vector<1x32xf32>
      %202 = vector.broadcast %201 : vector<1x32xf32> to vector<16x32xf32>
      %203 = arith.addf %200, %202 : vector<16x32xf32>
      %204 = arith.truncf %203 : vector<16x32xf32> to vector<16x32xbf16>
      %c0_95 = arith.constant 0 : index
      %c0_96 = arith.constant 0 : index
      %205 = vector.load %arg21[%c0_95, %c0_96] : memref<16x32xbf16, #tpu.memory_space<vmem>>, vector<16x32xbf16>
      tpu.vector_store %arg21[%c0_95, %c0_96], %204 {strides = array<i32>} : memref<16x32xbf16, #tpu.memory_space<vmem>>, vector<16x32xbf16>,
    } else {
    }
    %c0 = arith.constant 0 : index
    %5 = arith.index_cast %1 : i32 to index
    %c0_1 = arith.constant 0 : index
    %6 = vector.load %arg2[%c0, %5, %c0_1] : memref<1x16x32xf32, #tpu.memory_space<vmem>>, vector<1x8x32xf32>
    %7 = vector.shape_cast %6 : vector<1x8x32xf32> to vector<8x32xf32>
    %c0_2 = arith.constant 0 : index
    %c0_3 = arith.constant 0 : index
    %8 = vector.load %arg3[%c0_2, %c0_3] : memref<1x32xf32, #tpu.memory_space<vmem>>, vector<1x32xf32>
    %c0_4 = arith.constant 0 : index
    %c0_5 = arith.constant 0 : index
    %9 = vector.load %arg4[%c0_4, %c0_5] : memref<1x32xf32, #tpu.memory_space<vmem>>, vector<1x32xf32>
    %cst = arith.constant dense<0.000000e+00> : vector<8xf32>
    %10 = vector.multi_reduction <add>, %7, %cst [1] : vector<8x32xf32> to vector<8xf32>
    %11 = vector.shape_cast %10 : vector<8xf32> to vector<8x1xf32>
    %cst_6 = arith.constant 3.200000e+01 : f32
    %12 = vector.broadcast %cst_6 : f32 to vector<8x1xf32>
    %13 = arith.divf %11, %12 : vector<8x1xf32>
    %14 = vector.broadcast %13 : vector<8x1xf32> to vector<8x32xf32>
    %15 = arith.subf %7, %14 : vector<8x32xf32>
    %16 = arith.mulf %15, %15 : vector<8x32xf32>
    %cst_7 = arith.constant dense<0.000000e+00> : vector<8xf32>
    %17 = vector.multi_reduction <add>, %16, %cst_7 [1] : vector<8x32xf32> to vector<8xf32>
    %18 = vector.shape_cast %17 : vector<8xf32> to vector<8x1xf32>
    %cst_8 = arith.constant 3.200000e+01 : f32
    %19 = vector.broadcast %cst_8 : f32 to vector<8x1xf32>
    %20 = arith.divf %18, %19 : vector<8x1xf32>
    %21 = vector.broadcast %13 : vector<8x1xf32> to vector<8x32xf32>
    %22 = arith.subf %7, %21 : vector<8x32xf32>
    %cst_9 = arith.constant 9.99999974E-6 : f32
    %23 = vector.broadcast %cst_9 : f32 to vector<8x1xf32>
    %24 = arith.addf %20, %23 : vector<8x1xf32>
    %25 = math.rsqrt %24 : vector<8x1xf32>
    %26 = vector.broadcast %25 : vector<8x1xf32> to vector<8x32xf32>
    %27 = arith.mulf %22, %26 : vector<8x32xf32>
    %28 = vector.broadcast %8 : vector<1x32xf32> to vector<8x32xf32>
    %29 = arith.mulf %27, %28 : vector<8x32xf32>
    %30 = vector.broadcast %9 : vector<1x32xf32> to vector<8x32xf32>
    %31 = arith.addf %29, %30 : vector<8x32xf32>
    %32 = arith.truncf %31 : vector<8x32xf32> to vector<8x32xbf16>
    %c0_10 = arith.constant 0 : index
    %c0_11 = arith.constant 0 : index
    %33 = vector.load %arg5[%c0_10, %c0_11] : memref<32x32xbf16, #tpu.memory_space<vmem>>, vector<32x32xbf16>
    %cst_12 = arith.constant dense<0.000000e+00> : vector<8x32xf32>
    %34 = tpu.matmul %32, %33, %cst_12 {dimension_numbers = #tpu.dot_dimension_numbers<[1], [0], [0], [1], [0, 0, 1, 1], [], []>} : vector<8x32xbf16>, vector<32x32xbf16>, vector<8x32xf32> -> vector<8x32xf32>
    %c0_13 = arith.constant 0 : index
    %c0_14 = arith.constant 0 : index
    %35 = vector.load %arg6[%c0_13, %c0_14] : memref<1x32xf32, #tpu.memory_space<vmem>>, vector<1x32xf32>
    %36 = vector.broadcast %35 : vector<1x32xf32> to vector<8x32xf32>
    %37 = arith.addf %34, %36 : vector<8x32xf32>
    %38 = arith.truncf %37 : vector<8x32xf32> to vector<8x32xbf16>
    %c0_15 = arith.constant 0 : index
    %c0_16 = arith.constant 0 : index
    %39 = vector.load %arg20[%c0_15, %c0_16] : memref<16x32xbf16, #tpu.memory_space<vmem>>, vector<16x32xbf16>
    %c0_17 = arith.constant 0 : index
    %c0_18 = arith.constant 0 : index
    %40 = vector.load %arg21[%c0_17, %c0_18] : memref<16x32xbf16, #tpu.memory_space<vmem>>, vector<16x32xbf16>
    %41 = vector.extract_strided_slice %38 {offsets = [0, 0], sizes = [8, 8], strides = [1, 1]} : vector<8x32xbf16> to vector<8x8xbf16>
    %42 = vector.extract_strided_slice %39 {offsets = [0, 0], sizes = [16, 8], strides = [1, 1]} : vector<16x32xbf16> to vector<16x8xbf16>
    %43 = vector.extract_strided_slice %40 {offsets = [0, 0], sizes = [16, 8], strides = [1, 1]} : vector<16x32xbf16> to vector<16x8xbf16>
    %cst_19 = arith.constant dense<0.000000e+00> : vector<8x16xf32>
    %44 = tpu.matmul %41, %42, %cst_19 {dimension_numbers = #tpu.dot_dimension_numbers<[1], [1], [0], [0], [0, 0, 1, 0], [], []>} : vector<8x8xbf16>, vector<16x8xbf16>, vector<8x16xf32> -> vector<8x16xf32>
    %cst_20 = arith.constant dense<0xFF800000> : vector<8xf32>
    %45 = vector.multi_reduction <maximumf>, %44, %cst_20 [1] : vector<8x16xf32> to vector<8xf32>
    %46 = vector.shape_cast %45 : vector<8xf32> to vector<8x1xf32>
    %47 = vector.broadcast %46 : vector<8x1xf32> to vector<8x16xf32>
    %48 = arith.subf %44, %47 : vector<8x16xf32>
    %49 = math.exp %48 : vector<8x16xf32>
    %cst_21 = arith.constant dense<0.000000e+00> : vector<8xf32>
    %50 = vector.multi_reduction <add>, %49, %cst_21 [1] : vector<8x16xf32> to vector<8xf32>
    %51 = vector.shape_cast %50 : vector<8xf32> to vector<8x1xf32>
    %52 = tpu.reciprocal %51 {approx = true} : vector<8x1xf32> -> vector<8x1xf32>
    %53 = vector.broadcast %52 : vector<8x1xf32> to vector<8x16xf32>
    %54 = arith.mulf %49, %53 : vector<8x16xf32>
    %55 = arith.truncf %54 : vector<8x16xf32> to vector<8x16xbf16>
    %cst_22 = arith.constant dense<0.000000e+00> : vector<8x8xf32>
    %56 = tpu.matmul %55, %43, %cst_22 {dimension_numbers = #tpu.dot_dimension_numbers<[1], [0], [0], [1], [0, 0, 1, 1], [], []>} : vector<8x16xbf16>, vector<16x8xbf16>, vector<8x8xf32> -> vector<8x8xf32>
    %c0_23 = arith.constant 0 : index
    %c0_24 = arith.constant 0 : index
    %57 = vector.load %arg22[%c0_23, %c0_24] : memref<8x32xf32, #tpu.memory_space<vmem>>, vector<8x8xf32>
    tpu.vector_store %arg22[%c0_23, %c0_24], %56 {strides = array<i32>} : memref<8x32xf32, #tpu.memory_space<vmem>>, vector<8x8xf32>,
    %58 = vector.extract_strided_slice %38 {offsets = [0, 8], sizes = [8, 8], strides = [1, 1]} : vector<8x32xbf16> to vector<8x8xbf16>
    %59 = vector.extract_strided_slice %39 {offsets = [0, 8], sizes = [16, 8], strides = [1, 1]} : vector<16x32xbf16> to vector<16x8xbf16>
    %60 = vector.extract_strided_slice %40 {offsets = [0, 8], sizes = [16, 8], strides = [1, 1]} : vector<16x32xbf16> to vector<16x8xbf16>
    %cst_25 = arith.constant dense<0.000000e+00> : vector<8x16xf32>
    %61 = tpu.matmul %58, %59, %cst_25 {dimension_numbers = #tpu.dot_dimension_numbers<[1], [1], [0], [0], [0, 0, 1, 0], [], []>} : vector<8x8xbf16>, vector<16x8xbf16>, vector<8x16xf32> -> vector<8x16xf32>
    %cst_26 = arith.constant dense<0xFF800000> : vector<8xf32>
    %62 = vector.multi_reduction <maximumf>, %61, %cst_26 [1] : vector<8x16xf32> to vector<8xf32>
    %63 = vector.shape_cast %62 : vector<8xf32> to vector<8x1xf32>
    %64 = vector.broadcast %63 : vector<8x1xf32> to vector<8x16xf32>
    %65 = arith.subf %61, %64 : vector<8x16xf32>
    %66 = math.exp %65 : vector<8x16xf32>
    %cst_27 = arith.constant dense<0.000000e+00> : vector<8xf32>
    %67 = vector.multi_reduction <add>, %66, %cst_27 [1] : vector<8x16xf32> to vector<8xf32>
    %68 = vector.shape_cast %67 : vector<8xf32> to vector<8x1xf32>
    %69 = tpu.reciprocal %68 {approx = true} : vector<8x1xf32> -> vector<8x1xf32>
    %70 = vector.broadcast %69 : vector<8x1xf32> to vector<8x16xf32>
    %71 = arith.mulf %66, %70 : vector<8x16xf32>
    %72 = arith.truncf %71 : vector<8x16xf32> to vector<8x16xbf16>
    %cst_28 = arith.constant dense<0.000000e+00> : vector<8x8xf32>
    %73 = tpu.matmul %72, %60, %cst_28 {dimension_numbers = #tpu.dot_dimension_numbers<[1], [0], [0], [1], [0, 0, 1, 1], [], []>} : vector<8x16xbf16>, vector<16x8xbf16>, vector<8x8xf32> -> vector<8x8xf32>
    %c0_29 = arith.constant 0 : index
    %c8 = arith.constant 8 : index
    %74 = vector.load %arg22[%c0_29, %c8] : memref<8x32xf32, #tpu.memory_space<vmem>>, vector<8x8xf32>
    tpu.vector_store %arg22[%c0_29, %c8], %73 {strides = array<i32>} : memref<8x32xf32, #tpu.memory_space<vmem>>, vector<8x8xf32>,
    %75 = vector.extract_strided_slice %38 {offsets = [0, 16], sizes = [8, 8], strides = [1, 1]} : vector<8x32xbf16> to vector<8x8xbf16>
    %76 = vector.extract_strided_slice %39 {offsets = [0, 16], sizes = [16, 8], strides = [1, 1]} : vector<16x32xbf16> to vector<16x8xbf16>
    %77 = vector.extract_strided_slice %40 {offsets = [0, 16], sizes = [16, 8], strides = [1, 1]} : vector<16x32xbf16> to vector<16x8xbf16>
    %cst_30 = arith.constant dense<0.000000e+00> : vector<8x16xf32>
    %78 = tpu.matmul %75, %76, %cst_30 {dimension_numbers = #tpu.dot_dimension_numbers<[1], [1], [0], [0], [0, 0, 1, 0], [], []>} : vector<8x8xbf16>, vector<16x8xbf16>, vector<8x16xf32> -> vector<8x16xf32>
    %cst_31 = arith.constant dense<0xFF800000> : vector<8xf32>
    %79 = vector.multi_reduction <maximumf>, %78, %cst_31 [1] : vector<8x16xf32> to vector<8xf32>
    %80 = vector.shape_cast %79 : vector<8xf32> to vector<8x1xf32>
    %81 = vector.broadcast %80 : vector<8x1xf32> to vector<8x16xf32>
    %82 = arith.subf %78, %81 : vector<8x16xf32>
    %83 = math.exp %82 : vector<8x16xf32>
    %cst_32 = arith.constant dense<0.000000e+00> : vector<8xf32>
    %84 = vector.multi_reduction <add>, %83, %cst_32 [1] : vector<8x16xf32> to vector<8xf32>
    %85 = vector.shape_cast %84 : vector<8xf32> to vector<8x1xf32>
    %86 = tpu.reciprocal %85 {approx = true} : vector<8x1xf32> -> vector<8x1xf32>
    %87 = vector.broadcast %86 : vector<8x1xf32> to vector<8x16xf32>
    %88 = arith.mulf %83, %87 : vector<8x16xf32>
    %89 = arith.truncf %88 : vector<8x16xf32> to vector<8x16xbf16>
    %cst_33 = arith.constant dense<0.000000e+00> : vector<8x8xf32>
    %90 = tpu.matmul %89, %77, %cst_33 {dimension_numbers = #tpu.dot_dimension_numbers<[1], [0], [0], [1], [0, 0, 1, 1], [], []>} : vector<8x16xbf16>, vector<16x8xbf16>, vector<8x8xf32> -> vector<8x8xf32>
    %c0_34 = arith.constant 0 : index
    %c16 = arith.constant 16 : index
    %91 = vector.load %arg22[%c0_34, %c16] : memref<8x32xf32, #tpu.memory_space<vmem>>, vector<8x8xf32>
    tpu.vector_store %arg22[%c0_34, %c16], %90 {strides = array<i32>} : memref<8x32xf32, #tpu.memory_space<vmem>>, vector<8x8xf32>,
    %92 = vector.extract_strided_slice %38 {offsets = [0, 24], sizes = [8, 8], strides = [1, 1]} : vector<8x32xbf16> to vector<8x8xbf16>
    %93 = vector.extract_strided_slice %39 {offsets = [0, 24], sizes = [16, 8], strides = [1, 1]} : vector<16x32xbf16> to vector<16x8xbf16>
    %94 = vector.extract_strided_slice %40 {offsets = [0, 24], sizes = [16, 8], strides = [1, 1]} : vector<16x32xbf16> to vector<16x8xbf16>
    %cst_35 = arith.constant dense<0.000000e+00> : vector<8x16xf32>
    %95 = tpu.matmul %92, %93, %cst_35 {dimension_numbers = #tpu.dot_dimension_numbers<[1], [1], [0], [0], [0, 0, 1, 0], [], []>} : vector<8x8xbf16>, vector<16x8xbf16>, vector<8x16xf32> -> vector<8x16xf32>
    %cst_36 = arith.constant dense<0xFF800000> : vector<8xf32>
    %96 = vector.multi_reduction <maximumf>, %95, %cst_36 [1] : vector<8x16xf32> to vector<8xf32>
    %97 = vector.shape_cast %96 : vector<8xf32> to vector<8x1xf32>
    %98 = vector.broadcast %97 : vector<8x1xf32> to vector<8x16xf32>
    %99 = arith.subf %95, %98 : vector<8x16xf32>
    %100 = math.exp %99 : vector<8x16xf32>
    %cst_37 = arith.constant dense<0.000000e+00> : vector<8xf32>
    %101 = vector.multi_reduction <add>, %100, %cst_37 [1] : vector<8x16xf32> to vector<8xf32>
    %102 = vector.shape_cast %101 : vector<8xf32> to vector<8x1xf32>
    %103 = tpu.reciprocal %102 {approx = true} : vector<8x1xf32> -> vector<8x1xf32>
    %104 = vector.broadcast %103 : vector<8x1xf32> to vector<8x16xf32>
    %105 = arith.mulf %100, %104 : vector<8x16xf32>
    %106 = arith.truncf %105 : vector<8x16xf32> to vector<8x16xbf16>
    %cst_38 = arith.constant dense<0.000000e+00> : vector<8x8xf32>
    %107 = tpu.matmul %106, %94, %cst_38 {dimension_numbers = #tpu.dot_dimension_numbers<[1], [0], [0], [1], [0, 0, 1, 1], [], []>} : vector<8x16xbf16>, vector<16x8xbf16>, vector<8x8xf32> -> vector<8x8xf32>
    %c0_39 = arith.constant 0 : index
    %c24 = arith.constant 24 : index
    %108 = vector.load %arg22[%c0_39, %c24] : memref<8x32xf32, #tpu.memory_space<vmem>>, vector<8x8xf32>
    tpu.vector_store %arg22[%c0_39, %c24], %107 {strides = array<i32>} : memref<8x32xf32, #tpu.memory_space<vmem>>, vector<8x8xf32>,
    %c0_40 = arith.constant 0 : index
    %c0_41 = arith.constant 0 : index
    %109 = vector.load %arg22[%c0_40, %c0_41] : memref<8x32xf32, #tpu.memory_space<vmem>>, vector<8x32xf32>
    %110 = arith.truncf %109 : vector<8x32xf32> to vector<8x32xbf16>
    %c0_42 = arith.constant 0 : index
    %c0_43 = arith.constant 0 : index
    %111 = vector.load %arg11[%c0_42, %c0_43] : memref<32x32xbf16, #tpu.memory_space<vmem>>, vector<32x32xbf16>
    %cst_44 = arith.constant dense<0.000000e+00> : vector<8x32xf32>
    %112 = tpu.matmul %110, %111, %cst_44 {dimension_numbers = #tpu.dot_dimension_numbers<[1], [0], [0], [1], [0, 0, 1, 1], [], []>} : vector<8x32xbf16>, vector<32x32xbf16>, vector<8x32xf32> -> vector<8x32xf32>
    %c0_45 = arith.constant 0 : index
    %c0_46 = arith.constant 0 : index
    %113 = vector.load %arg12[%c0_45, %c0_46] : memref<1x32xf32, #tpu.memory_space<vmem>>, vector<1x32xf32>
    %114 = vector.broadcast %113 : vector<1x32xf32> to vector<8x32xf32>
    %115 = arith.addf %112, %114 : vector<8x32xf32>
    %116 = arith.addf %7, %115 : vector<8x32xf32>
    %c0_47 = arith.constant 0 : index
    %c0_48 = arith.constant 0 : index
    %117 = vector.load %arg13[%c0_47, %c0_48] : memref<1x32xf32, #tpu.memory_space<vmem>>, vector<1x32xf32>
    %c0_49 = arith.constant 0 : index
    %c0_50 = arith.constant 0 : index
    %118 = vector.load %arg14[%c0_49, %c0_50] : memref<1x32xf32, #tpu.memory_space<vmem>>, vector<1x32xf32>
    %cst_51 = arith.constant dense<0.000000e+00> : vector<8xf32>
    %119 = vector.multi_reduction <add>, %116, %cst_51 [1] : vector<8x32xf32> to vector<8xf32>
    %120 = vector.shape_cast %119 : vector<8xf32> to vector<8x1xf32>
    %cst_52 = arith.constant 3.200000e+01 : f32
    %121 = vector.broadcast %cst_52 : f32 to vector<8x1xf32>
    %122 = arith.divf %120, %121 : vector<8x1xf32>
    %123 = vector.broadcast %122 : vector<8x1xf32> to vector<8x32xf32>
    %124 = arith.subf %116, %123 : vector<8x32xf32>
    %125 = arith.mulf %124, %124 : vector<8x32xf32>
    %cst_53 = arith.constant dense<0.000000e+00> : vector<8xf32>
    %126 = vector.multi_reduction <add>, %125, %cst_53 [1] : vector<8x32xf32> to vector<8xf32>
    %127 = vector.shape_cast %126 : vector<8xf32> to vector<8x1xf32>
    %cst_54 = arith.constant 3.200000e+01 : f32
    %128 = vector.broadcast %cst_54 : f32 to vector<8x1xf32>
    %129 = arith.divf %127, %128 : vector<8x1xf32>
    %130 = vector.broadcast %122 : vector<8x1xf32> to vector<8x32xf32>
    %131 = arith.subf %116, %130 : vector<8x32xf32>
    %cst_55 = arith.constant 9.99999974E-6 : f32
    %132 = vector.broadcast %cst_55 : f32 to vector<8x1xf32>
    %133 = arith.addf %129, %132 : vector<8x1xf32>
    %134 = math.rsqrt %133 : vector<8x1xf32>
    %135 = vector.broadcast %134 : vector<8x1xf32> to vector<8x32xf32>
    %136 = arith.mulf %131, %135 : vector<8x32xf32>
    %137 = vector.broadcast %117 : vector<1x32xf32> to vector<8x32xf32>
    %138 = arith.mulf %136, %137 : vector<8x32xf32>
    %139 = vector.broadcast %118 : vector<1x32xf32> to vector<8x32xf32>
    %140 = arith.addf %138, %139 : vector<8x32xf32>
    %141 = arith.truncf %140 : vector<8x32xf32> to vector<8x32xbf16>
    %c0_56 = arith.constant 0 : index
    %c0_57 = arith.constant 0 : index
    %142 = vector.load %arg15[%c0_56, %c0_57] : memref<32x128xbf16, #tpu.memory_space<vmem>>, vector<32x128xbf16>
    %cst_58 = arith.constant dense<0.000000e+00> : vector<8x128xf32>
    %143 = tpu.matmul %141, %142, %cst_58 {dimension_numbers = #tpu.dot_dimension_numbers<[1], [0], [0], [1], [0, 0, 1, 1], [], []>} : vector<8x32xbf16>, vector<32x128xbf16>, vector<8x128xf32> -> vector<8x128xf32>
    %c0_59 = arith.constant 0 : index
    %c0_60 = arith.constant 0 : index
    %144 = vector.load %arg16[%c0_59, %c0_60] : memref<1x128xf32, #tpu.memory_space<vmem>>, vector<1x128xf32>
    %145 = vector.broadcast %144 : vector<1x128xf32> to vector<8x128xf32>
    %146 = arith.addf %143, %145 : vector<8x128xf32>
    %cst_61 = arith.constant 1.702000e+00 : f32
    %147 = vector.broadcast %cst_61 : f32 to vector<8x128xf32>
    %148 = arith.mulf %147, %146 : vector<8x128xf32>
    %149 = arith.negf %148 : vector<8x128xf32>
    %150 = math.exp %149 : vector<8x128xf32>
    %cst_62 = arith.constant 1.000000e+00 : f32
    %151 = vector.broadcast %cst_62 : f32 to vector<8x128xf32>
    %152 = arith.addf %151, %150 : vector<8x128xf32>
    %153 = arith.divf %151, %152 : vector<8x128xf32>
    %154 = arith.mulf %146, %153 : vector<8x128xf32>
    %155 = arith.truncf %154 : vector<8x128xf32> to vector<8x128xbf16>
    %c0_63 = arith.constant 0 : index
    %c0_64 = arith.constant 0 : index
    %156 = vector.load %arg17[%c0_63, %c0_64] : memref<128x32xbf16, #tpu.memory_space<vmem>>, vector<128x32xbf16>
    %cst_65 = arith.constant dense<0.000000e+00> : vector<8x32xf32>
    %157 = tpu.matmul %155, %156, %cst_65 {dimension_numbers = #tpu.dot_dimension_numbers<[1], [0], [0], [1], [0, 0, 1, 1], [], []>} : vector<8x128xbf16>, vector<128x32xbf16>, vector<8x32xf32> -> vector<8x32xf32>
    %c0_66 = arith.constant 0 : index
    %c0_67 = arith.constant 0 : index
    %158 = vector.load %arg18[%c0_66, %c0_67] : memref<1x32xf32, #tpu.memory_space<vmem>>, vector<1x32xf32>
    %159 = vector.broadcast %158 : vector<1x32xf32> to vector<8x32xf32>
    %160 = arith.addf %157, %159 : vector<8x32xf32>
    %161 = arith.addf %116, %160 : vector<8x32xf32>
    %c0_68 = arith.constant 0 : index
    %c0_69 = arith.constant 0 : index
    %c0_70 = arith.constant 0 : index
    %162 = vector.load %arg19[%c0_68, %c0_69, %c0_70] : memref<1x8x32xf32, #tpu.memory_space<vmem>>, vector<1x8x32xf32>
    %163 = vector.shape_cast %162 : vector<1x8x32xf32> to vector<8x32xf32>
    %164 = vector.shape_cast %161 : vector<8x32xf32> to vector<1x8x32xf32>
    tpu.vector_store %arg19[%c0_68, %c0_69, %c0_70], %164 {strides = array<i32>} : memref<1x8x32xf32, #tpu.memory_space<vmem>>, vector<1x8x32xf32>,
    return
  }
  func.func @transform_0(%arg0: i32, %arg1: i32) -> (i32, i32, i32) {
    %c0_i32 = arith.constant 0 : i32
    %c0_i32_0 = arith.constant 0 : i32
    %c0_i32_1 = arith.constant 0 : i32
    return %arg0, %c0_i32, %c0_i32_0 : i32, i32, i32
  }
  func.func @transform_1(%arg0: i32, %arg1: i32) -> (i32, i32) {
    %c0_i32 = arith.constant 0 : i32
    %c0_i32_0 = arith.constant 0 : i32
    %c0_i32_1 = arith.constant 0 : i32
    return %c0_i32, %c0_i32_0 : i32, i32
  }
  func.func @transform_2(%arg0: i32, %arg1: i32) -> (i32, i32) {
    %c0_i32 = arith.constant 0 : i32
    %c0_i32_0 = arith.constant 0 : i32
    %c0_i32_1 = arith.constant 0 : i32
    return %c0_i32, %c0_i32_0 : i32, i32
  }
  func.func @transform_3(%arg0: i32, %arg1: i32) -> (i32, i32) {
    %c0_i32 = arith.constant 0 : i32
    %c0_i32_0 = arith.constant 0 : i32
    %c0_i32_1 = arith.constant 0 : i32
    return %c0_i32, %c0_i32_0 : i32, i32
  }
  func.func @transform_4(%arg0: i32, %arg1: i32) -> (i32, i32) {
    %c0_i32 = arith.constant 0 : i32
    %c0_i32_0 = arith.constant 0 : i32
    %c0_i32_1 = arith.constant 0 : i32
    return %c0_i32, %c0_i32_0 : i32, i32
  }
  func.func @transform_5(%arg0: i32, %arg1: i32) -> (i32, i32) {
    %c0_i32 = arith.constant 0 : i32
    %c0_i32_0 = arith.constant 0 : i32
    %c0_i32_1 = arith.constant 0 : i32
    return %c0_i32, %c0_i32_0 : i32, i32
  }
  func.func @transform_6(%arg0: i32, %arg1: i32) -> (i32, i32) {
    %c0_i32 = arith.constant 0 : i32
    %c0_i32_0 = arith.constant 0 : i32
    %c0_i32_1 = arith.constant 0 : i32
    return %c0_i32, %c0_i32_0 : i32, i32
  }
  func.func @transform_7(%arg0: i32, %arg1: i32) -> (i32, i32) {
    %c0_i32 = arith.constant 0 : i32
    %c0_i32_0 = arith.constant 0 : i32
    %c0_i32_1 = arith.constant 0 : i32
    return %c0_i32, %c0_i32_0 : i32, i32
  }
  func.func @transform_8(%arg0: i32, %arg1: i32) -> (i32, i32) {
    %c0_i32 = arith.constant 0 : i32
    %c0_i32_0 = arith.constant 0 : i32
    %c0_i32_1 = arith.constant 0 : i32
    return %c0_i32, %c0_i32_0 : i32, i32
  }
  func.func @transform_9(%arg0: i32, %arg1: i32) -> (i32, i32) {
    %c0_i32 = arith.constant 0 : i32
    %c0_i32_0 = arith.constant 0 : i32
    %c0_i32_1 = arith.constant 0 : i32
    return %c0_i32, %c0_i32_0 : i32, i32
  }
  func.func @transform_10(%arg0: i32, %arg1: i32) -> (i32, i32) {
    %c0_i32 = arith.constant 0 : i32
    %c0_i32_0 = arith.constant 0 : i32
    %c0_i32_1 = arith.constant 0 : i32
    return %c0_i32, %c0_i32_0 : i32, i32
  }
  func.func @transform_11(%arg0: i32, %arg1: i32) -> (i32, i32) {
    %c0_i32 = arith.constant 0 : i32
    %c0_i32_0 = arith.constant 0 : i32
    %c0_i32_1 = arith.constant 0 : i32
    return %c0_i32, %c0_i32_0 : i32, i32
  }
  func.func @transform_12(%arg0: i32, %arg1: i32) -> (i32, i32) {
    %c0_i32 = arith.constant 0 : i32
    %c0_i32_0 = arith.constant 0 : i32
    %c0_i32_1 = arith.constant 0 : i32
    return %c0_i32, %c0_i32_0 : i32, i32
  }
  func.func @transform_13(%arg0: i32, %arg1: i32) -> (i32, i32) {
    %c0_i32 = arith.constant 0 : i32
    %c0_i32_0 = arith.constant 0 : i32
    %c0_i32_1 = arith.constant 0 : i32
    return %c0_i32, %c0_i32_0 : i32, i32
  }
  func.func @transform_14(%arg0: i32, %arg1: i32) -> (i32, i32) {
    %c0_i32 = arith.constant 0 : i32
    %c0_i32_0 = arith.constant 0 : i32
    %c0_i32_1 = arith.constant 0 : i32
    return %c0_i32, %c0_i32_0 : i32, i32
  }
  func.func @transform_15(%arg0: i32, %arg1: i32) -> (i32, i32) {
    %c0_i32 = arith.constant 0 : i32
    %c0_i32_0 = arith.constant 0 : i32
    %c0_i32_1 = arith.constant 0 : i32
    return %c0_i32, %c0_i32_0 : i32, i32
  }
  func.func @transform_16(%arg0: i32, %arg1: i32) -> (i32, i32) {
    %c0_i32 = arith.constant 0 : i32
    %c0_i32_0 = arith.constant 0 : i32
    %c0_i32_1 = arith.constant 0 : i32
    return %c0_i32, %c0_i32_0 : i32, i32
  }
  func.func @transform_17(%arg0: i32, %arg1: i32) -> (i32, i32, i32) {
    %c0_i32 = arith.constant 0 : i32
    %c0_i32_0 = arith.constant 0 : i32
    return %arg0, %arg1, %c0_i32 : i32, i32, i32
  }
}

module attributes {stable_mosaic.version = 11 : i64} {
  func.func @_residual_attention_block_kernel(%arg0: i32, %arg1: i32, %arg2: memref<1x16x32xf32, #tpu.memory_space<vmem>>, %arg3: memref<1x32xf32, #tpu.memory_space<vmem>>, %arg4: memref<1x32xf32, #tpu.memory_space<vmem>>, %arg5: memref<32x32xbf16, #tpu.memory_space<vmem>>, %arg6: memref<1x32xf32, #tpu.memory_space<vmem>>, %arg7: memref<32x32xbf16, #tpu.memory_space<vmem>>, %arg8: memref<1x32xf32, #tpu.memory_space<vmem>>, %arg9: memref<32x32xbf16, #tpu.memory_space<vmem>>, %arg10: memref<1x32xf32, #tpu.memory_space<vmem>>, %arg11: memref<32x32xbf16, #tpu.memory_space<vmem>>, %arg12: memref<1x32xf32, #tpu.memory_space<vmem>>, %arg13: memref<1x32xf32, #tpu.memory_space<vmem>>, %arg14: memref<1x32xf32, #tpu.memory_space<vmem>>, %arg15: memref<32x128xbf16, #tpu.memory_space<vmem>>, %arg16: memref<1x128xf32, #tpu.memory_space<vmem>>, %arg17: memref<128x32xbf16, #tpu.memory_space<vmem>>, %arg18: memref<1x32xf32, #tpu.memory_space<vmem>>, %arg19: memref<1x8x32xf32, #tpu.memory_space<vmem>>, %arg20: memref<16x32xbf16, #tpu.memory_space<vmem>>, %arg21: memref<16x32xbf16, #tpu.memory_space<vmem>>, %arg22: memref<8x32xf32, #tpu.memory_space<vmem>>) attributes {dimension_semantics = [#tpu.dimension_semantics<parallel>, #tpu.dimension_semantics<arbitrary>], iteration_bounds = array<i64: 2, 2>, scalar_prefetch = 0 : i64, scratch_operands = 3 : i64, tpu.core_type = #tpu.core_type<tc>, window_params = [{transform_indices = @transform_0, window_bounds = array<i64: 1, 16, 32>}, {pipeline_mode = #tpu.pipeline_mode<synchronous>, transform_indices = @transform_1, window_bounds = array<i64: 1, 32>}, {pipeline_mode = #tpu.pipeline_mode<synchronous>, transform_indices = @transform_2, window_bounds = array<i64: 1, 32>}, {pipeline_mode = #tpu.pipeline_mode<synchronous>, transform_indices = @transform_3, window_bounds = array<i64: 32, 32>}, {pipeline_mode = #tpu.pipeline_mode<synchronous>, transform_indices = @transform_4, window_bounds = array<i64: 1, 32>}, {pipeline_mode = #tpu.pipeline_mode<synchronous>, transform_indices = @transform_5, window_bounds = array<i64: 32, 32>}, {pipeline_mode = #tpu.pipeline_mode<synchronous>, transform_indices = @transform_6, window_bounds = array<i64: 1, 32>}, {pipeline_mode = #tpu.pipeline_mode<synchronous>, transform_indices = @transform_7, window_bounds = array<i64: 32, 32>}, {pipeline_mode = #tpu.pipeline_mode<synchronous>, transform_indices = @transform_8, window_bounds = array<i64: 1, 32>}, {pipeline_mode = #tpu.pipeline_mode<synchronous>, transform_indices = @transform_9, window_bounds = array<i64: 32, 32>}, {pipeline_mode = #tpu.pipeline_mode<synchronous>, transform_indices = @transform_10, window_bounds = array<i64: 1, 32>}, {pipeline_mode = #tpu.pipeline_mode<synchronous>, transform_indices = @transform_11, window_bounds = array<i64: 1, 32>}, {pipeline_mode = #tpu.pipeline_mode<synchronous>, transform_indices = @transform_12, window_bounds = array<i64: 1, 32>}, {pipeline_mode = #tpu.pipeline_mode<synchronous>, transform_indices = @transform_13, window_bounds = array<i64: 32, 128>}, {pipeline_mode = #tpu.pipeline_mode<synchronous>, transform_indices = @transform_14, window_bounds = array<i64: 1, 128>}, {pipeline_mode = #tpu.pipeline_mode<synchronous>, transform_indices = @transform_15, window_bounds = array<i64: 128, 32>}, {pipeline_mode = #tpu.pipeline_mode<synchronous>, transform_indices = @transform_16, window_bounds = array<i64: 1, 32>}, {transform_indices = @transform_17, window_bounds = array<i64: 1, 8, 32>}]} {
    %c8_i32 = arith.constant 8 : i32
    %0 = arith.muli %arg1, %c8_i32 : i32
    %1 = tpu.assume_multiple %0, 8 : i32
    %c0_i32 = arith.constant 0 : i32
    %2 = arith.cmpi eq, %arg1, %c0_i32 : i32
    %3 = arith.extui %2 : i1 to i32
    %c0_i32_0 = arith.constant 0 : i32
    %4 = arith.cmpi ne, %3, %c0_i32_0 : i32
    scf.if %4 {
      %c0_71 = arith.constant 0 : index
      %c0_72 = arith.constant 0 : index
      %c0_73 = arith.constant 0 : index
      %165 = vector.load %arg2[%c0_71, %c0_72, %c0_73] : memref<1x16x32xf32, #tpu.memory_space<vmem>>, vector<1x16x32xf32>
      %166 = vector.shape_cast %165 : vector<1x16x32xf32> to vector<16x32xf32>
      %c0_74 = arith.constant 0 : index
      %c0_75 = arith.constant 0 : index
      %167 = vector.load %arg3[%c0_74, %c0_75] : memref<1x32xf32, #tpu.memory_space<vmem>>, vector<1x32xf32>
      %c0_76 = arith.constant 0 : index
      %c0_77 = arith.constant 0 : index
      %168 = vector.load %arg4[%c0_76, %c0_77] : memref<1x32xf32, #tpu.memory_space<vmem>>, vector<1x32xf32>
      %cst_78 = arith.constant dense<0.000000e+00> : vector<16xf32>
      %169 = vector.multi_reduction <add>, %166, %cst_78 [1] : vector<16x32xf32> to vector<16xf32>
      %170 = vector.shape_cast %169 : vector<16xf32> to vector<16x1xf32>
      %cst_79 = arith.constant 3.200000e+01 : f32
      %171 = vector.broadcast %cst_79 : f32 to vector<16x1xf32>
      %172 = arith.divf %170, %171 : vector<16x1xf32>
      %173 = vector.broadcast %172 : vector<16x1xf32> to vector<16x32xf32>
      %174 = arith.subf %166, %173 : vector<16x32xf32>
      %175 = arith.mulf %174, %174 : vector<16x32xf32>
      %cst_80 = arith.constant dense<0.000000e+00> : vector<16xf32>
      %176 = vector.multi_reduction <add>, %175, %cst_80 [1] : vector<16x32xf32> to vector<16xf32>
      %177 = vector.shape_cast %176 : vector<16xf32> to vector<16x1xf32>
      %cst_81 = arith.constant 3.200000e+01 : f32
      %178 = vector.broadcast %cst_81 : f32 to vector<16x1xf32>
      %179 = arith.divf %177, %178 : vector<16x1xf32>
      %180 = vector.broadcast %172 : vector<16x1xf32> to vector<16x32xf32>
      %181 = arith.subf %166, %180 : vector<16x32xf32>
      %cst_82 = arith.constant 9.99999974E-6 : f32
      %182 = vector.broadcast %cst_82 : f32 to vector<16x1xf32>
      %183 = arith.addf %179, %182 : vector<16x1xf32>
      %184 = math.rsqrt %183 : vector<16x1xf32>
      %185 = vector.broadcast %184 : vector<16x1xf32> to vector<16x32xf32>
      %186 = arith.mulf %181, %185 : vector<16x32xf32>
      %187 = vector.broadcast %167 : vector<1x32xf32> to vector<16x32xf32>
      %188 = arith.mulf %186, %187 : vector<16x32xf32>
      %189 = vector.broadcast %168 : vector<1x32xf32> to vector<16x32xf32>
      %190 = arith.addf %188, %189 : vector<16x32xf32>
      %191 = arith.truncf %190 : vector<16x32xf32> to vector<16x32xbf16>
      %c0_83 = arith.constant 0 : index
      %c0_84 = arith.constant 0 : index
      %192 = vector.load %arg7[%c0_83, %c0_84] : memref<32x32xbf16, #tpu.memory_space<vmem>>, vector<32x32xbf16>
      %cst_85 = arith.constant dense<0.000000e+00> : vector<16x32xf32>
      %193 = tpu.matmul %191, %192, %cst_85 {dimension_numbers = #tpu.dot_dimension_numbers<[1], [0], [0], [1], [0, 0, 1, 1], [], []>} : vector<16x32xbf16>, vector<32x32xbf16>, vector<16x32xf32> -> vector<16x32xf32>
      %c0_86 = arith.constant 0 : index
      %c0_87 = arith.constant 0 : index
      %194 = vector.load %arg8[%c0_86, %c0_87] : memref<1x32xf32, #tpu.memory_space<vmem>>, vector<1x32xf32>
      %195 = vector.broadcast %194 : vector<1x32xf32> to vector<16x32xf32>
      %196 = arith.addf %193, %195 : vector<16x32xf32>
      %197 = arith.truncf %196 : vector<16x32xf32> to vector<16x32xbf16>
      %c0_88 = arith.constant 0 : index
      %c0_89 = arith.constant 0 : index
      %198 = vector.load %arg20[%c0_88, %c0_89] : memref<16x32xbf16, #tpu.memory_space<vmem>>, vector<16x32xbf16>
      tpu.vector_store %arg20[%c0_88, %c0_89], %197 {strides = array<i32>} : memref<16x32xbf16, #tpu.memory_space<vmem>>, vector<16x32xbf16>,
      %c0_90 = arith.constant 0 : index
      %c0_91 = arith.constant 0 : index
      %199 = vector.load %arg9[%c0_90, %c0_91] : memref<32x32xbf16, #tpu.memory_space<vmem>>, vector<32x32xbf16>
      %cst_92 = arith.constant dense<0.000000e+00> : vector<16x32xf32>
      %200 = tpu.matmul %191, %199, %cst_92 {dimension_numbers = #tpu.dot_dimension_numbers<[1], [0], [0], [1], [0, 0, 1, 1], [], []>} : vector<16x32xbf16>, vector<32x32xbf16>, vector<16x32xf32> -> vector<16x32xf32>
      %c0_93 = arith.constant 0 : index
      %c0_94 = arith.constant 0 : index
      %201 = vector.load %arg10[%c0_93, %c0_94] : memref<1x32xf32, #tpu.memory_space<vmem>>, vector<1x32xf32>
      %202 = vector.broadcast %201 : vector<1x32xf32> to vector<16x32xf32>
      %203 = arith.addf %200, %202 : vector<16x32xf32>
      %204 = arith.truncf %203 : vector<16x32xf32> to vector<16x32xbf16>
      %c0_95 = arith.constant 0 : index
      %c0_96 = arith.constant 0 : index
      %205 = vector.load %arg21[%c0_95, %c0_96] : memref<16x32xbf16, #tpu.memory_space<vmem>>, vector<16x32xbf16>
      tpu.vector_store %arg21[%c0_95, %c0_96], %204 {strides = array<i32>} : memref<16x32xbf16, #tpu.memory_space<vmem>>, vector<16x32xbf16>,
    } else {
    }
    %c0 = arith.constant 0 : index
    %5 = arith.index_cast %1 : i32 to index
    %c0_1 = arith.constant 0 : index
    %6 = vector.load %arg2[%c0, %5, %c0_1] : memref<1x16x32xf32, #tpu.memory_space<vmem>>, vector<1x8x32xf32>
    %7 = vector.shape_cast %6 : vector<1x8x32xf32> to vector<8x32xf32>
    %c0_2 = arith.constant 0 : index
    %c0_3 = arith.constant 0 : index
    %8 = vector.load %arg3[%c0_2, %c0_3] : memref<1x32xf32, #tpu.memory_space<vmem>>, vector<1x32xf32>
    %c0_4 = arith.constant 0 : index
    %c0_5 = arith.constant 0 : index
    %9 = vector.load %arg4[%c0_4, %c0_5] : memref<1x32xf32, #tpu.memory_space<vmem>>, vector<1x32xf32>
    %cst = arith.constant dense<0.000000e+00> : vector<8xf32>
    %10 = vector.multi_reduction <add>, %7, %cst [1] : vector<8x32xf32> to vector<8xf32>
    %11 = vector.shape_cast %10 : vector<8xf32> to vector<8x1xf32>
    %cst_6 = arith.constant 3.200000e+01 : f32
    %12 = vector.broadcast %cst_6 : f32 to vector<8x1xf32>
    %13 = arith.divf %11, %12 : vector<8x1xf32>
    %14 = vector.broadcast %13 : vector<8x1xf32> to vector<8x32xf32>
    %15 = arith.subf %7, %14 : vector<8x32xf32>
    %16 = arith.mulf %15, %15 : vector<8x32xf32>
    %cst_7 = arith.constant dense<0.000000e+00> : vector<8xf32>
    %17 = vector.multi_reduction <add>, %16, %cst_7 [1] : vector<8x32xf32> to vector<8xf32>
    %18 = vector.shape_cast %17 : vector<8xf32> to vector<8x1xf32>
    %cst_8 = arith.constant 3.200000e+01 : f32
    %19 = vector.broadcast %cst_8 : f32 to vector<8x1xf32>
    %20 = arith.divf %18, %19 : vector<8x1xf32>
    %21 = vector.broadcast %13 : vector<8x1xf32> to vector<8x32xf32>
    %22 = arith.subf %7, %21 : vector<8x32xf32>
    %cst_9 = arith.constant 9.99999974E-6 : f32
    %23 = vector.broadcast %cst_9 : f32 to vector<8x1xf32>
    %24 = arith.addf %20, %23 : vector<8x1xf32>
    %25 = math.rsqrt %24 : vector<8x1xf32>
    %26 = vector.broadcast %25 : vector<8x1xf32> to vector<8x32xf32>
    %27 = arith.mulf %22, %26 : vector<8x32xf32>
    %28 = vector.broadcast %8 : vector<1x32xf32> to vector<8x32xf32>
    %29 = arith.mulf %27, %28 : vector<8x32xf32>
    %30 = vector.broadcast %9 : vector<1x32xf32> to vector<8x32xf32>
    %31 = arith.addf %29, %30 : vector<8x32xf32>
    %32 = arith.truncf %31 : vector<8x32xf32> to vector<8x32xbf16>
    %c0_10 = arith.constant 0 : index
    %c0_11 = arith.constant 0 : index
    %33 = vector.load %arg5[%c0_10, %c0_11] : memref<32x32xbf16, #tpu.memory_space<vmem>>, vector<32x32xbf16>
    %cst_12 = arith.constant dense<0.000000e+00> : vector<8x32xf32>
    %34 = tpu.matmul %32, %33, %cst_12 {dimension_numbers = #tpu.dot_dimension_numbers<[1], [0], [0], [1], [0, 0, 1, 1], [], []>} : vector<8x32xbf16>, vector<32x32xbf16>, vector<8x32xf32> -> vector<8x32xf32>
    %c0_13 = arith.constant 0 : index
    %c0_14 = arith.constant 0 : index
    %35 = vector.load %arg6[%c0_13, %c0_14] : memref<1x32xf32, #tpu.memory_space<vmem>>, vector<1x32xf32>
    %36 = vector.broadcast %35 : vector<1x32xf32> to vector<8x32xf32>
    %37 = arith.addf %34, %36 : vector<8x32xf32>
    %38 = arith.truncf %37 : vector<8x32xf32> to vector<8x32xbf16>
    %c0_15 = arith.constant 0 : index
    %c0_16 = arith.constant 0 : index
    %39 = vector.load %arg20[%c0_15, %c0_16] : memref<16x32xbf16, #tpu.memory_space<vmem>>, vector<16x32xbf16>
    %c0_17 = arith.constant 0 : index
    %c0_18 = arith.constant 0 : index
    %40 = vector.load %arg21[%c0_17, %c0_18] : memref<16x32xbf16, #tpu.memory_space<vmem>>, vector<16x32xbf16>
    %41 = vector.extract_strided_slice %38 {offsets = [0, 0], sizes = [8, 8], strides = [1, 1]} : vector<8x32xbf16> to vector<8x8xbf16>
    %42 = vector.extract_strided_slice %39 {offsets = [0, 0], sizes = [16, 8], strides = [1, 1]} : vector<16x32xbf16> to vector<16x8xbf16>
    %43 = vector.extract_strided_slice %40 {offsets = [0, 0], sizes = [16, 8], strides = [1, 1]} : vector<16x32xbf16> to vector<16x8xbf16>
    %cst_19 = arith.constant dense<0.000000e+00> : vector<8x16xf32>
    %44 = tpu.matmul %41, %42, %cst_19 {dimension_numbers = #tpu.dot_dimension_numbers<[1], [1], [0], [0], [0, 0, 1, 0], [], []>} : vector<8x8xbf16>, vector<16x8xbf16>, vector<8x16xf32> -> vector<8x16xf32>
    %cst_20 = arith.constant dense<0xFF800000> : vector<8xf32>
    %45 = vector.multi_reduction <maximumf>, %44, %cst_20 [1] : vector<8x16xf32> to vector<8xf32>
    %46 = vector.shape_cast %45 : vector<8xf32> to vector<8x1xf32>
    %47 = vector.broadcast %46 : vector<8x1xf32> to vector<8x16xf32>
    %48 = arith.subf %44, %47 : vector<8x16xf32>
    %49 = math.exp %48 : vector<8x16xf32>
    %cst_21 = arith.constant dense<0.000000e+00> : vector<8xf32>
    %50 = vector.multi_reduction <add>, %49, %cst_21 [1] : vector<8x16xf32> to vector<8xf32>
    %51 = vector.shape_cast %50 : vector<8xf32> to vector<8x1xf32>
    %52 = tpu.reciprocal %51 {approx = true} : vector<8x1xf32> -> vector<8x1xf32>
    %53 = vector.broadcast %52 : vector<8x1xf32> to vector<8x16xf32>
    %54 = arith.mulf %49, %53 : vector<8x16xf32>
    %55 = arith.truncf %54 : vector<8x16xf32> to vector<8x16xbf16>
    %cst_22 = arith.constant dense<0.000000e+00> : vector<8x8xf32>
    %56 = tpu.matmul %55, %43, %cst_22 {dimension_numbers = #tpu.dot_dimension_numbers<[1], [0], [0], [1], [0, 0, 1, 1], [], []>} : vector<8x16xbf16>, vector<16x8xbf16>, vector<8x8xf32> -> vector<8x8xf32>
    %c0_23 = arith.constant 0 : index
    %c0_24 = arith.constant 0 : index
    %57 = vector.load %arg22[%c0_23, %c0_24] : memref<8x32xf32, #tpu.memory_space<vmem>>, vector<8x8xf32>
    tpu.vector_store %arg22[%c0_23, %c0_24], %56 {strides = array<i32>} : memref<8x32xf32, #tpu.memory_space<vmem>>, vector<8x8xf32>,
    %58 = vector.extract_strided_slice %38 {offsets = [0, 8], sizes = [8, 8], strides = [1, 1]} : vector<8x32xbf16> to vector<8x8xbf16>
    %59 = vector.extract_strided_slice %39 {offsets = [0, 8], sizes = [16, 8], strides = [1, 1]} : vector<16x32xbf16> to vector<16x8xbf16>
    %60 = vector.extract_strided_slice %40 {offsets = [0, 8], sizes = [16, 8], strides = [1, 1]} : vector<16x32xbf16> to vector<16x8xbf16>
    %cst_25 = arith.constant dense<0.000000e+00> : vector<8x16xf32>
    %61 = tpu.matmul %58, %59, %cst_25 {dimension_numbers = #tpu.dot_dimension_numbers<[1], [1], [0], [0], [0, 0, 1, 0], [], []>} : vector<8x8xbf16>, vector<16x8xbf16>, vector<8x16xf32> -> vector<8x16xf32>
    %cst_26 = arith.constant dense<0xFF800000> : vector<8xf32>
    %62 = vector.multi_reduction <maximumf>, %61, %cst_26 [1] : vector<8x16xf32> to vector<8xf32>
    %63 = vector.shape_cast %62 : vector<8xf32> to vector<8x1xf32>
    %64 = vector.broadcast %63 : vector<8x1xf32> to vector<8x16xf32>
    %65 = arith.subf %61, %64 : vector<8x16xf32>
    %66 = math.exp %65 : vector<8x16xf32>
    %cst_27 = arith.constant dense<0.000000e+00> : vector<8xf32>
    %67 = vector.multi_reduction <add>, %66, %cst_27 [1] : vector<8x16xf32> to vector<8xf32>
    %68 = vector.shape_cast %67 : vector<8xf32> to vector<8x1xf32>
    %69 = tpu.reciprocal %68 {approx = true} : vector<8x1xf32> -> vector<8x1xf32>
    %70 = vector.broadcast %69 : vector<8x1xf32> to vector<8x16xf32>
    %71 = arith.mulf %66, %70 : vector<8x16xf32>
    %72 = arith.truncf %71 : vector<8x16xf32> to vector<8x16xbf16>
    %cst_28 = arith.constant dense<0.000000e+00> : vector<8x8xf32>
    %73 = tpu.matmul %72, %60, %cst_28 {dimension_numbers = #tpu.dot_dimension_numbers<[1], [0], [0], [1], [0, 0, 1, 1], [], []>} : vector<8x16xbf16>, vector<16x8xbf16>, vector<8x8xf32> -> vector<8x8xf32>
    %c0_29 = arith.constant 0 : index
    %c8 = arith.constant 8 : index
    %74 = vector.load %arg22[%c0_29, %c8] : memref<8x32xf32, #tpu.memory_space<vmem>>, vector<8x8xf32>
    tpu.vector_store %arg22[%c0_29, %c8], %73 {strides = array<i32>} : memref<8x32xf32, #tpu.memory_space<vmem>>, vector<8x8xf32>,
    %75 = vector.extract_strided_slice %38 {offsets = [0, 16], sizes = [8, 8], strides = [1, 1]} : vector<8x32xbf16> to vector<8x8xbf16>
    %76 = vector.extract_strided_slice %39 {offsets = [0, 16], sizes = [16, 8], strides = [1, 1]} : vector<16x32xbf16> to vector<16x8xbf16>
    %77 = vector.extract_strided_slice %40 {offsets = [0, 16], sizes = [16, 8], strides = [1, 1]} : vector<16x32xbf16> to vector<16x8xbf16>
    %cst_30 = arith.constant dense<0.000000e+00> : vector<8x16xf32>
    %78 = tpu.matmul %75, %76, %cst_30 {dimension_numbers = #tpu.dot_dimension_numbers<[1], [1], [0], [0], [0, 0, 1, 0], [], []>} : vector<8x8xbf16>, vector<16x8xbf16>, vector<8x16xf32> -> vector<8x16xf32>
    %cst_31 = arith.constant dense<0xFF800000> : vector<8xf32>
    %79 = vector.multi_reduction <maximumf>, %78, %cst_31 [1] : vector<8x16xf32> to vector<8xf32>
    %80 = vector.shape_cast %79 : vector<8xf32> to vector<8x1xf32>
    %81 = vector.broadcast %80 : vector<8x1xf32> to vector<8x16xf32>
    %82 = arith.subf %78, %81 : vector<8x16xf32>
    %83 = math.exp %82 : vector<8x16xf32>
    %cst_32 = arith.constant dense<0.000000e+00> : vector<8xf32>
    %84 = vector.multi_reduction <add>, %83, %cst_32 [1] : vector<8x16xf32> to vector<8xf32>
    %85 = vector.shape_cast %84 : vector<8xf32> to vector<8x1xf32>
    %86 = tpu.reciprocal %85 {approx = true} : vector<8x1xf32> -> vector<8x1xf32>
    %87 = vector.broadcast %86 : vector<8x1xf32> to vector<8x16xf32>
    %88 = arith.mulf %83, %87 : vector<8x16xf32>
    %89 = arith.truncf %88 : vector<8x16xf32> to vector<8x16xbf16>
    %cst_33 = arith.constant dense<0.000000e+00> : vector<8x8xf32>
    %90 = tpu.matmul %89, %77, %cst_33 {dimension_numbers = #tpu.dot_dimension_numbers<[1], [0], [0], [1], [0, 0, 1, 1], [], []>} : vector<8x16xbf16>, vector<16x8xbf16>, vector<8x8xf32> -> vector<8x8xf32>
    %c0_34 = arith.constant 0 : index
    %c16 = arith.constant 16 : index
    %91 = vector.load %arg22[%c0_34, %c16] : memref<8x32xf32, #tpu.memory_space<vmem>>, vector<8x8xf32>
    tpu.vector_store %arg22[%c0_34, %c16], %90 {strides = array<i32>} : memref<8x32xf32, #tpu.memory_space<vmem>>, vector<8x8xf32>,
    %92 = vector.extract_strided_slice %38 {offsets = [0, 24], sizes = [8, 8], strides = [1, 1]} : vector<8x32xbf16> to vector<8x8xbf16>
    %93 = vector.extract_strided_slice %39 {offsets = [0, 24], sizes = [16, 8], strides = [1, 1]} : vector<16x32xbf16> to vector<16x8xbf16>
    %94 = vector.extract_strided_slice %40 {offsets = [0, 24], sizes = [16, 8], strides = [1, 1]} : vector<16x32xbf16> to vector<16x8xbf16>
    %cst_35 = arith.constant dense<0.000000e+00> : vector<8x16xf32>
    %95 = tpu.matmul %92, %93, %cst_35 {dimension_numbers = #tpu.dot_dimension_numbers<[1], [1], [0], [0], [0, 0, 1, 0], [], []>} : vector<8x8xbf16>, vector<16x8xbf16>, vector<8x16xf32> -> vector<8x16xf32>
    %cst_36 = arith.constant dense<0xFF800000> : vector<8xf32>
    %96 = vector.multi_reduction <maximumf>, %95, %cst_36 [1] : vector<8x16xf32> to vector<8xf32>
    %97 = vector.shape_cast %96 : vector<8xf32> to vector<8x1xf32>
    %98 = vector.broadcast %97 : vector<8x1xf32> to vector<8x16xf32>
    %99 = arith.subf %95, %98 : vector<8x16xf32>
    %100 = math.exp %99 : vector<8x16xf32>
    %cst_37 = arith.constant dense<0.000000e+00> : vector<8xf32>
    %101 = vector.multi_reduction <add>, %100, %cst_37 [1] : vector<8x16xf32> to vector<8xf32>
    %102 = vector.shape_cast %101 : vector<8xf32> to vector<8x1xf32>
    %103 = tpu.reciprocal %102 {approx = true} : vector<8x1xf32> -> vector<8x1xf32>
    %104 = vector.broadcast %103 : vector<8x1xf32> to vector<8x16xf32>
    %105 = arith.mulf %100, %104 : vector<8x16xf32>
    %106 = arith.truncf %105 : vector<8x16xf32> to vector<8x16xbf16>
    %cst_38 = arith.constant dense<0.000000e+00> : vector<8x8xf32>
    %107 = tpu.matmul %106, %94, %cst_38 {dimension_numbers = #tpu.dot_dimension_numbers<[1], [0], [0], [1], [0, 0, 1, 1], [], []>} : vector<8x16xbf16>, vector<16x8xbf16>, vector<8x8xf32> -> vector<8x8xf32>
    %c0_39 = arith.constant 0 : index
    %c24 = arith.constant 24 : index
    %108 = vector.load %arg22[%c0_39, %c24] : memref<8x32xf32, #tpu.memory_space<vmem>>, vector<8x8xf32>
    tpu.vector_store %arg22[%c0_39, %c24], %107 {strides = array<i32>} : memref<8x32xf32, #tpu.memory_space<vmem>>, vector<8x8xf32>,
    %c0_40 = arith.constant 0 : index
    %c0_41 = arith.constant 0 : index
    %109 = vector.load %arg22[%c0_40, %c0_41] : memref<8x32xf32, #tpu.memory_space<vmem>>, vector<8x32xf32>
    %110 = arith.truncf %109 : vector<8x32xf32> to vector<8x32xbf16>
    %c0_42 = arith.constant 0 : index
    %c0_43 = arith.constant 0 : index
    %111 = vector.load %arg11[%c0_42, %c0_43] : memref<32x32xbf16, #tpu.memory_space<vmem>>, vector<32x32xbf16>
    %cst_44 = arith.constant dense<0.000000e+00> : vector<8x32xf32>
    %112 = tpu.matmul %110, %111, %cst_44 {dimension_numbers = #tpu.dot_dimension_numbers<[1], [0], [0], [1], [0, 0, 1, 1], [], []>} : vector<8x32xbf16>, vector<32x32xbf16>, vector<8x32xf32> -> vector<8x32xf32>
    %c0_45 = arith.constant 0 : index
    %c0_46 = arith.constant 0 : index
    %113 = vector.load %arg12[%c0_45, %c0_46] : memref<1x32xf32, #tpu.memory_space<vmem>>, vector<1x32xf32>
    %114 = vector.broadcast %113 : vector<1x32xf32> to vector<8x32xf32>
    %115 = arith.addf %112, %114 : vector<8x32xf32>
    %116 = arith.addf %7, %115 : vector<8x32xf32>
    %c0_47 = arith.constant 0 : index
    %c0_48 = arith.constant 0 : index
    %117 = vector.load %arg13[%c0_47, %c0_48] : memref<1x32xf32, #tpu.memory_space<vmem>>, vector<1x32xf32>
    %c0_49 = arith.constant 0 : index
    %c0_50 = arith.constant 0 : index
    %118 = vector.load %arg14[%c0_49, %c0_50] : memref<1x32xf32, #tpu.memory_space<vmem>>, vector<1x32xf32>
    %cst_51 = arith.constant dense<0.000000e+00> : vector<8xf32>
    %119 = vector.multi_reduction <add>, %116, %cst_51 [1] : vector<8x32xf32> to vector<8xf32>
    %120 = vector.shape_cast %119 : vector<8xf32> to vector<8x1xf32>
    %cst_52 = arith.constant 3.200000e+01 : f32
    %121 = vector.broadcast %cst_52 : f32 to vector<8x1xf32>
    %122 = arith.divf %120, %121 : vector<8x1xf32>
    %123 = vector.broadcast %122 : vector<8x1xf32> to vector<8x32xf32>
    %124 = arith.subf %116, %123 : vector<8x32xf32>
    %125 = arith.mulf %124, %124 : vector<8x32xf32>
    %cst_53 = arith.constant dense<0.000000e+00> : vector<8xf32>
    %126 = vector.multi_reduction <add>, %125, %cst_53 [1] : vector<8x32xf32> to vector<8xf32>
    %127 = vector.shape_cast %126 : vector<8xf32> to vector<8x1xf32>
    %cst_54 = arith.constant 3.200000e+01 : f32
    %128 = vector.broadcast %cst_54 : f32 to vector<8x1xf32>
    %129 = arith.divf %127, %128 : vector<8x1xf32>
    %130 = vector.broadcast %122 : vector<8x1xf32> to vector<8x32xf32>
    %131 = arith.subf %116, %130 : vector<8x32xf32>
    %cst_55 = arith.constant 9.99999974E-6 : f32
    %132 = vector.broadcast %cst_55 : f32 to vector<8x1xf32>
    %133 = arith.addf %129, %132 : vector<8x1xf32>
    %134 = math.rsqrt %133 : vector<8x1xf32>
    %135 = vector.broadcast %134 : vector<8x1xf32> to vector<8x32xf32>
    %136 = arith.mulf %131, %135 : vector<8x32xf32>
    %137 = vector.broadcast %117 : vector<1x32xf32> to vector<8x32xf32>
    %138 = arith.mulf %136, %137 : vector<8x32xf32>
    %139 = vector.broadcast %118 : vector<1x32xf32> to vector<8x32xf32>
    %140 = arith.addf %138, %139 : vector<8x32xf32>
    %141 = arith.truncf %140 : vector<8x32xf32> to vector<8x32xbf16>
    %c0_56 = arith.constant 0 : index
    %c0_57 = arith.constant 0 : index
    %142 = vector.load %arg15[%c0_56, %c0_57] : memref<32x128xbf16, #tpu.memory_space<vmem>>, vector<32x128xbf16>
    %cst_58 = arith.constant dense<0.000000e+00> : vector<8x128xf32>
    %143 = tpu.matmul %141, %142, %cst_58 {dimension_numbers = #tpu.dot_dimension_numbers<[1], [0], [0], [1], [0, 0, 1, 1], [], []>} : vector<8x32xbf16>, vector<32x128xbf16>, vector<8x128xf32> -> vector<8x128xf32>
    %c0_59 = arith.constant 0 : index
    %c0_60 = arith.constant 0 : index
    %144 = vector.load %arg16[%c0_59, %c0_60] : memref<1x128xf32, #tpu.memory_space<vmem>>, vector<1x128xf32>
    %145 = vector.broadcast %144 : vector<1x128xf32> to vector<8x128xf32>
    %146 = arith.addf %143, %145 : vector<8x128xf32>
    %cst_61 = arith.constant 1.702000e+00 : f32
    %147 = vector.broadcast %cst_61 : f32 to vector<8x128xf32>
    %148 = arith.mulf %147, %146 : vector<8x128xf32>
    %149 = arith.negf %148 : vector<8x128xf32>
    %150 = math.exp %149 : vector<8x128xf32>
    %cst_62 = arith.constant 1.000000e+00 : f32
    %151 = vector.broadcast %cst_62 : f32 to vector<8x128xf32>
    %152 = arith.addf %151, %150 : vector<8x128xf32>
    %153 = arith.divf %151, %152 : vector<8x128xf32>
    %154 = arith.mulf %146, %153 : vector<8x128xf32>
    %155 = arith.truncf %154 : vector<8x128xf32> to vector<8x128xbf16>
    %c0_63 = arith.constant 0 : index
    %c0_64 = arith.constant 0 : index
    %156 = vector.load %arg17[%c0_63, %c0_64] : memref<128x32xbf16, #tpu.memory_space<vmem>>, vector<128x32xbf16>
    %cst_65 = arith.constant dense<0.000000e+00> : vector<8x32xf32>
    %157 = tpu.matmul %155, %156, %cst_65 {dimension_numbers = #tpu.dot_dimension_numbers<[1], [0], [0], [1], [0, 0, 1, 1], [], []>} : vector<8x128xbf16>, vector<128x32xbf16>, vector<8x32xf32> -> vector<8x32xf32>
    %c0_66 = arith.constant 0 : index
    %c0_67 = arith.constant 0 : index
    %158 = vector.load %arg18[%c0_66, %c0_67] : memref<1x32xf32, #tpu.memory_space<vmem>>, vector<1x32xf32>
    %159 = vector.broadcast %158 : vector<1x32xf32> to vector<8x32xf32>
    %160 = arith.addf %157, %159 : vector<8x32xf32>
    %161 = arith.addf %116, %160 : vector<8x32xf32>
    %c0_68 = arith.constant 0 : index
    %c0_69 = arith.constant 0 : index
    %c0_70 = arith.constant 0 : index
    %162 = vector.load %arg19[%c0_68, %c0_69, %c0_70] : memref<1x8x32xf32, #tpu.memory_space<vmem>>, vector<1x8x32xf32>
    %163 = vector.shape_cast %162 : vector<1x8x32xf32> to vector<8x32xf32>
    %164 = vector.shape_cast %161 : vector<8x32xf32> to vector<1x8x32xf32>
    tpu.vector_store %arg19[%c0_68, %c0_69, %c0_70], %164 {strides = array<i32>} : memref<1x8x32xf32, #tpu.memory_space<vmem>>, vector<1x8x32xf32>,
    return
  }
  func.func @transform_0(%arg0: i32, %arg1: i32) -> (i32, i32, i32) {
    %c0_i32 = arith.constant 0 : i32
    %c0_i32_0 = arith.constant 0 : i32
    %c0_i32_1 = arith.constant 0 : i32
    return %arg0, %c0_i32, %c0_i32_0 : i32, i32, i32
  }
  func.func @transform_1(%arg0: i32, %arg1: i32) -> (i32, i32) {
    %c0_i32 = arith.constant 0 : i32
    %c0_i32_0 = arith.constant 0 : i32
    %c0_i32_1 = arith.constant 0 : i32
    return %c0_i32, %c0_i32_0 : i32, i32
  }
  func.func @transform_2(%arg0: i32, %arg1: i32) -> (i32, i32) {
    %c0_i32 = arith.constant 0 : i32
    %c0_i32_0 = arith.constant 0 : i32
    %c0_i32_1 = arith.constant 0 : i32
    return %c0_i32, %c0_i32_0 : i32, i32
  }
  func.func @transform_3(%arg0: i32, %arg1: i32) -> (i32, i32) {
    %c0_i32 = arith.constant 0 : i32
    %c0_i32_0 = arith.constant 0 : i32
    %c0_i32_1 = arith.constant 0 : i32
    return %c0_i32, %c0_i32_0 : i32, i32
  }
  func.func @transform_4(%arg0: i32, %arg1: i32) -> (i32, i32) {
    %c0_i32 = arith.constant 0 : i32
    %c0_i32_0 = arith.constant 0 : i32
    %c0_i32_1 = arith.constant 0 : i32
    return %c0_i32, %c0_i32_0 : i32, i32
  }
  func.func @transform_5(%arg0: i32, %arg1: i32) -> (i32, i32) {
    %c0_i32 = arith.constant 0 : i32
    %c0_i32_0 = arith.constant 0 : i32
    %c0_i32_1 = arith.constant 0 : i32
    return %c0_i32, %c0_i32_0 : i32, i32
  }
  func.func @transform_6(%arg0: i32, %arg1: i32) -> (i32, i32) {
    %c0_i32 = arith.constant 0 : i32
    %c0_i32_0 = arith.constant 0 : i32
    %c0_i32_1 = arith.constant 0 : i32
    return %c0_i32, %c0_i32_0 : i32, i32
  }
  func.func @transform_7(%arg0: i32, %arg1: i32) -> (i32, i32) {
    %c0_i32 = arith.constant 0 : i32
    %c0_i32_0 = arith.constant 0 : i32
    %c0_i32_1 = arith.constant 0 : i32
    return %c0_i32, %c0_i32_0 : i32, i32
  }
  func.func @transform_8(%arg0: i32, %arg1: i32) -> (i32, i32) {
    %c0_i32 = arith.constant 0 : i32
    %c0_i32_0 = arith.constant 0 : i32
    %c0_i32_1 = arith.constant 0 : i32
    return %c0_i32, %c0_i32_0 : i32, i32
  }
  func.func @transform_9(%arg0: i32, %arg1: i32) -> (i32, i32) {
    %c0_i32 = arith.constant 0 : i32
    %c0_i32_0 = arith.constant 0 : i32
    %c0_i32_1 = arith.constant 0 : i32
    return %c0_i32, %c0_i32_0 : i32, i32
  }
  func.func @transform_10(%arg0: i32, %arg1: i32) -> (i32, i32) {
    %c0_i32 = arith.constant 0 : i32
    %c0_i32_0 = arith.constant 0 : i32
    %c0_i32_1 = arith.constant 0 : i32
    return %c0_i32, %c0_i32_0 : i32, i32
  }
  func.func @transform_11(%arg0: i32, %arg1: i32) -> (i32, i32) {
    %c0_i32 = arith.constant 0 : i32
    %c0_i32_0 = arith.constant 0 : i32
    %c0_i32_1 = arith.constant 0 : i32
    return %c0_i32, %c0_i32_0 : i32, i32
  }
  func.func @transform_12(%arg0: i32, %arg1: i32) -> (i32, i32) {
    %c0_i32 = arith.constant 0 : i32
    %c0_i32_0 = arith.constant 0 : i32
    %c0_i32_1 = arith.constant 0 : i32
    return %c0_i32, %c0_i32_0 : i32, i32
  }
  func.func @transform_13(%arg0: i32, %arg1: i32) -> (i32, i32) {
    %c0_i32 = arith.constant 0 : i32
    %c0_i32_0 = arith.constant 0 : i32
    %c0_i32_1 = arith.constant 0 : i32
    return %c0_i32, %c0_i32_0 : i32, i32
  }
  func.func @transform_14(%arg0: i32, %arg1: i32) -> (i32, i32) {
    %c0_i32 = arith.constant 0 : i32
    %c0_i32_0 = arith.constant 0 : i32
    %c0_i32_1 = arith.constant 0 : i32
    return %c0_i32, %c0_i32_0 : i32, i32
  }
  func.func @transform_15(%arg0: i32, %arg1: i32) -> (i32, i32) {
    %c0_i32 = arith.constant 0 : i32
    %c0_i32_0 = arith.constant 0 : i32
    %c0_i32_1 = arith.constant 0 : i32
    return %c0_i32, %c0_i32_0 : i32, i32
  }
  func.func @transform_16(%arg0: i32, %arg1: i32) -> (i32, i32) {
    %c0_i32 = arith.constant 0 : i32
    %c0_i32_0 = arith.constant 0 : i32
    %c0_i32_1 = arith.constant 0 : i32
    return %c0_i32, %c0_i32_0 : i32, i32
  }
  func.func @transform_17(%arg0: i32, %arg1: i32) -> (i32, i32, i32) {
    %c0_i32 = arith.constant 0 : i32
    %c0_i32_0 = arith.constant 0 : i32
    return %arg0, %arg1, %c0_i32 : i32, i32, i32
  }
}

</mosaic_0001>

<llo_original>
// kernel: tpu_custom_call.1
$region0: #{tpu_custom_call.1}
  #allocation0 [shape = 'u32[]', space=smem, size = 0x4, offset = 0x4, fixed_abs, tag = 'smem constant byte address 0x4 - core index']
  #allocation1 [shape = 'u32[144,128]{1,0:T(1,128)}', space=vmem, size = 0x12000, scoped, tag = 'internal scratch']
  #allocation2 [shape = 'bf16[16,32]{1,0:T(16,128)(2,1)}', space=vmem, size = 0x1000, scoped, tag = 'scratch operand']
  #allocation3 [shape = 'bf16[16,32]{1,0:T(16,128)(2,1)}', space=vmem, size = 0x1000, scoped, tag = 'scratch operand']
  #allocation4 [shape = 'f32[8,32]{1,0:T(8,128)}', space=vmem, size = 0x1000, scoped, tag = 'scratch operand']
  %s0 = inlined_call_operand.vmem [shape: f32[2,16,32], index: 0, kind: input, shape index: {}]
  %s1 = inlined_call_operand.vmem [shape: f32[1,32], index: 1, kind: input, shape index: {}]
  %s2 = inlined_call_operand.hbm [shape: f32[1,32], index: 2, kind: input, shape index: {}]
  %s3 = inlined_call_operand.vmem [shape: bf16[32,32], index: 3, kind: input, shape index: {}]
  %s4 = inlined_call_operand.hbm [shape: f32[1,32], index: 4, kind: input, shape index: {}]
  %s5 = inlined_call_operand.vmem [shape: bf16[32,32], index: 5, kind: input, shape index: {}]
  %s6 = inlined_call_operand.hbm [shape: f32[1,32], index: 6, kind: input, shape index: {}]
  %s7 = inlined_call_operand.vmem [shape: bf16[32,32], index: 7, kind: input, shape index: {}]
  %s8 = inlined_call_operand.hbm [shape: f32[1,32], index: 8, kind: input, shape index: {}]
  %s9 = inlined_call_operand.vmem [shape: bf16[32,32], index: 9, kind: input, shape index: {}]
  %s10 = inlined_call_operand.hbm [shape: f32[1,32], index: 10, kind: input, shape index: {}]
  %s11 = inlined_call_operand.hbm [shape: f32[1,32], index: 11, kind: input, shape index: {}]
  %s12 = inlined_call_operand.hbm [shape: f32[1,32], index: 12, kind: input, shape index: {}]
  %s13 = inlined_call_operand.vmem [shape: bf16[32,128], index: 13, kind: input, shape index: {}]
  %s14 = inlined_call_operand.vmem [shape: f32[1,128], index: 14, kind: input, shape index: {}]
  %s15 = inlined_call_operand.vmem [shape: bf16[128,32], index: 15, kind: input, shape index: {}]
  %s16 = inlined_call_operand.vmem [shape: f32[1,32], index: 16, kind: input, shape index: {}]
  %s17 = inlined_call_operand.hbm [shape: f32[2,16,32], index: 17, kind: output, shape index: {}]
  %s18 = sld [smem:[#allocation0]]
  $region133: #{tpu_custom_call.1} parent=0
    _
  %s20 = ssub.s32 1, %s18
  %s21 = scalar_select 0, %s20, %s18
  $region1: #{tpu_custom_call.1} parent=0
    #allocation5 [shape = 'u8[512]{0}', space=vmem, size = 0x400, scoped, tag = 'input window, operand 2, single buffered']
    #allocation6 [shape = 's32[2]{0}', space=sflag, size = 0x8, scoped, tag = 'scoped memory for tpu_custom_call.1']
    #allocation7 [shape = 's32[2]{0}', space=sflag, size = 0x8, scoped, tag = 'scoped memory for tpu_custom_call.1']
    #allocation8 [shape = 'u8[512]{0}', space=vmem, size = 0x400, scoped, tag = 'input window, operand 4, single buffered']
    #allocation9 [shape = 's32[1]{0}', space=sflag, size = 0x4, scoped, tag = 'scoped memory for tpu_custom_call.1']
    #allocation10 [shape = 'u8[512]{0}', space=vmem, size = 0x400, scoped, tag = 'input window, operand 6, single buffered']
    #allocation11 [shape = 'u8[512]{0}', space=vmem, size = 0x400, scoped, tag = 'input window, operand 8, single buffered']
    #allocation12 [shape = 's32[1]{0}', space=sflag, size = 0x4, scoped, tag = 'scoped memory for tpu_custom_call.1']
    #allocation13 [shape = 'u8[512]{0}', space=vmem, size = 0x400, scoped, tag = 'input window, operand 10, single buffered']
    #allocation14 [shape = 'u8[512]{0}', space=vmem, size = 0x400, scoped, tag = 'input window, operand 11, single buffered']
    #allocation15 [shape = 's32[1]{0}', space=sflag, size = 0x4, scoped, tag = 'scoped memory for tpu_custom_call.1']
    #allocation16 [shape = 'u8[512]{0}', space=vmem, size = 0x400, scoped, tag = 'input window, operand 12, single buffered']
    #allocation17 [shape = 'u8[8192]{0}', space=vmem, size = 0x2000, scoped, tag = 'output window, operand 0']
    %22 = vsyncpa [#allocation6], 0
    %23 = vsyncpa [#allocation9], 0
    %24 = vsyncpa [#allocation12], 0
    %25 = vsyncpa [#allocation15], 0
    %26 = vsyncpa [#allocation7], 0
    %s27 = scalar_lea.sflag [#allocation7], 1
    %28 = vsyncpa %s27, 0
    loop: start=0, step=1, limit=6
    $region2: #{tpu_custom_call.1} parent=1 // loop_pre_header
      _
    $region3: #{tpu_custom_call.1} parent=1 // loop_header
      %s30 = sphi 0, %s34
      %p31 = scmp.ge.s32.totalorder %s30, 6
      %s37 = sphi 0, %s49
      %s38 = sphi 0, %s45
      %s39 = sphi 0, %s37
      %s40 = sphi 0, %s38
      %s41 = sphi 0, %s39
      %s42 = sphi 0, %s40
      %s52 = sphi 0, %s54
      %s55 = sphi 0, %s52
      %s56 = sphi 0, %s55
      %s72 = sphi 0, %s56
      %s76 = sphi 0, %s76
      %s78 = sphi 0, %s76
      %s79 = sphi 0, %s78
      %s93 = sphi 0, %s79
      %s97 = sphi 0, %s97
      %s99 = sphi 0, %s97
      %s100 = sphi 0, %s99
      %s114 = sphi 0, %s100
      %s118 = sphi 0, %s118
      %s120 = sphi 0, %s118
      %s121 = sphi 0, %s120
      %s135 = sphi 0, %s121
      %s139 = sphi 0, %s139
      %s141 = sphi 0, %s139
      %s142 = sphi 0, %s141
      %s156 = sphi 0, %s142
      %s160 = sphi 0, %s160
      %s162 = sphi 0, %s160
      %s163 = sphi 0, %s162
      %s177 = sphi 0, %s163
      %s181 = sphi 0, %s181
      %s183 = sphi 0, %s181
      %s184 = sphi 0, %s183
      %s198 = sphi 0, %s184
      %s202 = sphi 0, %s202
      %s204 = sphi 0, %s202
      %s205 = sphi 0, %s204
      %s219 = sphi 0, %s205
      %s223 = sphi 0, %s223
      %s225 = sphi 0, %s223
      %s226 = sphi 0, %s225
      %s240 = sphi 0, %s226
      %s244 = sphi 0, %s244
      %s246 = sphi 0, %s244
      %s247 = sphi 0, %s246
      %s261 = sphi 0, %s247
      %s265 = sphi 0, %s265
      %s267 = sphi 0, %s265
      %s268 = sphi 0, %s267
      %s282 = sphi 0, %s268
      %s286 = sphi 0, %s286
      %s288 = sphi 0, %s286
      %s289 = sphi 0, %s288
      %s303 = sphi 0, %s289
      %s307 = sphi 0, %s307
      %s309 = sphi 0, %s307
      %s310 = sphi 0, %s309
      %s324 = sphi 0, %s310
      %s328 = sphi 0, %s328
      %s330 = sphi 0, %s328
      %s331 = sphi 0, %s330
      %s345 = sphi 0, %s331
      %s349 = sphi 0, %s349
      %s351 = sphi 0, %s349
      %s352 = sphi 0, %s351
      %s366 = sphi 0, %s352
      %s370 = sphi 0, %s370
      %s372 = sphi 0, %s370
      %s373 = sphi 0, %s372
      %s387 = sphi 0, %s373
      %s391 = sphi 0, %s391
      %s393 = sphi 0, %s391
      %s394 = sphi 0, %s393
      %s408 = sphi 0, %s394
      %s416 = sphi 0, %s418
      %s419 = sphi 0, %s416
      %s420 = sphi 0, %s419
      %s436 = sphi 0, %s420
    $region4: #{tpu_custom_call.1} parent=1 // loop_header_branch
      %33 = sbr.rel (%p31) target = $region8
    $region5: #{tpu_custom_call.1} parent=1 // loop_body
      %s35 = ssub.s32 %s30, 1
      %s36 = ssub.s32 %s30, 2
      %s43 = sadd.s32 1, %s38
      %p44 = scmp.ge.s32.totalorder %s43, 2
      %s45 = scalar_select %p44, 0, %s43
      %s46 = sadd.s32 1, %s37
      %s47 = scalar_select %p44, %s46, %s37
      %p48 = scmp.ge.s32.totalorder %s47, 2
      %s49 = scalar_select %p48, 0, %s47
      %s50 = ssub.s32 %s37, %s49
      %p51 = scmp.eq.s32.totalorder %s50, 0
      %s53 = sadd.s32 %s52, 1
      %s54 = scalar_select %p51, %s52, %s53
      %p57 = pneg %p51
      %p58 = scmp.eq.s32.totalorder %s30, 3
      %p59 = por %p57, %p58
      %p60 = scmp.ne.s32.totalorder %s52, %s55
      %p61 = scmp.eq.s32.totalorder %s30, 0
      %p62 = por %p60, %p61
      %p63 = scmp.ne.s32.totalorder %s52, %s55
      %p64 = scmp.eq.s32.totalorder %s35, 3
      %p65 = por %p63, %p64
      %p66 = scmp.ne.s32.totalorder %s55, %s56
      %p67 = scmp.eq.s32.totalorder %s35, 0
      %p68 = por %p66, %p67
      %p69 = scmp.ne.s32.totalorder %s55, %s56
      %p70 = scmp.eq.s32.totalorder %s36, 3
      %p71 = por %p69, %p70
      %p73 = scmp.ne.s32.totalorder %s56, %s72
      %p74 = scmp.eq.s32.totalorder %s36, 0
      %p75 = por %p73, %p74
      %s77 = sadd.s32 %s76, 1
      %p80 = scmp.eq.s32.totalorder %s30, 3
      %p81 = scmp.ne.s32.totalorder %s76, %s78
      %p82 = scmp.eq.s32.totalorder %s30, 0
      %p83 = por %p81, %p82
      %p84 = scmp.ne.s32.totalorder %s76, %s78
      %p85 = scmp.eq.s32.totalorder %s35, 3
      %p86 = por %p84, %p85
      %p87 = scmp.ne.s32.totalorder %s78, %s79
      %p88 = scmp.eq.s32.totalorder %s35, 0
      %p89 = por %p87, %p88
      %p90 = scmp.ne.s32.totalorder %s78, %s79
      %p91 = scmp.eq.s32.totalorder %s36, 3
      %p92 = por %p90, %p91
      %p94 = scmp.ne.s32.totalorder %s79, %s93
      %p95 = scmp.eq.s32.totalorder %s36, 0
      %p96 = por %p94, %p95
      %s98 = sadd.s32 %s97, 1
      %p101 = scmp.eq.s32.totalorder %s30, 3
      %p102 = scmp.ne.s32.totalorder %s97, %s99
      %p103 = scmp.eq.s32.totalorder %s30, 0
      %p104 = por %p102, %p103
      %p105 = scmp.ne.s32.totalorder %s97, %s99
      %p106 = scmp.eq.s32.totalorder %s35, 3
      %p107 = por %p105, %p106
      %p108 = scmp.ne.s32.totalorder %s99, %s100
      %p109 = scmp.eq.s32.totalorder %s35, 0
      %p110 = por %p108, %p109
      %p111 = scmp.ne.s32.totalorder %s99, %s100
      %p112 = scmp.eq.s32.totalorder %s36, 3
      %p113 = por %p111, %p112
      %p115 = scmp.ne.s32.totalorder %s100, %s114
      %p116 = scmp.eq.s32.totalorder %s36, 0
      %p117 = por %p115, %p116
      %s119 = sadd.s32 %s118, 1
      %p122 = scmp.eq.s32.totalorder %s30, 3
      %p123 = scmp.ne.s32.totalorder %s118, %s120
      %p124 = scmp.eq.s32.totalorder %s30, 0
      %p125 = por %p123, %p124
      %p126 = scmp.ne.s32.totalorder %s118, %s120
      %p127 = scmp.eq.s32.totalorder %s35, 3
      %p128 = por %p126, %p127
      %p129 = scmp.ne.s32.totalorder %s120, %s121
      %p130 = scmp.eq.s32.totalorder %s35, 0
      %p131 = por %p129, %p130
      %p132 = scmp.ne.s32.totalorder %s120, %s121
      %p133 = scmp.eq.s32.totalorder %s36, 3
      %p134 = por %p132, %p133
      %p136 = scmp.ne.s32.totalorder %s121, %s135
      %p137 = scmp.eq.s32.totalorder %s36, 0
      %p138 = por %p136, %p137
      %s140 = sadd.s32 %s139, 1
      %p143 = scmp.eq.s32.totalorder %s30, 3
      %p144 = scmp.ne.s32.totalorder %s139, %s141
      %p145 = scmp.eq.s32.totalorder %s30, 0
      %p146 = por %p144, %p145
      %p147 = scmp.ne.s32.totalorder %s139, %s141
      %p148 = scmp.eq.s32.totalorder %s35, 3
      %p149 = por %p147, %p148
      %p150 = scmp.ne.s32.totalorder %s141, %s142
      %p151 = scmp.eq.s32.totalorder %s35, 0
      %p152 = por %p150, %p151
      %p153 = scmp.ne.s32.totalorder %s141, %s142
      %p154 = scmp.eq.s32.totalorder %s36, 3
      %p155 = por %p153, %p154
      %p157 = scmp.ne.s32.totalorder %s142, %s156
      %p158 = scmp.eq.s32.totalorder %s36, 0
      %p159 = por %p157, %p158
      %s161 = sadd.s32 %s160, 1
      %p164 = scmp.eq.s32.totalorder %s30, 3
      %p165 = scmp.ne.s32.totalorder %s160, %s162
      %p166 = scmp.eq.s32.totalorder %s30, 0
      %p167 = por %p165, %p166
      %p168 = scmp.ne.s32.totalorder %s160, %s162
      %p169 = scmp.eq.s32.totalorder %s35, 3
      %p170 = por %p168, %p169
      %p171 = scmp.ne.s32.totalorder %s162, %s163
      %p172 = scmp.eq.s32.totalorder %s35, 0
      %p173 = por %p171, %p172
      %p174 = scmp.ne.s32.totalorder %s162, %s163
      %p175 = scmp.eq.s32.totalorder %s36, 3
      %p176 = por %p174, %p175
      %p178 = scmp.ne.s32.totalorder %s163, %s177
      %p179 = scmp.eq.s32.totalorder %s36, 0
      %p180 = por %p178, %p179
      %s182 = sadd.s32 %s181, 1
      %p185 = scmp.eq.s32.totalorder %s30, 3
      %p186 = scmp.ne.s32.totalorder %s181, %s183
      %p187 = scmp.eq.s32.totalorder %s30, 0
      %p188 = por %p186, %p187
      %p189 = scmp.ne.s32.totalorder %s181, %s183
      %p190 = scmp.eq.s32.totalorder %s35, 3
      %p191 = por %p189, %p190
      %p192 = scmp.ne.s32.totalorder %s183, %s184
      %p193 = scmp.eq.s32.totalorder %s35, 0
      %p194 = por %p192, %p193
      %p195 = scmp.ne.s32.totalorder %s183, %s184
      %p196 = scmp.eq.s32.totalorder %s36, 3
      %p197 = por %p195, %p196
      %p199 = scmp.ne.s32.totalorder %s184, %s198
      %p200 = scmp.eq.s32.totalorder %s36, 0
      %p201 = por %p199, %p200
      %s203 = sadd.s32 %s202, 1
      %p206 = scmp.eq.s32.totalorder %s30, 3
      %p207 = scmp.ne.s32.totalorder %s202, %s204
      %p208 = scmp.eq.s32.totalorder %s30, 0
      %p209 = por %p207, %p208
      %p210 = scmp.ne.s32.totalorder %s202, %s204
      %p211 = scmp.eq.s32.totalorder %s35, 3
      %p212 = por %p210, %p211
      %p213 = scmp.ne.s32.totalorder %s204, %s205
      %p214 = scmp.eq.s32.totalorder %s35, 0
      %p215 = por %p213, %p214
      %p216 = scmp.ne.s32.totalorder %s204, %s205
      %p217 = scmp.eq.s32.totalorder %s36, 3
      %p218 = por %p216, %p217
      %p220 = scmp.ne.s32.totalorder %s205, %s219
      %p221 = scmp.eq.s32.totalorder %s36, 0
      %p222 = por %p220, %p221
      %s224 = sadd.s32 %s223, 1
      %p227 = scmp.eq.s32.totalorder %s30, 3
      %p228 = scmp.ne.s32.totalorder %s223, %s225
      %p229 = scmp.eq.s32.totalorder %s30, 0
      %p230 = por %p228, %p229
      %p231 = scmp.ne.s32.totalorder %s223, %s225
      %p232 = scmp.eq.s32.totalorder %s35, 3
      %p233 = por %p231, %p232
      %p234 = scmp.ne.s32.totalorder %s225, %s226
      %p235 = scmp.eq.s32.totalorder %s35, 0
      %p236 = por %p234, %p235
      %p237 = scmp.ne.s32.totalorder %s225, %s226
      %p238 = scmp.eq.s32.totalorder %s36, 3
      %p239 = por %p237, %p238
      %p241 = scmp.ne.s32.totalorder %s226, %s240
      %p242 = scmp.eq.s32.totalorder %s36, 0
      %p243 = por %p241, %p242
      %s245 = sadd.s32 %s244, 1
      %p248 = scmp.eq.s32.totalorder %s30, 3
      %p249 = scmp.ne.s32.totalorder %s244, %s246
      %p250 = scmp.eq.s32.totalorder %s30, 0
      %p251 = por %p249, %p250
      %p252 = scmp.ne.s32.totalorder %s244, %s246
      %p253 = scmp.eq.s32.totalorder %s35, 3
      %p254 = por %p252, %p253
      %p255 = scmp.ne.s32.totalorder %s246, %s247
      %p256 = scmp.eq.s32.totalorder %s35, 0
      %p257 = por %p255, %p256
      %p258 = scmp.ne.s32.totalorder %s246, %s247
      %p259 = scmp.eq.s32.totalorder %s36, 3
      %p260 = por %p258, %p259
      %p262 = scmp.ne.s32.totalorder %s247, %s261
      %p263 = scmp.eq.s32.totalorder %s36, 0
      %p264 = por %p262, %p263
      %s266 = sadd.s32 %s265, 1
      %p269 = scmp.eq.s32.totalorder %s30, 3
      %p270 = scmp.ne.s32.totalorder %s265, %s267
      %p271 = scmp.eq.s32.totalorder %s30, 0
      %p272 = por %p270, %p271
      %p273 = scmp.ne.s32.totalorder %s265, %s267
      %p274 = scmp.eq.s32.totalorder %s35, 3
      %p275 = por %p273, %p274
      %p276 = scmp.ne.s32.totalorder %s267, %s268
      %p277 = scmp.eq.s32.totalorder %s35, 0
      %p278 = por %p276, %p277
      %p279 = scmp.ne.s32.totalorder %s267, %s268
      %p280 = scmp.eq.s32.totalorder %s36, 3
      %p281 = por %p279, %p280
      %p283 = scmp.ne.s32.totalorder %s268, %s282
      %p284 = scmp.eq.s32.totalorder %s36, 0
      %p285 = por %p283, %p284
      %s287 = sadd.s32 %s286, 1
      %p290 = scmp.eq.s32.totalorder %s30, 3
      %p291 = scmp.ne.s32.totalorder %s286, %s288
      %p292 = scmp.eq.s32.totalorder %s30, 0
      %p293 = por %p291, %p292
      %p294 = scmp.ne.s32.totalorder %s286, %s288
      %p295 = scmp.eq.s32.totalorder %s35, 3
      %p296 = por %p294, %p295
      %p297 = scmp.ne.s32.totalorder %s288, %s289
      %p298 = scmp.eq.s32.totalorder %s35, 0
      %p299 = por %p297, %p298
      %p300 = scmp.ne.s32.totalorder %s288, %s289
      %p301 = scmp.eq.s32.totalorder %s36, 3
      %p302 = por %p300, %p301
      %p304 = scmp.ne.s32.totalorder %s289, %s303
      %p305 = scmp.eq.s32.totalorder %s36, 0
      %p306 = por %p304, %p305
      %s308 = sadd.s32 %s307, 1
      %p311 = scmp.eq.s32.totalorder %s30, 3
      %p312 = scmp.ne.s32.totalorder %s307, %s309
      %p313 = scmp.eq.s32.totalorder %s30, 0
      %p314 = por %p312, %p313
      %p315 = scmp.ne.s32.totalorder %s307, %s309
      %p316 = scmp.eq.s32.totalorder %s35, 3
      %p317 = por %p315, %p316
      %p318 = scmp.ne.s32.totalorder %s309, %s310
      %p319 = scmp.eq.s32.totalorder %s35, 0
      %p320 = por %p318, %p319
      %p321 = scmp.ne.s32.totalorder %s309, %s310
      %p322 = scmp.eq.s32.totalorder %s36, 3
      %p323 = por %p321, %p322
      %p325 = scmp.ne.s32.totalorder %s310, %s324
      %p326 = scmp.eq.s32.totalorder %s36, 0
      %p327 = por %p325, %p326
      %s329 = sadd.s32 %s328, 1
      %p332 = scmp.eq.s32.totalorder %s30, 3
      %p333 = scmp.ne.s32.totalorder %s328, %s330
      %p334 = scmp.eq.s32.totalorder %s30, 0
      %p335 = por %p333, %p334
      %p336 = scmp.ne.s32.totalorder %s328, %s330
      %p337 = scmp.eq.s32.totalorder %s35, 3
      %p338 = por %p336, %p337
      %p339 = scmp.ne.s32.totalorder %s330, %s331
      %p340 = scmp.eq.s32.totalorder %s35, 0
      %p341 = por %p339, %p340
      %p342 = scmp.ne.s32.totalorder %s330, %s331
      %p343 = scmp.eq.s32.totalorder %s36, 3
      %p344 = por %p342, %p343
      %p346 = scmp.ne.s32.totalorder %s331, %s345
      %p347 = scmp.eq.s32.totalorder %s36, 0
      %p348 = por %p346, %p347
      %s350 = sadd.s32 %s349, 1
      %p353 = scmp.eq.s32.totalorder %s30, 3
      %p354 = scmp.ne.s32.totalorder %s349, %s351
      %p355 = scmp.eq.s32.totalorder %s30, 0
      %p356 = por %p354, %p355
      %p357 = scmp.ne.s32.totalorder %s349, %s351
      %p358 = scmp.eq.s32.totalorder %s35, 3
      %p359 = por %p357, %p358
      %p360 = scmp.ne.s32.totalorder %s351, %s352
      %p361 = scmp.eq.s32.totalorder %s35, 0
      %p362 = por %p360, %p361
      %p363 = scmp.ne.s32.totalorder %s351, %s352
      %p364 = scmp.eq.s32.totalorder %s36, 3
      %p365 = por %p363, %p364
      %p367 = scmp.ne.s32.totalorder %s352, %s366
      %p368 = scmp.eq.s32.totalorder %s36, 0
      %p369 = por %p367, %p368
      %s371 = sadd.s32 %s370, 1
      %p374 = scmp.eq.s32.totalorder %s30, 3
      %p375 = scmp.ne.s32.totalorder %s370, %s372
      %p376 = scmp.eq.s32.totalorder %s30, 0
      %p377 = por %p375, %p376
      %p378 = scmp.ne.s32.totalorder %s370, %s372
      %p379 = scmp.eq.s32.totalorder %s35, 3
      %p380 = por %p378, %p379
      %p381 = scmp.ne.s32.totalorder %s372, %s373
      %p382 = scmp.eq.s32.totalorder %s35, 0
      %p383 = por %p381, %p382
      %p384 = scmp.ne.s32.totalorder %s372, %s373
      %p385 = scmp.eq.s32.totalorder %s36, 3
      %p386 = por %p384, %p385
      %p388 = scmp.ne.s32.totalorder %s373, %s387
      %p389 = scmp.eq.s32.totalorder %s36, 0
      %p390 = por %p388, %p389
      %s392 = sadd.s32 %s391, 1
      %p395 = scmp.eq.s32.totalorder %s30, 3
      %p396 = scmp.ne.s32.totalorder %s391, %s393
      %p397 = scmp.eq.s32.totalorder %s30, 0
      %p398 = por %p396, %p397
      %p399 = scmp.ne.s32.totalorder %s391, %s393
      %p400 = scmp.eq.s32.totalorder %s35, 3
      %p401 = por %p399, %p400
      %p402 = scmp.ne.s32.totalorder %s393, %s394
      %p403 = scmp.eq.s32.totalorder %s35, 0
      %p404 = por %p402, %p403
      %p405 = scmp.ne.s32.totalorder %s393, %s394
      %p406 = scmp.eq.s32.totalorder %s36, 3
      %p407 = por %p405, %p406
      %p409 = scmp.ne.s32.totalorder %s394, %s408
      %p410 = scmp.eq.s32.totalorder %s36, 0
      %p411 = por %p409, %p410
      %s412 = ssub.s32 %s37, %s49
      %s413 = ssub.s32 %s38, %s45
      %s414 = sor.u32 %s412, %s413
      %p415 = scmp.eq.s32.totalorder %s414, 0
      %s417 = sadd.s32 %s416, 1
      %s418 = scalar_select %p415, %s416, %s417
      %p421 = pneg %p415
      %p422 = scmp.eq.s32.totalorder %s30, 3
      %p423 = por %p421, %p422
      %p424 = scmp.ne.s32.totalorder %s416, %s419
      %p425 = scmp.eq.s32.totalorder %s30, 0
      %p426 = por %p424, %p425
      %p427 = scmp.ne.s32.totalorder %s416, %s419
      %p428 = scmp.eq.s32.totalorder %s35, 3
      %p429 = por %p427, %p428
      %p430 = scmp.ne.s32.totalorder %s419, %s420
      %p431 = scmp.eq.s32.totalorder %s35, 0
      %p432 = por %p430, %p431
      %p433 = scmp.ne.s32.totalorder %s419, %s420
      %p434 = scmp.eq.s32.totalorder %s36, 3
      %p435 = por %p433, %p434
      %p437 = scmp.ne.s32.totalorder %s420, %s436
      %p438 = scmp.eq.s32.totalorder %s36, 0
      %p439 = por %p437, %p438
      %p440 = scmp.le.s32.totalorder 1, %s30
      %p441 = scmp.lt.s32.totalorder %s30, 5
      %p442 = pnand %p440, %p441
      %p443 = pneg %p442
      // Predicated region
      $region9: #{tpu_custom_call.1} parent=5 // pred_check
        _
      $region10: #{tpu_custom_call.1} parent=5 // pred_check_branch
        %445 = sbr.rel (%p442) target = $region12
      $region11: #{tpu_custom_call.1} parent=5 // pred_region
        %s446 = ssub.s32 %s30, 1
        // Predicated region
        $region13: #{tpu_custom_call.1} parent=11 // pred_check
          %p447 = pneg %p89
        $region14: #{tpu_custom_call.1} parent=11 // pred_check_branch
          %449 = sbr.rel (%p447) target = $region16
        $region15: #{tpu_custom_call.1} parent=11 // pred_region
          _
        $region16: #{tpu_custom_call.1} parent=11 // pred_fallthru
          _
        // Predicated region
        $region17: #{tpu_custom_call.1} parent=11 // pred_check
          %p450 = pneg %p110
        $region18: #{tpu_custom_call.1} parent=11 // pred_check_branch
          %452 = sbr.rel (%p450) target = $region20
        $region19: #{tpu_custom_call.1} parent=11 // pred_region
          %s454 = ssub.s32 16, 16
          %455 = vsyncadd [#allocation6], %s454
          %s457 = sshll.u32 [#allocation5], 4
          %s458 = int_to_ptr.vmem [resolvable:$true] %s457
          %460 = dma.hbm_to_vmem [thread:$0]  %s2, 16, %s458, [#allocation6]
        $region20: #{tpu_custom_call.1} parent=11 // pred_fallthru
          _
        // Predicated region
        $region21: #{tpu_custom_call.1} parent=11 // pred_check
          %p461 = pneg %p131
        $region22: #{tpu_custom_call.1} parent=11 // pred_check_branch
          %463 = sbr.rel (%p461) target = $region24
        $region23: #{tpu_custom_call.1} parent=11 // pred_region
          _
        $region24: #{tpu_custom_call.1} parent=11 // pred_fallthru
          _
        // Predicated region
        $region25: #{tpu_custom_call.1} parent=11 // pred_check
          %p464 = pneg %p152
        $region26: #{tpu_custom_call.1} parent=11 // pred_check_branch
          %466 = sbr.rel (%p464) target = $region28
        $region27: #{tpu_custom_call.1} parent=11 // pred_region
          %s468 = ssub.s32 16, 16
          %469 = vsyncadd [#allocation9], %s468
          %s471 = sshll.u32 [#allocation8], 4
          %s472 = int_to_ptr.vmem [resolvable:$true] %s471
          %474 = dma.hbm_to_vmem [thread:$0]  %s4, 16, %s472, [#allocation9]
        $region28: #{tpu_custom_call.1} parent=11 // pred_fallthru
          _
        // Predicated region
        $region29: #{tpu_custom_call.1} parent=11 // pred_check
          %p475 = pneg %p173
        $region30: #{tpu_custom_call.1} parent=11 // pred_check_branch
          %477 = sbr.rel (%p475) target = $region32
        $region31: #{tpu_custom_call.1} parent=11 // pred_region
          _
        $region32: #{tpu_custom_call.1} parent=11 // pred_fallthru
          _
        // Predicated region
        $region33: #{tpu_custom_call.1} parent=11 // pred_check
          %p478 = pneg %p194
        $region34: #{tpu_custom_call.1} parent=11 // pred_check_branch
          %480 = sbr.rel (%p478) target = $region36
        $region35: #{tpu_custom_call.1} parent=11 // pred_region
          %s482 = ssub.s32 16, 16
          %483 = vsyncadd [#allocation9], %s482
          %s485 = sshll.u32 [#allocation10], 4
          %s486 = int_to_ptr.vmem [resolvable:$true] %s485
          %488 = dma.hbm_to_vmem [thread:$0]  %s6, 16, %s486, [#allocation9]
        $region36: #{tpu_custom_call.1} parent=11 // pred_fallthru
          _
        // Predicated region
        $region37: #{tpu_custom_call.1} parent=11 // pred_check
          %p489 = pneg %p215
        $region38: #{tpu_custom_call.1} parent=11 // pred_check_branch
          %491 = sbr.rel (%p489) target = $region40
        $region39: #{tpu_custom_call.1} parent=11 // pred_region
          _
        $region40: #{tpu_custom_call.1} parent=11 // pred_fallthru
          _
        // Predicated region
        $region41: #{tpu_custom_call.1} parent=11 // pred_check
          %p492 = pneg %p236
        $region42: #{tpu_custom_call.1} parent=11 // pred_check_branch
          %494 = sbr.rel (%p492) target = $region44
        $region43: #{tpu_custom_call.1} parent=11 // pred_region
          %s496 = ssub.s32 16, 16
          %497 = vsyncadd [#allocation12], %s496
          %s499 = sshll.u32 [#allocation11], 4
          %s500 = int_to_ptr.vmem [resolvable:$true] %s499
          %502 = dma.hbm_to_vmem [thread:$0]  %s8, 16, %s500, [#allocation12]
        $region44: #{tpu_custom_call.1} parent=11 // pred_fallthru
          _
        // Predicated region
        $region45: #{tpu_custom_call.1} parent=11 // pred_check
          %p503 = pneg %p257
        $region46: #{tpu_custom_call.1} parent=11 // pred_check_branch
          %505 = sbr.rel (%p503) target = $region48
        $region47: #{tpu_custom_call.1} parent=11 // pred_region
          _
        $region48: #{tpu_custom_call.1} parent=11 // pred_fallthru
          _
        // Predicated region
        $region49: #{tpu_custom_call.1} parent=11 // pred_check
          %p506 = pneg %p278
        $region50: #{tpu_custom_call.1} parent=11 // pred_check_branch
          %508 = sbr.rel (%p506) target = $region52
        $region51: #{tpu_custom_call.1} parent=11 // pred_region
          %s510 = ssub.s32 16, 16
          %511 = vsyncadd [#allocation12], %s510
          %s513 = sshll.u32 [#allocation13], 4
          %s514 = int_to_ptr.vmem [resolvable:$true] %s513
          %516 = dma.hbm_to_vmem [thread:$0]  %s10, 16, %s514, [#allocation12]
        $region52: #{tpu_custom_call.1} parent=11 // pred_fallthru
          _
        // Predicated region
        $region53: #{tpu_custom_call.1} parent=11 // pred_check
          %p517 = pneg %p299
        $region54: #{tpu_custom_call.1} parent=11 // pred_check_branch
          %519 = sbr.rel (%p517) target = $region56
        $region55: #{tpu_custom_call.1} parent=11 // pred_region
          %s521 = ssub.s32 16, 16
          %522 = vsyncadd [#allocation15], %s521
          %s524 = sshll.u32 [#allocation14], 4
          %s525 = int_to_ptr.vmem [resolvable:$true] %s524
          %527 = dma.hbm_to_vmem [thread:$0]  %s11, 16, %s525, [#allocation15]
        $region56: #{tpu_custom_call.1} parent=11 // pred_fallthru
          _
        // Predicated region
        $region57: #{tpu_custom_call.1} parent=11 // pred_check
          %p528 = pneg %p320
        $region58: #{tpu_custom_call.1} parent=11 // pred_check_branch
          %530 = sbr.rel (%p528) target = $region60
        $region59: #{tpu_custom_call.1} parent=11 // pred_region
          %s532 = ssub.s32 16, 16
          %533 = vsyncadd [#allocation15], %s532
          %s535 = sshll.u32 [#allocation16], 4
          %s536 = int_to_ptr.vmem [resolvable:$true] %s535
          %538 = dma.hbm_to_vmem [thread:$0]  %s12, 16, %s536, [#allocation15]
        $region60: #{tpu_custom_call.1} parent=11 // pred_fallthru
          _
        // Predicated region
        $region61: #{tpu_custom_call.1} parent=11 // pred_check
          %p539 = pneg %p341
        $region62: #{tpu_custom_call.1} parent=11 // pred_check_branch
          %541 = sbr.rel (%p539) target = $region64
        $region63: #{tpu_custom_call.1} parent=11 // pred_region
          _
        $region64: #{tpu_custom_call.1} parent=11 // pred_fallthru
          _
        // Predicated region
        $region65: #{tpu_custom_call.1} parent=11 // pred_check
          %p542 = pneg %p362
        $region66: #{tpu_custom_call.1} parent=11 // pred_check_branch
          %544 = sbr.rel (%p542) target = $region68
        $region67: #{tpu_custom_call.1} parent=11 // pred_region
          _
        $region68: #{tpu_custom_call.1} parent=11 // pred_fallthru
          _
        // Predicated region
        $region69: #{tpu_custom_call.1} parent=11 // pred_check
          %p545 = pneg %p383
        $region70: #{tpu_custom_call.1} parent=11 // pred_check_branch
          %547 = sbr.rel (%p545) target = $region72
        $region71: #{tpu_custom_call.1} parent=11 // pred_region
          _
        $region72: #{tpu_custom_call.1} parent=11 // pred_fallthru
          _
        // Predicated region
        $region73: #{tpu_custom_call.1} parent=11 // pred_check
          %p548 = pneg %p404
        $region74: #{tpu_custom_call.1} parent=11 // pred_check_branch
          %550 = sbr.rel (%p548) target = $region76
        $region75: #{tpu_custom_call.1} parent=11 // pred_region
          _
        $region76: #{tpu_custom_call.1} parent=11 // pred_fallthru
          _
      $region12: #{tpu_custom_call.1} parent=5 // pred_fallthru
        _
      %p551 = scmp.lt.s32.totalorder %s30, 4
      // Predicated region
      $region77: #{tpu_custom_call.1} parent=5 // pred_check
        %p552 = pneg %p551
      $region78: #{tpu_custom_call.1} parent=5 // pred_check_branch
        %554 = sbr.rel (%p552) target = $region80
      $region79: #{tpu_custom_call.1} parent=5 // pred_region
        // Predicated region
        $region81: #{tpu_custom_call.1} parent=79 // pred_check
          %p555 = pneg %p62
        $region82: #{tpu_custom_call.1} parent=79 // pred_check_branch
          %557 = sbr.rel (%p555) target = $region84
        $region83: #{tpu_custom_call.1} parent=79 // pred_region
          %p558 = scmp.lt.s32.totalorder %s37, 1
          %s559 = scalar_select %p558, %s37, 1
          %s560 = smul.addr %s559, 2
          %s561 = smul.addr %s560, 8
          %s562 = scalar_lea.vmem %s0, %s561
        $region84: #{tpu_custom_call.1} parent=79 // pred_fallthru
          _
      $region80: #{tpu_custom_call.1} parent=5 // pred_fallthru
        _
      %p563 = scmp.le.s32.totalorder 1, %s30
      %p564 = scmp.lt.s32.totalorder %s30, 5
      %p565 = pnand %p563, %p564
      %p566 = pneg %p565
      // Predicated region
      $region85: #{tpu_custom_call.1} parent=5 // pred_check
        _
      $region86: #{tpu_custom_call.1} parent=5 // pred_check_branch
        %568 = sbr.rel (%p565) target = $region88
      $region87: #{tpu_custom_call.1} parent=5 // pred_region
        %s569 = ssub.s32 %s30, 1
        // Predicated region
        $region89: #{tpu_custom_call.1} parent=87 // pred_check
          %p570 = pneg %p110
        $region90: #{tpu_custom_call.1} parent=87 // pred_check_branch
          %572 = sbr.rel (%p570) target = $region92
        $region91: #{tpu_custom_call.1} parent=87 // pred_region
          %573 = dma.done [#allocation6], 16
        $region92: #{tpu_custom_call.1} parent=87 // pred_fallthru
          _
        // Predicated region
        $region93: #{tpu_custom_call.1} parent=87 // pred_check
          %p574 = pneg %p152
        $region94: #{tpu_custom_call.1} parent=87 // pred_check_branch
          %576 = sbr.rel (%p574) target = $region96
        $region95: #{tpu_custom_call.1} parent=87 // pred_region
          %577 = dma.done [#allocation9], 16
        $region96: #{tpu_custom_call.1} parent=87 // pred_fallthru
          _
        // Predicated region
        $region97: #{tpu_custom_call.1} parent=87 // pred_check
          %p578 = pneg %p194
        $region98: #{tpu_custom_call.1} parent=87 // pred_check_branch
          %580 = sbr.rel (%p578) target = $region100
        $region99: #{tpu_custom_call.1} parent=87 // pred_region
          %581 = dma.done [#allocation9], 16
        $region100: #{tpu_custom_call.1} parent=87 // pred_fallthru
          _
        // Predicated region
        $region101: #{tpu_custom_call.1} parent=87 // pred_check
          %p582 = pneg %p236
        $region102: #{tpu_custom_call.1} parent=87 // pred_check_branch
          %584 = sbr.rel (%p582) target = $region104
        $region103: #{tpu_custom_call.1} parent=87 // pred_region
          %585 = dma.done [#allocation12], 16
        $region104: #{tpu_custom_call.1} parent=87 // pred_fallthru
          _
        // Predicated region
        $region105: #{tpu_custom_call.1} parent=87 // pred_check
          %p586 = pneg %p278
        $region106: #{tpu_custom_call.1} parent=87 // pred_check_branch
          %588 = sbr.rel (%p586) target = $region108
        $region107: #{tpu_custom_call.1} parent=87 // pred_region
          %589 = dma.done [#allocation12], 16
        $region108: #{tpu_custom_call.1} parent=87 // pred_fallthru
          _
        // Predicated region
        $region109: #{tpu_custom_call.1} parent=87 // pred_check
          %p590 = pneg %p299
        $region110: #{tpu_custom_call.1} parent=87 // pred_check_branch
          %592 = sbr.rel (%p590) target = $region112
        $region111: #{tpu_custom_call.1} parent=87 // pred_region
          %593 = dma.done [#allocation15], 16
        $region112: #{tpu_custom_call.1} parent=87 // pred_fallthru
          _
        // Predicated region
        $region113: #{tpu_custom_call.1} parent=87 // pred_check
          %p594 = pneg %p320
        $region114: #{tpu_custom_call.1} parent=87 // pred_check_branch
          %596 = sbr.rel (%p594) target = $region116
        $region115: #{tpu_custom_call.1} parent=87 // pred_region
          %597 = dma.done [#allocation15], 16
        $region116: #{tpu_custom_call.1} parent=87 // pred_fallthru
          _
        %p598 = scmp.lt.s32.totalorder %s39, 1
        %s599 = scalar_select %p598, %s39, 1
        %s600 = smul.addr %s599, 2
        %s601 = smul.addr %s600, 8
        %s602 = scalar_lea.vmem %s0, %s601
        %p603 = pneg %p68
        %p604 = pneg %p65
        %p605 = pneg %p89
        %p606 = pneg %p86
        %p607 = pneg %p110
        %p608 = pneg %p107
        %p609 = pneg %p131
        %p610 = pneg %p128
        %p611 = pneg %p152
        %p612 = pneg %p149
        %p613 = pneg %p173
        %p614 = pneg %p170
        %p615 = pneg %p194
        %p616 = pneg %p191
        %p617 = pneg %p215
        %p618 = pneg %p212
        %p619 = pneg %p236
        %p620 = pneg %p233
        %p621 = pneg %p257
        %p622 = pneg %p254
        %p623 = pneg %p278
        %p624 = pneg %p275
        %p625 = pneg %p299
        %p626 = pneg %p296
        %p627 = pneg %p320
        %p628 = pneg %p317
        %p629 = pneg %p341
        %p630 = pneg %p338
        %p631 = pneg %p362
        %p632 = pneg %p359
        %p633 = pneg %p383
        %p634 = pneg %p380
        %p635 = pneg %p404
        %p636 = pneg %p401
        %p637 = pneg %p432
        %p638 = pneg %p429
        %s639 = sand.u32 %s419, 1
        %s640 = scalar_lea.sflag [#allocation7], %s639
        %s641 = sand.u32 %s419, 1
        %s642 = smul.addr %s641, 8
        %s643 = scalar_lea.vmem [#allocation17], %s642
        %p644 = scmp.lt.s32.totalorder %s39, 1
        %s645 = scalar_select %p644, %s39, 1
        %s646 = smul.addr %s645, 2
        %s647 = smul.addr %s646, 8
        %s648 = scalar_lea.vmem %s0, %s647
        %s650 = smul.u32 %s40, 8
        %p651 = scmp.eq.s32.totalorder %s40, 0
        // Predicated region
        $region117: #{tpu_custom_call.1} parent=87 // pred_check
          %p652 = pneg %p651
        $region118: #{tpu_custom_call.1} parent=87 // pred_check_branch
          %654 = sbr.rel (%p652) target = $region120
        $region119: #{tpu_custom_call.1} parent=87 // pred_region
          %v655 = vld [vmem:[%s648] sm:$0xff]
          %v656 = vld [vmem:[%s648 + $0x8] sm:$0xff]
          %v657 = vld [vmem:[%s1] sm:$0x1]
          %v658 = vld [vmem:[#allocation5] sm:$0x1]
          %vm659 = vcmask 261120
          %v660 = vsel %vm659, %v655, 0.0
          %661 = vadd.xlane.f32.xlu0 %v660
          %v662 = vpop.xlane.xlu0 %661
          %v663 = vsel %vm659, %v656, 0.0
          %664 = vadd.xlane.f32.xlu0 %v663
          %v665 = vpop.xlane.xlu0 %664
          %v666 = vrcp.pop 32.0
          %v667 = vmul.f32 %v662, %v666
          %v668 = vmul.f32 %v665, %v666
          %v669 = vsub.f32 %v655, %v667
          %v670 = vsub.f32 %v656, %v668
          %v671 = vmul.f32 %v669, %v669
          %v672 = vmul.f32 %v670, %v670
          %v673 = vsel %vm659, %v671, 0.0
          %674 = vadd.xlane.f32.xlu0 %v673
          %v675 = vpop.xlane.xlu0 %674
          %v676 = vsel %vm659, %v672, 0.0
          %677 = vadd.xlane.f32.xlu0 %v676
          %v678 = vpop.xlane.xlu0 %677
          %v679 = vmul.f32 %v675, %v666
          %v680 = vmul.f32 %v678, %v666
          %v681 = vadd.f32 %v679, 1e-05
          %v682 = vadd.f32 %v680, 1e-05
          %v683 = vrsqrt.pop %v681
          %v684 = vrsqrt.pop %v682
          %v685 = vmul.f32 %v669, %v683
          %v686 = vmul.f32 %v670, %v684
          %v688 = vlaneseq
          %v689 = vshrl.u32 %v688, 7
          %v690 = vsub.s32 0, %v689
          %v691 = vrot.slane %v657, %v690
          %v693 = vmul.f32 %v685, %v691
          %v694 = vmul.f32 %v686, %v691
          %v696 = vlaneseq
          %v697 = vshrl.u32 %v696, 7
          %v698 = vsub.s32 0, %v697
          %v699 = vrot.slane %v658, %v698
          %v701 = vadd.f32 %v693, %v699
          %v702 = vadd.f32 %v694, %v699
          %v703 = vpack.c.bf16 %v702, %v701
          %v704 = vld [vmem:[%s5] sm:$0xf]
          %v705 = vld [vmem:[%s5 + $0x4] sm:$0xf]
          %v706 = vld [vmem:[%s5 + $0x8] sm:$0xf]
          %v707 = vld [vmem:[%s5 + $0xc] sm:$0xf]
          %v708 = vld [vmem:[#allocation10] sm:$0x1]
          %v710 = vlaneseq
          %v711 = vshrl.u32 %v710, 7
          %v712 = vsub.s32 0, %v711
          %v713 = vrot.slane %v708, %v712
          %v719 = vunpack.c.l.b16 %v704
          %v720 = vunpack.c.l.b16 %v705
          %v721 = vunpack.c.l.b16 %v706
          %v722 = vunpack.c.l.b16 %v707
          %v723 = vpack.c.b16 %v720, %v719
          %v724 = vpack.c.b16 %v722, %v721
          %v728 = vsel %vm659, %v703, 0
          %730 = vmatprep.subr.bf16.mxu0 0
          %731 = vmatpush1.bf16.msra.mxu0 %v723
          %732 = vmatprep.subr.bf16.mxu0 0
          %733 = vmatpush1.bf16.msra.mxu0 %v724
          %734 = vmatprep.subr.bf16.mxu0 0
          %735 = vmatpush1.bf16.msra.mxu0 0
          %736 = vmatprep.subr.bf16.mxu0 0
          %737 = vmatpush1.bf16.msra.mxu0 0
          %738 = vmatprep.subr.bf16.mxu0 0
          %739 = vmatpush1.bf16.msra.mxu0 0
          %740 = vmatprep.subr.bf16.mxu0 0
          %741 = vmatpush1.bf16.msra.mxu0 0
          %742 = vmatprep.subr.bf16.mxu0 0
          %743 = vmatpush1.bf16.msra.mxu0 0
          %744 = vmatprep.subr.bf16.mxu0 0
          %745 = vmatpush1.bf16.msra.mxu0 0
          %746 = vmatprep.subr.bf16.mxu0 0
          %747 = vmatpush1.bf16.msra.mxu0 0
          %748 = vmatprep.subr.bf16.mxu0 0
          %749 = vmatpush1.bf16.msra.mxu0 0
          %750 = vmatprep.subr.bf16.mxu0 0
          %751 = vmatpush1.bf16.msra.mxu0 0
          %752 = vmatprep.subr.bf16.mxu0 0
          %753 = vmatpush1.bf16.msra.mxu0 0
          %754 = vmatprep.subr.bf16.mxu0 0
          %755 = vmatpush1.bf16.msra.mxu0 0
          %756 = vmatprep.subr.bf16.mxu0 0
          %757 = vmatpush1.bf16.msra.mxu0 0
          %758 = vmatprep.subr.bf16.mxu0 0
          %759 = vmatpush1.bf16.msra.mxu0 0
          %760 = vmatprep.subr.bf16.mxu0 0
          %761 = vmatpush1.bf16.msra.mxu0 0
          %762 = vmatprep.mubr.bf16.mxu0 0
          %763 = vmatmul.mubr.bf16.gmra.mrb[0].mxu0 %v728
          %v764 = vpop.f32.mrb[0].mxu0
          %v765 = vadd.f32 %v713, %v764
          %v766 = vpop.f32.mrb[0].mxu0
          %v767 = vpop.f32.mrb[0].mxu0
          %v768 = vadd.f32 %v713, %v767
          %v769 = vpop.f32.mrb[0].mxu0
          %770 = vdwg.mxu0
          %v771 = vpack.c.bf16 %v768, %v765
          %772 = vst.msk [vmem:[#allocation2] sm:$0xff] %vm659, %v771
          %v773 = vld [vmem:[%s7] sm:$0xf]
          %v774 = vld [vmem:[%s7 + $0x4] sm:$0xf]
          %v775 = vld [vmem:[%s7 + $0x8] sm:$0xf]
          %v776 = vld [vmem:[%s7 + $0xc] sm:$0xf]
          %v777 = vld [vmem:[#allocation11] sm:$0x1]
          %v779 = vlaneseq
          %v780 = vshrl.u32 %v779, 7
          %v781 = vsub.s32 0, %v780
          %v782 = vrot.slane %v777, %v781
          %v788 = vunpack.c.l.b16 %v773
          %v789 = vunpack.c.l.b16 %v774
          %v790 = vunpack.c.l.b16 %v775
          %v791 = vunpack.c.l.b16 %v776
          %v792 = vpack.c.b16 %v789, %v788
          %v793 = vpack.c.b16 %v791, %v790
          %796 = vmatprep.subr.bf16.mxu0 0
          %797 = vmatpush1.bf16.msra.mxu0 %v792
          %798 = vmatprep.subr.bf16.mxu0 0
          %799 = vmatpush1.bf16.msra.mxu0 %v793
          %800 = vmatprep.subr.bf16.mxu0 0
          %801 = vmatpush1.bf16.msra.mxu0 0
          %802 = vmatprep.subr.bf16.mxu0 0
          %803 = vmatpush1.bf16.msra.mxu0 0
          %804 = vmatprep.subr.bf16.mxu0 0
          %805 = vmatpush1.bf16.msra.mxu0 0
          %806 = vmatprep.subr.bf16.mxu0 0
          %807 = vmatpush1.bf16.msra.mxu0 0
          %808 = vmatprep.subr.bf16.mxu0 0
          %809 = vmatpush1.bf16.msra.mxu0 0
          %810 = vmatprep.subr.bf16.mxu0 0
          %811 = vmatpush1.bf16.msra.mxu0 0
          %812 = vmatprep.subr.bf16.mxu0 0
          %813 = vmatpush1.bf16.msra.mxu0 0
          %814 = vmatprep.subr.bf16.mxu0 0
          %815 = vmatpush1.bf16.msra.mxu0 0
          %816 = vmatprep.subr.bf16.mxu0 0
          %817 = vmatpush1.bf16.msra.mxu0 0
          %818 = vmatprep.subr.bf16.mxu0 0
          %819 = vmatpush1.bf16.msra.mxu0 0
          %820 = vmatprep.subr.bf16.mxu0 0
          %821 = vmatpush1.bf16.msra.mxu0 0
          %822 = vmatprep.subr.bf16.mxu0 0
          %823 = vmatpush1.bf16.msra.mxu0 0
          %824 = vmatprep.subr.bf16.mxu0 0
          %825 = vmatpush1.bf16.msra.mxu0 0
          %826 = vmatprep.subr.bf16.mxu0 0
          %827 = vmatpush1.bf16.msra.mxu0 0
          %828 = vmatprep.mubr.bf16.mxu0 0
          %829 = vmatmul.mubr.bf16.gmra.mrb[0].mxu0 %v728
          %v830 = vpop.f32.mrb[0].mxu0
          %v831 = vadd.f32 %v782, %v830
          %v832 = vpop.f32.mrb[0].mxu0
          %v833 = vpop.f32.mrb[0].mxu0
          %v834 = vadd.f32 %v782, %v833
          %v835 = vpop.f32.mrb[0].mxu0
          %836 = vdwg.mxu0
          %v837 = vpack.c.bf16 %v834, %v831
          %838 = vst.msk [vmem:[#allocation3] sm:$0xff] %vm659, %v837
        $region120: #{tpu_custom_call.1} parent=87 // pred_fallthru
          _
        %s839 = scalar_lea.vmem %s648, %s650
        %v840 = vld [vmem:[%s839] sm:$0xff]
        %v841 = vld [vmem:[%s1] sm:$0x1]
        %v842 = vld [vmem:[#allocation5] sm:$0x1]
        %vm843 = vcmask 261120
        %v844 = vsel %vm843, %v840, 0.0
        %845 = vadd.xlane.f32.xlu0 %v844
        %v846 = vpop.xlane.xlu0 %845
        %v847 = vrcp.pop 32.0
        %v848 = vmul.f32 %v846, %v847
        %v849 = vsub.f32 %v840, %v848
        %v850 = vmul.f32 %v849, %v849
        %v851 = vsel %vm843, %v850, 0.0
        %852 = vadd.xlane.f32.xlu0 %v851
        %v853 = vpop.xlane.xlu0 %852
        %v854 = vmul.f32 %v853, %v847
        %v855 = vadd.f32 %v854, 1e-05
        %v856 = vrsqrt.pop %v855
        %v857 = vmul.f32 %v849, %v856
        %v859 = vlaneseq
        %v860 = vshrl.u32 %v859, 7
        %v861 = vsub.s32 0, %v860
        %v862 = vrot.slane %v841, %v861
        %v864 = vmul.f32 %v857, %v862
        %v866 = vlaneseq
        %v867 = vshrl.u32 %v866, 7
        %v868 = vsub.s32 0, %v867
        %v869 = vrot.slane %v842, %v868
        %v871 = vadd.f32 %v864, %v869
        %v872 = vpack.c.bf16 %v871, %v871
        %v873 = vld [vmem:[%s3] sm:$0xf]
        %v874 = vld [vmem:[%s3 + $0x4] sm:$0xf]
        %v875 = vld [vmem:[%s3 + $0x8] sm:$0xf]
        %v876 = vld [vmem:[%s3 + $0xc] sm:$0xf]
        %v877 = vld [vmem:[#allocation8] sm:$0x1]
        %v879 = vlaneseq
        %v880 = vshrl.u32 %v879, 7
        %v881 = vsub.s32 0, %v880
        %v882 = vrot.slane %v877, %v881
        %v888 = vunpack.c.l.b16 %v873
        %v889 = vunpack.c.l.b16 %v874
        %v890 = vunpack.c.l.b16 %v875
        %v891 = vunpack.c.l.b16 %v876
        %v892 = vpack.c.b16 %v889, %v888
        %v893 = vpack.c.b16 %v891, %v890
        %v897 = vsel %vm843, %v872, 0
        %899 = vmatprep.subr.bf16.mxu0 0
        %900 = vmatpush1.bf16.msra.mxu0 %v892
        %901 = vmatprep.subr.bf16.mxu0 0
        %902 = vmatpush1.bf16.msra.mxu0 %v893
        %903 = vmatprep.subr.bf16.mxu0 0
        %904 = vmatpush1.bf16.msra.mxu0 0
        %905 = vmatprep.subr.bf16.mxu0 0
        %906 = vmatpush1.bf16.msra.mxu0 0
        %907 = vmatprep.subr.bf16.mxu0 0
        %908 = vmatpush1.bf16.msra.mxu0 0
        %909 = vmatprep.subr.bf16.mxu0 0
        %910 = vmatpush1.bf16.msra.mxu0 0
        %911 = vmatprep.subr.bf16.mxu0 0
        %912 = vmatpush1.bf16.msra.mxu0 0
        %913 = vmatprep.subr.bf16.mxu0 0
        %914 = vmatpush1.bf16.msra.mxu0 0
        %915 = vmatprep.subr.bf16.mxu0 0
        %916 = vmatpush1.bf16.msra.mxu0 0
        %917 = vmatprep.subr.bf16.mxu0 0
        %918 = vmatpush1.bf16.msra.mxu0 0
        %919 = vmatprep.subr.bf16.mxu0 0
        %920 = vmatpush1.bf16.msra.mxu0 0
        %921 = vmatprep.subr.bf16.mxu0 0
        %922 = vmatpush1.bf16.msra.mxu0 0
        %923 = vmatprep.subr.bf16.mxu0 0
        %924 = vmatpush1.bf16.msra.mxu0 0
        %925 = vmatprep.subr.bf16.mxu0 0
        %926 = vmatpush1.bf16.msra.mxu0 0
        %927 = vmatprep.subr.bf16.mxu0 0
        %928 = vmatpush1.bf16.msra.mxu0 0
        %929 = vmatprep.subr.bf16.mxu0 0
        %930 = vmatpush1.bf16.msra.mxu0 0
        %931 = vmatprep.mubr.bf16.mxu0 0
        %932 = vmatmul.mubr.bf16.gmra.mrb[0].mxu0 %v897
        %v933 = vpop.f32.mrb[0].mxu0
        %v934 = vadd.f32 %v882, %v933
        %v935 = vpop.f32.mrb[0].mxu0
        %v936 = vpop.f32.mrb[0].mxu0
        %v937 = vpop.f32.mrb[0].mxu0
        %938 = vdwg.mxu0
        %v939 = vpack.c.bf16 %v934, %v934
        %v940 = vld [vmem:[#allocation2] sm:$0xff]
        %v941 = vld [vmem:[#allocation3] sm:$0xff]
        %vm942 = vcmask 64512
        %v944 = vsel %vm942, %v939, 0
        %v947 = vsel %vm942, %v940, 0
        %949 = vmatprep.subr.bf16.mxu0 0
        %950 = vmatpush1.bf16.xpose.msra.mxu0 %v947
        %951 = vmatprep.subr.bf16.mxu0 0
        %952 = vmatpush1.bf16.xpose.msra.mxu0 0
        %953 = vmatprep.subr.bf16.mxu0 0
        %954 = vmatpush1.bf16.xpose.msra.mxu0 0
        %955 = vmatprep.subr.bf16.mxu0 0
        %956 = vmatpush1.bf16.xpose.msra.mxu0 0
        %957 = vmatprep.subr.bf16.mxu0 0
        %958 = vmatpush1.bf16.xpose.msra.mxu0 0
        %959 = vmatprep.subr.bf16.mxu0 0
        %960 = vmatpush1.bf16.xpose.msra.mxu0 0
        %961 = vmatprep.subr.bf16.mxu0 0
        %962 = vmatpush1.bf16.xpose.msra.mxu0 0
        %963 = vmatprep.subr.bf16.mxu0 0
        %964 = vmatpush1.bf16.xpose.msra.mxu0 0
        %965 = vmatprep.subr.bf16.mxu0 0
        %966 = vmatpush1.bf16.xpose.msra.mxu0 0
        %967 = vmatprep.subr.bf16.mxu0 0
        %968 = vmatpush1.bf16.xpose.msra.mxu0 0
        %969 = vmatprep.subr.bf16.mxu0 0
        %970 = vmatpush1.bf16.xpose.msra.mxu0 0
        %971 = vmatprep.subr.bf16.mxu0 0
        %972 = vmatpush1.bf16.xpose.msra.mxu0 0
        %973 = vmatprep.subr.bf16.mxu0 0
        %974 = vmatpush1.bf16.xpose.msra.mxu0 0
        %975 = vmatprep.subr.bf16.mxu0 0
        %976 = vmatpush1.bf16.xpose.msra.mxu0 0
        %977 = vmatprep.subr.bf16.mxu0 0
        %978 = vmatpush1.bf16.xpose.msra.mxu0 0
        %979 = vmatprep.subr.bf16.mxu0 0
        %980 = vmatpush1.bf16.xpose.msra.mxu0 0
        %981 = vmatprep.mubr.bf16.mxu0 0
        %982 = vmatmul.mubr.bf16.gmra.mrb[0].mxu0 %v944
        %v983 = vpop.f32.mrb[0].mxu0
        %v984 = vadd.f32 0.0, %v983
        %v985 = vpop.f32.mrb[0].mxu0
        %v986 = vpop.f32.mrb[0].mxu0
        %v987 = vpop.f32.mrb[0].mxu0
        %988 = vdwg.mxu0
        %vm989 = vcmask 130048
        %v990 = vsel %vm989, %v984, -inf
        %991 = vmax.xlane.f32.xlu0 %v990
        %v992 = vpop.xlane.xlu0 %991
        %v993 = vsub.f32 %v984, %v992
        %v994 = vmul.f32 %v993, 1.442695
        %v995 = vpow.pop %v994
        %v996 = vsel %vm989, %v995, 0.0
        %997 = vadd.xlane.f32.xlu0 %v996
        %v998 = vpop.xlane.xlu0 %997
        %v999 = vrcp.pop %v998
        %v1000 = vmul.f32 %v995, %v999
        %v1001 = vpack.c.bf16 %v1000, %v1000
        %v1003 = vsel %vm989, %v1001, 0
        %1005 = vmatprep.subr.bf16.mxu0 0
        %1006 = vmatpush1.bf16.msra.mxu0 %v941
        %1007 = vmatprep.subr.bf16.mxu0 0
        %1008 = vmatpush1.bf16.msra.mxu0 0
        %1009 = vmatprep.subr.bf16.mxu0 0
        %1010 = vmatpush1.bf16.msra.mxu0 0
        %1011 = vmatprep.subr.bf16.mxu0 0
        %1012 = vmatpush1.bf16.msra.mxu0 0
        %1013 = vmatprep.subr.bf16.mxu0 0
        %1014 = vmatpush1.bf16.msra.mxu0 0
        %1015 = vmatprep.subr.bf16.mxu0 0
        %1016 = vmatpush1.bf16.msra.mxu0 0
        %1017 = vmatprep.subr.bf16.mxu0 0
        %1018 = vmatpush1.bf16.msra.mxu0 0
        %1019 = vmatprep.subr.bf16.mxu0 0
        %1020 = vmatpush1.bf16.msra.mxu0 0
        %1021 = vmatprep.subr.bf16.mxu0 0
        %1022 = vmatpush1.bf16.msra.mxu0 0
        %1023 = vmatprep.subr.bf16.mxu0 0
        %1024 = vmatpush1.bf16.msra.mxu0 0
        %1025 = vmatprep.subr.bf16.mxu0 0
        %1026 = vmatpush1.bf16.msra.mxu0 0
        %1027 = vmatprep.subr.bf16.mxu0 0
        %1028 = vmatpush1.bf16.msra.mxu0 0
        %1029 = vmatprep.subr.bf16.mxu0 0
        %1030 = vmatpush1.bf16.msra.mxu0 0
        %1031 = vmatprep.subr.bf16.mxu0 0
        %1032 = vmatpush1.bf16.msra.mxu0 0
        %1033 = vmatprep.subr.bf16.mxu0 0
        %1034 = vmatpush1.bf16.msra.mxu0 0
        %1035 = vmatprep.subr.bf16.mxu0 0
        %1036 = vmatpush1.bf16.msra.mxu0 0
        %1037 = vmatprep.mubr.bf16.mxu0 0
        %1038 = vmatmul.mubr.bf16.gmra.mrb[0].mxu0 %v1003
        %v1039 = vpop.f32.mrb[0].mxu0
        %v1040 = vadd.f32 0.0, %v1039
        %v1041 = vpop.f32.mrb[0].mxu0
        %v1042 = vpop.f32.mrb[0].mxu0
        %v1043 = vpop.f32.mrb[0].mxu0
        %1044 = vdwg.mxu0
        %1045 = vst.msk [vmem:[#allocation4] sm:$0xff] %vm942, %v1040
        %1047 = vrot.lane.b32.xlu0 %v939, 120
        %v1048 = vpop.permute.xlu0 %1047
        %1050 = vrot.lane.b32.xlu0 %v940, 120
        %v1051 = vpop.permute.xlu0 %1050
        %v1053 = vsel %vm942, %v1048, 0
        %v1056 = vsel %vm942, %v1051, 0
        %1058 = vmatprep.subr.bf16.mxu0 0
        %1059 = vmatpush1.bf16.xpose.msra.mxu0 %v1056
        %1060 = vmatprep.subr.bf16.mxu0 0
        %1061 = vmatpush1.bf16.xpose.msra.mxu0 0
        %1062 = vmatprep.subr.bf16.mxu0 0
        %1063 = vmatpush1.bf16.xpose.msra.mxu0 0
        %1064 = vmatprep.subr.bf16.mxu0 0
        %1065 = vmatpush1.bf16.xpose.msra.mxu0 0
        %1066 = vmatprep.subr.bf16.mxu0 0
        %1067 = vmatpush1.bf16.xpose.msra.mxu0 0
        %1068 = vmatprep.subr.bf16.mxu0 0
        %1069 = vmatpush1.bf16.xpose.msra.mxu0 0
        %1070 = vmatprep.subr.bf16.mxu0 0
        %1071 = vmatpush1.bf16.xpose.msra.mxu0 0
        %1072 = vmatprep.subr.bf16.mxu0 0
        %1073 = vmatpush1.bf16.xpose.msra.mxu0 0
        %1074 = vmatprep.subr.bf16.mxu0 0
        %1075 = vmatpush1.bf16.xpose.msra.mxu0 0
        %1076 = vmatprep.subr.bf16.mxu0 0
        %1077 = vmatpush1.bf16.xpose.msra.mxu0 0
        %1078 = vmatprep.subr.bf16.mxu0 0
        %1079 = vmatpush1.bf16.xpose.msra.mxu0 0
        %1080 = vmatprep.subr.bf16.mxu0 0
        %1081 = vmatpush1.bf16.xpose.msra.mxu0 0
        %1082 = vmatprep.subr.bf16.mxu0 0
        %1083 = vmatpush1.bf16.xpose.msra.mxu0 0
        %1084 = vmatprep.subr.bf16.mxu0 0
        %1085 = vmatpush1.bf16.xpose.msra.mxu0 0
        %1086 = vmatprep.subr.bf16.mxu0 0
        %1087 = vmatpush1.bf16.xpose.msra.mxu0 0
        %1088 = vmatprep.subr.bf16.mxu0 0
        %1089 = vmatpush1.bf16.xpose.msra.mxu0 0
        %1090 = vmatprep.mubr.bf16.mxu0 0
        %1091 = vmatmul.mubr.bf16.gmra.mrb[0].mxu0 %v1053
        %v1092 = vpop.f32.mrb[0].mxu0
        %v1093 = vadd.f32 0.0, %v1092
        %v1094 = vpop.f32.mrb[0].mxu0
        %v1095 = vpop.f32.mrb[0].mxu0
        %v1096 = vpop.f32.mrb[0].mxu0
        %1097 = vdwg.mxu0
        %v1098 = vsel %vm989, %v1093, -inf
        %1099 = vmax.xlane.f32.xlu0 %v1098
        %v1100 = vpop.xlane.xlu0 %1099
        %v1101 = vsub.f32 %v1093, %v1100
        %v1102 = vmul.f32 %v1101, 1.442695
        %v1103 = vpow.pop %v1102
        %v1104 = vsel %vm989, %v1103, 0.0
        %1105 = vadd.xlane.f32.xlu0 %v1104
        %v1106 = vpop.xlane.xlu0 %1105
        %v1107 = vrcp.pop %v1106
        %v1108 = vmul.f32 %v1103, %v1107
        %v1109 = vpack.c.bf16 %v1108, %v1108
        %1111 = vrot.lane.b32.xlu0 %v941, 120
        %v1112 = vpop.permute.xlu0 %1111
        %v1115 = vsel %vm989, %v1109, 0
        %1117 = vmatprep.subr.bf16.mxu0 0
        %1118 = vmatpush1.bf16.msra.mxu0 %v1112
        %1119 = vmatprep.subr.bf16.mxu0 0
        %1120 = vmatpush1.bf16.msra.mxu0 0
        %1121 = vmatprep.subr.bf16.mxu0 0
        %1122 = vmatpush1.bf16.msra.mxu0 0
        %1123 = vmatprep.subr.bf16.mxu0 0
        %1124 = vmatpush1.bf16.msra.mxu0 0
        %1125 = vmatprep.subr.bf16.mxu0 0
        %1126 = vmatpush1.bf16.msra.mxu0 0
        %1127 = vmatprep.subr.bf16.mxu0 0
        %1128 = vmatpush1.bf16.msra.mxu0 0
        %1129 = vmatprep.subr.bf16.mxu0 0
        %1130 = vmatpush1.bf16.msra.mxu0 0
        %1131 = vmatprep.subr.bf16.mxu0 0
        %1132 = vmatpush1.bf16.msra.mxu0 0
        %1133 = vmatprep.subr.bf16.mxu0 0
        %1134 = vmatpush1.bf16.msra.mxu0 0
        %1135 = vmatprep.subr.bf16.mxu0 0
        %1136 = vmatpush1.bf16.msra.mxu0 0
        %1137 = vmatprep.subr.bf16.mxu0 0
        %1138 = vmatpush1.bf16.msra.mxu0 0
        %1139 = vmatprep.subr.bf16.mxu0 0
        %1140 = vmatpush1.bf16.msra.mxu0 0
        %1141 = vmatprep.subr.bf16.mxu0 0
        %1142 = vmatpush1.bf16.msra.mxu0 0
        %1143 = vmatprep.subr.bf16.mxu0 0
        %1144 = vmatpush1.bf16.msra.mxu0 0
        %1145 = vmatprep.subr.bf16.mxu0 0
        %1146 = vmatpush1.bf16.msra.mxu0 0
        %1147 = vmatprep.subr.bf16.mxu0 0
        %1148 = vmatpush1.bf16.msra.mxu0 0
        %1149 = vmatprep.mubr.bf16.mxu0 0
        %1150 = vmatmul.mubr.bf16.gmra.mrb[0].mxu0 %v1115
        %v1151 = vpop.f32.mrb[0].mxu0
        %v1152 = vadd.f32 0.0, %v1151
        %v1153 = vpop.f32.mrb[0].mxu0
        %v1154 = vpop.f32.mrb[0].mxu0
        %v1155 = vpop.f32.mrb[0].mxu0
        %1156 = vdwg.mxu0
        %1158 = vrot.lane.b32.xlu0 %v1152, 8
        %v1159 = vpop.permute.xlu0 %1158
        %vm1161 = vcmask 130112
        %1162 = vst.msk [vmem:[#allocation4] sm:$0xff] %vm1161, %v1159
        %1163 = vrot.lane.b32.xlu0 %v939, 112
        %v1164 = vpop.permute.xlu0 %1163
        %1165 = vrot.lane.b32.xlu0 %v940, 112
        %v1166 = vpop.permute.xlu0 %1165
        %v1168 = vsel %vm942, %v1164, 0
        %v1171 = vsel %vm942, %v1166, 0
        %1173 = vmatprep.subr.bf16.mxu0 0
        %1174 = vmatpush1.bf16.xpose.msra.mxu0 %v1171
        %1175 = vmatprep.subr.bf16.mxu0 0
        %1176 = vmatpush1.bf16.xpose.msra.mxu0 0
        %1177 = vmatprep.subr.bf16.mxu0 0
        %1178 = vmatpush1.bf16.xpose.msra.mxu0 0
        %1179 = vmatprep.subr.bf16.mxu0 0
        %1180 = vmatpush1.bf16.xpose.msra.mxu0 0
        %1181 = vmatprep.subr.bf16.mxu0 0
        %1182 = vmatpush1.bf16.xpose.msra.mxu0 0
        %1183 = vmatprep.subr.bf16.mxu0 0
        %1184 = vmatpush1.bf16.xpose.msra.mxu0 0
        %1185 = vmatprep.subr.bf16.mxu0 0
        %1186 = vmatpush1.bf16.xpose.msra.mxu0 0
        %1187 = vmatprep.subr.bf16.mxu0 0
        %1188 = vmatpush1.bf16.xpose.msra.mxu0 0
        %1189 = vmatprep.subr.bf16.mxu0 0
        %1190 = vmatpush1.bf16.xpose.msra.mxu0 0
        %1191 = vmatprep.subr.bf16.mxu0 0
        %1192 = vmatpush1.bf16.xpose.msra.mxu0 0
        %1193 = vmatprep.subr.bf16.mxu0 0
        %1194 = vmatpush1.bf16.xpose.msra.mxu0 0
        %1195 = vmatprep.subr.bf16.mxu0 0
        %1196 = vmatpush1.bf16.xpose.msra.mxu0 0
        %1197 = vmatprep.subr.bf16.mxu0 0
        %1198 = vmatpush1.bf16.xpose.msra.mxu0 0
        %1199 = vmatprep.subr.bf16.mxu0 0
        %1200 = vmatpush1.bf16.xpose.msra.mxu0 0
        %1201 = vmatprep.subr.bf16.mxu0 0
        %1202 = vmatpush1.bf16.xpose.msra.mxu0 0
        %1203 = vmatprep.subr.bf16.mxu0 0
        %1204 = vmatpush1.bf16.xpose.msra.mxu0 0
        %1205 = vmatprep.mubr.bf16.mxu0 0
        %1206 = vmatmul.mubr.bf16.gmra.mrb[0].mxu0 %v1168
        %v1207 = vpop.f32.mrb[0].mxu0
        %v1208 = vadd.f32 0.0, %v1207
        %v1209 = vpop.f32.mrb[0].mxu0
        %v1210 = vpop.f32.mrb[0].mxu0
        %v1211 = vpop.f32.mrb[0].mxu0
        %1212 = vdwg.mxu0
        %v1213 = vsel %vm989, %v1208, -inf
        %1214 = vmax.xlane.f32.xlu0 %v1213
        %v1215 = vpop.xlane.xlu0 %1214
        %v1216 = vsub.f32 %v1208, %v1215
        %v1217 = vmul.f32 %v1216, 1.442695
        %v1218 = vpow.pop %v1217
        %v1219 = vsel %vm989, %v1218, 0.0
        %1220 = vadd.xlane.f32.xlu0 %v1219
        %v1221 = vpop.xlane.xlu0 %1220
        %v1222 = vrcp.pop %v1221
        %v1223 = vmul.f32 %v1218, %v1222
        %v1224 = vpack.c.bf16 %v1223, %v1223
        %1225 = vrot.lane.b32.xlu0 %v941, 112
        %v1226 = vpop.permute.xlu0 %1225
        %v1229 = vsel %vm989, %v1224, 0
        %1231 = vmatprep.subr.bf16.mxu0 0
        %1232 = vmatpush1.bf16.msra.mxu0 %v1226
        %1233 = vmatprep.subr.bf16.mxu0 0
        %1234 = vmatpush1.bf16.msra.mxu0 0
        %1235 = vmatprep.subr.bf16.mxu0 0
        %1236 = vmatpush1.bf16.msra.mxu0 0
        %1237 = vmatprep.subr.bf16.mxu0 0
        %1238 = vmatpush1.bf16.msra.mxu0 0
        %1239 = vmatprep.subr.bf16.mxu0 0
        %1240 = vmatpush1.bf16.msra.mxu0 0
        %1241 = vmatprep.subr.bf16.mxu0 0
        %1242 = vmatpush1.bf16.msra.mxu0 0
        %1243 = vmatprep.subr.bf16.mxu0 0
        %1244 = vmatpush1.bf16.msra.mxu0 0
        %1245 = vmatprep.subr.bf16.mxu0 0
        %1246 = vmatpush1.bf16.msra.mxu0 0
        %1247 = vmatprep.subr.bf16.mxu0 0
        %1248 = vmatpush1.bf16.msra.mxu0 0
        %1249 = vmatprep.subr.bf16.mxu0 0
        %1250 = vmatpush1.bf16.msra.mxu0 0
        %1251 = vmatprep.subr.bf16.mxu0 0
        %1252 = vmatpush1.bf16.msra.mxu0 0
        %1253 = vmatprep.subr.bf16.mxu0 0
        %1254 = vmatpush1.bf16.msra.mxu0 0
        %1255 = vmatprep.subr.bf16.mxu0 0
        %1256 = vmatpush1.bf16.msra.mxu0 0
        %1257 = vmatprep.subr.bf16.mxu0 0
        %1258 = vmatpush1.bf16.msra.mxu0 0
        %1259 = vmatprep.subr.bf16.mxu0 0
        %1260 = vmatpush1.bf16.msra.mxu0 0
        %1261 = vmatprep.subr.bf16.mxu0 0
        %1262 = vmatpush1.bf16.msra.mxu0 0
        %1263 = vmatprep.mubr.bf16.mxu0 0
        %1264 = vmatmul.mubr.bf16.gmra.mrb[0].mxu0 %v1229
        %v1265 = vpop.f32.mrb[0].mxu0
        %v1266 = vadd.f32 0.0, %v1265
        %v1267 = vpop.f32.mrb[0].mxu0
        %v1268 = vpop.f32.mrb[0].mxu0
        %v1269 = vpop.f32.mrb[0].mxu0
        %1270 = vdwg.mxu0
        %1272 = vrot.lane.b32.xlu0 %v1266, 16
        %v1273 = vpop.permute.xlu0 %1272
        %vm1275 = vcmask 195712
        %1276 = vst.msk [vmem:[#allocation4] sm:$0xff] %vm1275, %v1273
        %1277 = vrot.lane.b32.xlu0 %v939, 104
        %v1278 = vpop.permute.xlu0 %1277
        %1279 = vrot.lane.b32.xlu0 %v940, 104
        %v1280 = vpop.permute.xlu0 %1279
        %v1282 = vsel %vm942, %v1278, 0
        %v1285 = vsel %vm942, %v1280, 0
        %1287 = vmatprep.subr.bf16.mxu0 0
        %1288 = vmatpush1.bf16.xpose.msra.mxu0 %v1285
        %1289 = vmatprep.subr.bf16.mxu0 0
        %1290 = vmatpush1.bf16.xpose.msra.mxu0 0
        %1291 = vmatprep.subr.bf16.mxu0 0
        %1292 = vmatpush1.bf16.xpose.msra.mxu0 0
        %1293 = vmatprep.subr.bf16.mxu0 0
        %1294 = vmatpush1.bf16.xpose.msra.mxu0 0
        %1295 = vmatprep.subr.bf16.mxu0 0
        %1296 = vmatpush1.bf16.xpose.msra.mxu0 0
        %1297 = vmatprep.subr.bf16.mxu0 0
        %1298 = vmatpush1.bf16.xpose.msra.mxu0 0
        %1299 = vmatprep.subr.bf16.mxu0 0
        %1300 = vmatpush1.bf16.xpose.msra.mxu0 0
        %1301 = vmatprep.subr.bf16.mxu0 0
        %1302 = vmatpush1.bf16.xpose.msra.mxu0 0
        %1303 = vmatprep.subr.bf16.mxu0 0
        %1304 = vmatpush1.bf16.xpose.msra.mxu0 0
        %1305 = vmatprep.subr.bf16.mxu0 0
        %1306 = vmatpush1.bf16.xpose.msra.mxu0 0
        %1307 = vmatprep.subr.bf16.mxu0 0
        %1308 = vmatpush1.bf16.xpose.msra.mxu0 0
        %1309 = vmatprep.subr.bf16.mxu0 0
        %1310 = vmatpush1.bf16.xpose.msra.mxu0 0
        %1311 = vmatprep.subr.bf16.mxu0 0
        %1312 = vmatpush1.bf16.xpose.msra.mxu0 0
        %1313 = vmatprep.subr.bf16.mxu0 0
        %1314 = vmatpush1.bf16.xpose.msra.mxu0 0
        %1315 = vmatprep.subr.bf16.mxu0 0
        %1316 = vmatpush1.bf16.xpose.msra.mxu0 0
        %1317 = vmatprep.subr.bf16.mxu0 0
        %1318 = vmatpush1.bf16.xpose.msra.mxu0 0
        %1319 = vmatprep.mubr.bf16.mxu0 0
        %1320 = vmatmul.mubr.bf16.gmra.mrb[0].mxu0 %v1282
        %v1321 = vpop.f32.mrb[0].mxu0
        %v1322 = vadd.f32 0.0, %v1321
        %v1323 = vpop.f32.mrb[0].mxu0
        %v1324 = vpop.f32.mrb[0].mxu0
        %v1325 = vpop.f32.mrb[0].mxu0
        %1326 = vdwg.mxu0
        %v1327 = vsel %vm989, %v1322, -inf
        %1328 = vmax.xlane.f32.xlu0 %v1327
        %v1329 = vpop.xlane.xlu0 %1328
        %v1330 = vsub.f32 %v1322, %v1329
        %v1331 = vmul.f32 %v1330, 1.442695
        %v1332 = vpow.pop %v1331
        %v1333 = vsel %vm989, %v1332, 0.0
        %1334 = vadd.xlane.f32.xlu0 %v1333
        %v1335 = vpop.xlane.xlu0 %1334
        %v1336 = vrcp.pop %v1335
        %v1337 = vmul.f32 %v1332, %v1336
        %v1338 = vpack.c.bf16 %v1337, %v1337
        %1339 = vrot.lane.b32.xlu0 %v941, 104
        %v1340 = vpop.permute.xlu0 %1339
        %v1343 = vsel %vm989, %v1338, 0
        %1345 = vmatprep.subr.bf16.mxu0 0
        %1346 = vmatpush1.bf16.msra.mxu0 %v1340
        %1347 = vmatprep.subr.bf16.mxu0 0
        %1348 = vmatpush1.bf16.msra.mxu0 0
        %1349 = vmatprep.subr.bf16.mxu0 0
        %1350 = vmatpush1.bf16.msra.mxu0 0
        %1351 = vmatprep.subr.bf16.mxu0 0
        %1352 = vmatpush1.bf16.msra.mxu0 0
        %1353 = vmatprep.subr.bf16.mxu0 0
        %1354 = vmatpush1.bf16.msra.mxu0 0
        %1355 = vmatprep.subr.bf16.mxu0 0
        %1356 = vmatpush1.bf16.msra.mxu0 0
        %1357 = vmatprep.subr.bf16.mxu0 0
        %1358 = vmatpush1.bf16.msra.mxu0 0
        %1359 = vmatprep.subr.bf16.mxu0 0
        %1360 = vmatpush1.bf16.msra.mxu0 0
        %1361 = vmatprep.subr.bf16.mxu0 0
        %1362 = vmatpush1.bf16.msra.mxu0 0
        %1363 = vmatprep.subr.bf16.mxu0 0
        %1364 = vmatpush1.bf16.msra.mxu0 0
        %1365 = vmatprep.subr.bf16.mxu0 0
        %1366 = vmatpush1.bf16.msra.mxu0 0
        %1367 = vmatprep.subr.bf16.mxu0 0
        %1368 = vmatpush1.bf16.msra.mxu0 0
        %1369 = vmatprep.subr.bf16.mxu0 0
        %1370 = vmatpush1.bf16.msra.mxu0 0
        %1371 = vmatprep.subr.bf16.mxu0 0
        %1372 = vmatpush1.bf16.msra.mxu0 0
        %1373 = vmatprep.subr.bf16.mxu0 0
        %1374 = vmatpush1.bf16.msra.mxu0 0
        %1375 = vmatprep.subr.bf16.mxu0 0
        %1376 = vmatpush1.bf16.msra.mxu0 0
        %1377 = vmatprep.mubr.bf16.mxu0 0
        %1378 = vmatmul.mubr.bf16.gmra.mrb[0].mxu0 %v1343
        %v1379 = vpop.f32.mrb[0].mxu0
        %v1380 = vadd.f32 0.0, %v1379
        %v1381 = vpop.f32.mrb[0].mxu0
        %v1382 = vpop.f32.mrb[0].mxu0
        %v1383 = vpop.f32.mrb[0].mxu0
        %1384 = vdwg.mxu0
        %1386 = vrot.lane.b32.xlu0 %v1380, 24
        %v1387 = vpop.permute.xlu0 %1386
        %vm1389 = vcmask 261312
        %1390 = vst.msk [vmem:[#allocation4] sm:$0xff] %vm1389, %v1387
        %v1391 = vld [vmem:[#allocation4] sm:$0xff]
        %v1392 = vpack.c.bf16 %v1391, %v1391
        %v1393 = vld [vmem:[%s9] sm:$0xf]
        %v1394 = vld [vmem:[%s9 + $0x4] sm:$0xf]
        %v1395 = vld [vmem:[%s9 + $0x8] sm:$0xf]
        %v1396 = vld [vmem:[%s9 + $0xc] sm:$0xf]
        %v1397 = vld [vmem:[#allocation13] sm:$0x1]
        %v1399 = vlaneseq
        %v1400 = vshrl.u32 %v1399, 7
        %v1401 = vsub.s32 0, %v1400
        %v1402 = vrot.slane %v1397, %v1401
        %v1408 = vunpack.c.l.b16 %v1393
        %v1409 = vunpack.c.l.b16 %v1394
        %v1410 = vunpack.c.l.b16 %v1395
        %v1411 = vunpack.c.l.b16 %v1396
        %v1412 = vpack.c.b16 %v1409, %v1408
        %v1413 = vpack.c.b16 %v1411, %v1410
        %v1417 = vsel %vm843, %v1392, 0
        %1419 = vmatprep.subr.bf16.mxu0 0
        %1420 = vmatpush1.bf16.msra.mxu0 %v1412
        %1421 = vmatprep.subr.bf16.mxu0 0
        %1422 = vmatpush1.bf16.msra.mxu0 %v1413
        %1423 = vmatprep.subr.bf16.mxu0 0
        %1424 = vmatpush1.bf16.msra.mxu0 0
        %1425 = vmatprep.subr.bf16.mxu0 0
        %1426 = vmatpush1.bf16.msra.mxu0 0
        %1427 = vmatprep.subr.bf16.mxu0 0
        %1428 = vmatpush1.bf16.msra.mxu0 0
        %1429 = vmatprep.subr.bf16.mxu0 0
        %1430 = vmatpush1.bf16.msra.mxu0 0
        %1431 = vmatprep.subr.bf16.mxu0 0
        %1432 = vmatpush1.bf16.msra.mxu0 0
        %1433 = vmatprep.subr.bf16.mxu0 0
        %1434 = vmatpush1.bf16.msra.mxu0 0
        %1435 = vmatprep.subr.bf16.mxu0 0
        %1436 = vmatpush1.bf16.msra.mxu0 0
        %1437 = vmatprep.subr.bf16.mxu0 0
        %1438 = vmatpush1.bf16.msra.mxu0 0
        %1439 = vmatprep.subr.bf16.mxu0 0
        %1440 = vmatpush1.bf16.msra.mxu0 0
        %1441 = vmatprep.subr.bf16.mxu0 0
        %1442 = vmatpush1.bf16.msra.mxu0 0
        %1443 = vmatprep.subr.bf16.mxu0 0
        %1444 = vmatpush1.bf16.msra.mxu0 0
        %1445 = vmatprep.subr.bf16.mxu0 0
        %1446 = vmatpush1.bf16.msra.mxu0 0
        %1447 = vmatprep.subr.bf16.mxu0 0
        %1448 = vmatpush1.bf16.msra.mxu0 0
        %1449 = vmatprep.subr.bf16.mxu0 0
        %1450 = vmatpush1.bf16.msra.mxu0 0
        %1451 = vmatprep.mubr.bf16.mxu0 0
        %1452 = vmatmul.mubr.bf16.gmra.mrb[0].mxu0 %v1417
        %v1453 = vpop.f32.mrb[0].mxu0
        %v1454 = vadd.f32 %v1402, %v1453
        %v1455 = vpop.f32.mrb[0].mxu0
        %v1456 = vpop.f32.mrb[0].mxu0
        %v1457 = vpop.f32.mrb[0].mxu0
        %1458 = vdwg.mxu0
        %v1459 = vadd.f32 %v840, %v1454
        %v1460 = vld [vmem:[#allocation14] sm:$0x1]
        %v1461 = vld [vmem:[#allocation16] sm:$0x1]
        %v1462 = vsel %vm843, %v1459, 0.0
        %1463 = vadd.xlane.f32.xlu0 %v1462
        %v1464 = vpop.xlane.xlu0 %1463
        %v1465 = vmul.f32 %v1464, %v847
        %v1466 = vsub.f32 %v1459, %v1465
        %v1467 = vmul.f32 %v1466, %v1466
        %v1468 = vsel %vm843, %v1467, 0.0
        %1469 = vadd.xlane.f32.xlu0 %v1468
        %v1470 = vpop.xlane.xlu0 %1469
        %v1471 = vmul.f32 %v1470, %v847
        %v1472 = vadd.f32 %v1471, 1e-05
        %v1473 = vrsqrt.pop %v1472
        %v1474 = vmul.f32 %v1466, %v1473
        %v1476 = vlaneseq
        %v1477 = vshrl.u32 %v1476, 7
        %v1478 = vsub.s32 0, %v1477
        %v1479 = vrot.slane %v1460, %v1478
        %v1481 = vmul.f32 %v1474, %v1479
        %v1483 = vlaneseq
        %v1484 = vshrl.u32 %v1483, 7
        %v1485 = vsub.s32 0, %v1484
        %v1486 = vrot.slane %v1461, %v1485
        %v1488 = vadd.f32 %v1481, %v1486
        %v1489 = vpack.c.bf16 %v1488, %v1488
        %v1490 = vld [vmem:[%s13] sm:$0xf]
        %v1491 = vld [vmem:[%s13 + $0x4] sm:$0xf]
        %v1492 = vld [vmem:[%s13 + $0x8] sm:$0xf]
        %v1493 = vld [vmem:[%s13 + $0xc] sm:$0xf]
        %v1494 = vld [vmem:[%s14] sm:$0x1]
        %v1496 = vlaneseq
        %v1497 = vshrl.u32 %v1496, 7
        %v1498 = vsub.s32 0, %v1497
        %v1499 = vrot.slane %v1494, %v1498
        %v1505 = vunpack.c.l.b16 %v1490
        %v1506 = vunpack.c.l.b16 %v1491
        %v1507 = vunpack.c.l.b16 %v1492
        %v1508 = vunpack.c.l.b16 %v1493
        %v1509 = vpack.c.b16 %v1506, %v1505
        %v1510 = vpack.c.b16 %v1508, %v1507
        %v1514 = vsel %vm843, %v1489, 0
        %1516 = vmatprep.subr.bf16.mxu0 0
        %1517 = vmatpush1.bf16.msra.mxu0 %v1509
        %1518 = vmatprep.subr.bf16.mxu0 0
        %1519 = vmatpush1.bf16.msra.mxu0 %v1510
        %1520 = vmatprep.subr.bf16.mxu0 0
        %1521 = vmatpush1.bf16.msra.mxu0 0
        %1522 = vmatprep.subr.bf16.mxu0 0
        %1523 = vmatpush1.bf16.msra.mxu0 0
        %1524 = vmatprep.subr.bf16.mxu0 0
        %1525 = vmatpush1.bf16.msra.mxu0 0
        %1526 = vmatprep.subr.bf16.mxu0 0
        %1527 = vmatpush1.bf16.msra.mxu0 0
        %1528 = vmatprep.subr.bf16.mxu0 0
        %1529 = vmatpush1.bf16.msra.mxu0 0
        %1530 = vmatprep.subr.bf16.mxu0 0
        %1531 = vmatpush1.bf16.msra.mxu0 0
        %1532 = vmatprep.subr.bf16.mxu0 0
        %1533 = vmatpush1.bf16.msra.mxu0 0
        %1534 = vmatprep.subr.bf16.mxu0 0
        %1535 = vmatpush1.bf16.msra.mxu0 0
        %1536 = vmatprep.subr.bf16.mxu0 0
        %1537 = vmatpush1.bf16.msra.mxu0 0
        %1538 = vmatprep.subr.bf16.mxu0 0
        %1539 = vmatpush1.bf16.msra.mxu0 0
        %1540 = vmatprep.subr.bf16.mxu0 0
        %1541 = vmatpush1.bf16.msra.mxu0 0
        %1542 = vmatprep.subr.bf16.mxu0 0
        %1543 = vmatpush1.bf16.msra.mxu0 0
        %1544 = vmatprep.subr.bf16.mxu0 0
        %1545 = vmatpush1.bf16.msra.mxu0 0
        %1546 = vmatprep.subr.bf16.mxu0 0
        %1547 = vmatpush1.bf16.msra.mxu0 0
        %1548 = vmatprep.mubr.bf16.mxu0 0
        %1549 = vmatmul.mubr.bf16.gmra.mrb[0].mxu0 %v1514
        %v1550 = vpop.f32.mrb[0].mxu0
        %v1551 = vadd.f32 %v1499, %v1550
        %v1552 = vpop.f32.mrb[0].mxu0
        %v1553 = vpop.f32.mrb[0].mxu0
        %v1554 = vpop.f32.mrb[0].mxu0
        %1555 = vdwg.mxu0
        %v1556 = vmul.f32 %v1551, 1.702
        %v1557 = vxor.u32 %v1556, 2147483648
        %v1558 = vmul.f32 %v1557, 1.442695
        %v1559 = vpow.pop %v1558
        %v1560 = vadd.f32 %v1559, 1.0
        %v1561 = vrcp.pop %v1560
        %v1562 = vmul.f32 1.0, %v1561
        %v1563 = vmul.f32 %v1551, %v1562
        %v1564 = vpack.c.bf16 %v1563, %v1563
        %v1565 = vld [vmem:[%s15] sm:$0xf]
        %v1566 = vld [vmem:[%s15 + $0x4] sm:$0xf]
        %v1567 = vld [vmem:[%s15 + $0x8] sm:$0xf]
        %v1568 = vld [vmem:[%s15 + $0xc] sm:$0xf]
        %v1569 = vld [vmem:[%s15 + $0x10] sm:$0xf]
        %v1570 = vld [vmem:[%s15 + $0x14] sm:$0xf]
        %v1571 = vld [vmem:[%s15 + $0x18] sm:$0xf]
        %v1572 = vld [vmem:[%s15 + $0x1c] sm:$0xf]
        %v1573 = vld [vmem:[%s15 + $0x20] sm:$0xf]
        %v1574 = vld [vmem:[%s15 + $0x24] sm:$0xf]
        %v1575 = vld [vmem:[%s15 + $0x28] sm:$0xf]
        %v1576 = vld [vmem:[%s15 + $0x2c] sm:$0xf]
        %v1577 = vld [vmem:[%s15 + $0x30] sm:$0xf]
        %v1578 = vld [vmem:[%s15 + $0x34] sm:$0xf]
        %v1579 = vld [vmem:[%s15 + $0x38] sm:$0xf]
        %v1580 = vld [vmem:[%s15 + $0x3c] sm:$0xf]
        %v1581 = vld [vmem:[%s16] sm:$0x1]
        %v1583 = vlaneseq
        %v1584 = vshrl.u32 %v1583, 7
        %v1585 = vsub.s32 0, %v1584
        %v1586 = vrot.slane %v1581, %v1585
        %v1604 = vunpack.c.l.b16 %v1565
        %v1605 = vunpack.c.l.b16 %v1566
        %v1606 = vunpack.c.l.b16 %v1567
        %v1607 = vunpack.c.l.b16 %v1568
        %v1608 = vunpack.c.l.b16 %v1569
        %v1609 = vunpack.c.l.b16 %v1570
        %v1610 = vunpack.c.l.b16 %v1571
        %v1611 = vunpack.c.l.b16 %v1572
        %v1612 = vunpack.c.l.b16 %v1573
        %v1613 = vunpack.c.l.b16 %v1574
        %v1614 = vunpack.c.l.b16 %v1575
        %v1615 = vunpack.c.l.b16 %v1576
        %v1616 = vunpack.c.l.b16 %v1577
        %v1617 = vunpack.c.l.b16 %v1578
        %v1618 = vunpack.c.l.b16 %v1579
        %v1619 = vunpack.c.l.b16 %v1580
        %v1620 = vpack.c.b16 %v1605, %v1604
        %v1621 = vpack.c.b16 %v1607, %v1606
        %v1622 = vpack.c.b16 %v1609, %v1608
        %v1623 = vpack.c.b16 %v1611, %v1610
        %v1624 = vpack.c.b16 %v1613, %v1612
        %v1625 = vpack.c.b16 %v1615, %v1614
        %v1626 = vpack.c.b16 %v1617, %v1616
        %v1627 = vpack.c.b16 %v1619, %v1618
        %1636 = vmatprep.subr.bf16.mxu0 0
        %1637 = vmatpush1.bf16.msra.mxu0 %v1620
        %1638 = vmatprep.subr.bf16.mxu0 0
        %1639 = vmatpush1.bf16.msra.mxu0 %v1621
        %1640 = vmatprep.subr.bf16.mxu0 0
        %1641 = vmatpush1.bf16.msra.mxu0 %v1622
        %1642 = vmatprep.subr.bf16.mxu0 0
        %1643 = vmatpush1.bf16.msra.mxu0 %v1623
        %1644 = vmatprep.subr.bf16.mxu0 0
        %1645 = vmatpush1.bf16.msra.mxu0 %v1624
        %1646 = vmatprep.subr.bf16.mxu0 0
        %1647 = vmatpush1.bf16.msra.mxu0 %v1625
        %1648 = vmatprep.subr.bf16.mxu0 0
        %1649 = vmatpush1.bf16.msra.mxu0 %v1626
        %1650 = vmatprep.subr.bf16.mxu0 0
        %1651 = vmatpush1.bf16.msra.mxu0 %v1627
        %1652 = vmatprep.subr.bf16.mxu0 0
        %1653 = vmatpush1.bf16.msra.mxu0 0
        %1654 = vmatprep.subr.bf16.mxu0 0
        %1655 = vmatpush1.bf16.msra.mxu0 0
        %1656 = vmatprep.subr.bf16.mxu0 0
        %1657 = vmatpush1.bf16.msra.mxu0 0
        %1658 = vmatprep.subr.bf16.mxu0 0
        %1659 = vmatpush1.bf16.msra.mxu0 0
        %1660 = vmatprep.subr.bf16.mxu0 0
        %1661 = vmatpush1.bf16.msra.mxu0 0
        %1662 = vmatprep.subr.bf16.mxu0 0
        %1663 = vmatpush1.bf16.msra.mxu0 0
        %1664 = vmatprep.subr.bf16.mxu0 0
        %1665 = vmatpush1.bf16.msra.mxu0 0
        %1666 = vmatprep.subr.bf16.mxu0 0
        %1667 = vmatpush1.bf16.msra.mxu0 0
        %1668 = vmatprep.mubr.bf16.mxu0 0
        %1669 = vmatmul.mubr.bf16.gmra.mrb[0].mxu0 %v1564
        %v1670 = vpop.f32.mrb[0].mxu0
        %v1671 = vadd.f32 %v1586, %v1670
        %v1672 = vpop.f32.mrb[0].mxu0
        %v1673 = vpop.f32.mrb[0].mxu0
        %v1674 = vpop.f32.mrb[0].mxu0
        %1675 = vdwg.mxu0
        %v1676 = vadd.f32 %v1459, %v1671
        %1677 = vst.msk [vmem:[%s643] sm:$0xff] %vm843, %v1676
        %s1678 = sand.u32 %s419, 1
        %s1679 = scalar_lea.sflag [#allocation7], %s1678
        %s1680 = sand.u32 %s419, 1
        %s1681 = smul.addr %s1680, 8
        %s1682 = scalar_lea.vmem [#allocation17], %s1681
        // Predicated region
        $region121: #{tpu_custom_call.1} parent=87 // pred_check
          %p1683 = pneg %p429
        $region122: #{tpu_custom_call.1} parent=87 // pred_check_branch
          %1685 = sbr.rel (%p1683) target = $region124
        $region123: #{tpu_custom_call.1} parent=87 // pred_region
          %s1687 = ssub.s32 128, 128
          %1688 = vsyncadd %s1679, %s1687
          %s1689 = smul.addr %s39, 2
          %s1690 = sadd.s32 %s40, %s1689
          %s1691 = smul.addr %s1690, 128
          %s1692 = scalar_lea.hbm %s17, %s1691
          %s1694 = sshll.u32 %s1682, 4
          %s1695 = int_to_ptr.vmem [resolvable:$true] %s1694
          %1697 = dma.vmem_to_hbm [thread:$0]  %s1695, 128, %s1692, %s1679
        $region124: #{tpu_custom_call.1} parent=87 // pred_fallthru
          _
      $region88: #{tpu_custom_call.1} parent=5 // pred_fallthru
        _
      %p1698 = scmp.le.s32.totalorder 2, %s30
      // Predicated region
      $region125: #{tpu_custom_call.1} parent=5 // pred_check
        %p1699 = pneg %p1698
      $region126: #{tpu_custom_call.1} parent=5 // pred_check_branch
        %1701 = sbr.rel (%p1699) target = $region128
      $region127: #{tpu_custom_call.1} parent=5 // pred_region
        %s1702 = ssub.s32 %s30, 2
        // Predicated region
        $region129: #{tpu_custom_call.1} parent=127 // pred_check
          %p1703 = pneg %p435
        $region130: #{tpu_custom_call.1} parent=127 // pred_check_branch
          %1705 = sbr.rel (%p1703) target = $region132
        $region131: #{tpu_custom_call.1} parent=127 // pred_region
          %s1706 = sand.u32 %s420, 1
          %s1707 = scalar_lea.sflag [#allocation7], %s1706
          %s1708 = sand.u32 %s420, 1
          %s1709 = smul.addr %s1708, 8
          %s1710 = scalar_lea.vmem [#allocation17], %s1709
          %1711 = dma.done %s1707, 128
        $region132: #{tpu_custom_call.1} parent=127 // pred_fallthru
          _
      $region128: #{tpu_custom_call.1} parent=5 // pred_fallthru
        _
    $region6: #{tpu_custom_call.1} parent=1 // loop_footer
      %s34 = sadd.s32 1, %s30
    $region7: #{tpu_custom_call.1} parent=1 // loop_footer_branch
      %29 = sbr.rel target = $region3
    $region8: #{tpu_custom_call.1} parent=1 // loop_exit
      _
    %1712 = vsyncpa [#allocation6], 1
    %s1713 = scalar_lea.sflag [#allocation6], 1
    %1714 = vsyncpa %s1713, 1
    %1715 = vsyncpa [#allocation9], 1
    %1716 = vsyncpa [#allocation12], 1
    %1717 = vsyncpa [#allocation15], 1
    %1718 = vsyncpa [#allocation7], 1
    %s1719 = scalar_lea.sflag [#allocation7], 1
    %1720 = vsyncpa %s1719, 1

// kernel: tpu_custom_call.1
$region0: #{tpu_custom_call.1}
  #allocation0 [shape = 'u32[]', space=smem, size = 0x4, offset = 0x4, fixed_abs, tag = 'smem constant byte address 0x4 - core index']
  #allocation1 [shape = 'u32[144,128]{1,0:T(1,128)}', space=vmem, size = 0x12000, scoped, tag = 'internal scratch']
  #allocation2 [shape = 'bf16[16,32]{1,0:T(16,128)(2,1)}', space=vmem, size = 0x1000, scoped, tag = 'scratch operand']
  #allocation3 [shape = 'bf16[16,32]{1,0:T(16,128)(2,1)}', space=vmem, size = 0x1000, scoped, tag = 'scratch operand']
  #allocation4 [shape = 'f32[8,32]{1,0:T(8,128)}', space=vmem, size = 0x1000, scoped, tag = 'scratch operand']
  %s0 = inlined_call_operand.vmem [shape: f32[2,16,32], index: 0, kind: input, shape index: {}]
  %s1 = inlined_call_operand.vmem [shape: f32[1,32], index: 1, kind: input, shape index: {}]
  %s2 = inlined_call_operand.hbm [shape: f32[1,32], index: 2, kind: input, shape index: {}]
  %s3 = inlined_call_operand.vmem [shape: bf16[32,32], index: 3, kind: input, shape index: {}]
  %s4 = inlined_call_operand.hbm [shape: f32[1,32], index: 4, kind: input, shape index: {}]
  %s5 = inlined_call_operand.vmem [shape: bf16[32,32], index: 5, kind: input, shape index: {}]
  %s6 = inlined_call_operand.hbm [shape: f32[1,32], index: 6, kind: input, shape index: {}]
  %s7 = inlined_call_operand.vmem [shape: bf16[32,32], index: 7, kind: input, shape index: {}]
  %s8 = inlined_call_operand.hbm [shape: f32[1,32], index: 8, kind: input, shape index: {}]
  %s9 = inlined_call_operand.vmem [shape: bf16[32,32], index: 9, kind: input, shape index: {}]
  %s10 = inlined_call_operand.hbm [shape: f32[1,32], index: 10, kind: input, shape index: {}]
  %s11 = inlined_call_operand.hbm [shape: f32[1,32], index: 11, kind: input, shape index: {}]
  %s12 = inlined_call_operand.hbm [shape: f32[1,32], index: 12, kind: input, shape index: {}]
  %s13 = inlined_call_operand.vmem [shape: bf16[32,128], index: 13, kind: input, shape index: {}]
  %s14 = inlined_call_operand.vmem [shape: f32[1,128], index: 14, kind: input, shape index: {}]
  %s15 = inlined_call_operand.vmem [shape: bf16[128,32], index: 15, kind: input, shape index: {}]
  %s16 = inlined_call_operand.vmem [shape: f32[1,32], index: 16, kind: input, shape index: {}]
  %s17 = inlined_call_operand.hbm [shape: f32[2,16,32], index: 17, kind: output, shape index: {}]
  %s18 = sld [smem:[#allocation0]]
  $region133: #{tpu_custom_call.1} parent=0
    _
  %s20 = ssub.s32 1, %s18
  %s21 = scalar_select 0, %s20, %s18
  $region1: #{tpu_custom_call.1} parent=0
    #allocation5 [shape = 'u8[512]{0}', space=vmem, size = 0x400, scoped, tag = 'input window, operand 2, single buffered']
    #allocation6 [shape = 's32[2]{0}', space=sflag, size = 0x8, scoped, tag = 'scoped memory for tpu_custom_call.1']
    #allocation7 [shape = 's32[2]{0}', space=sflag, size = 0x8, scoped, tag = 'scoped memory for tpu_custom_call.1']
    #allocation8 [shape = 'u8[512]{0}', space=vmem, size = 0x400, scoped, tag = 'input window, operand 4, single buffered']
    #allocation9 [shape = 's32[1]{0}', space=sflag, size = 0x4, scoped, tag = 'scoped memory for tpu_custom_call.1']
    #allocation10 [shape = 'u8[512]{0}', space=vmem, size = 0x400, scoped, tag = 'input window, operand 6, single buffered']
    #allocation11 [shape = 'u8[512]{0}', space=vmem, size = 0x400, scoped, tag = 'input window, operand 8, single buffered']
    #allocation12 [shape = 's32[1]{0}', space=sflag, size = 0x4, scoped, tag = 'scoped memory for tpu_custom_call.1']
    #allocation13 [shape = 'u8[512]{0}', space=vmem, size = 0x400, scoped, tag = 'input window, operand 10, single buffered']
    #allocation14 [shape = 'u8[512]{0}', space=vmem, size = 0x400, scoped, tag = 'input window, operand 11, single buffered']
    #allocation15 [shape = 's32[1]{0}', space=sflag, size = 0x4, scoped, tag = 'scoped memory for tpu_custom_call.1']
    #allocation16 [shape = 'u8[512]{0}', space=vmem, size = 0x400, scoped, tag = 'input window, operand 12, single buffered']
    #allocation17 [shape = 'u8[8192]{0}', space=vmem, size = 0x2000, scoped, tag = 'output window, operand 0']
    %22 = vsyncpa [#allocation6], 0
    %23 = vsyncpa [#allocation9], 0
    %24 = vsyncpa [#allocation12], 0
    %25 = vsyncpa [#allocation15], 0
    %26 = vsyncpa [#allocation7], 0
    %s27 = scalar_lea.sflag [#allocation7], 1
    %28 = vsyncpa %s27, 0
    loop: start=0, step=1, limit=6
    $region2: #{tpu_custom_call.1} parent=1 // loop_pre_header
      _
    $region3: #{tpu_custom_call.1} parent=1 // loop_header
      %s30 = sphi 0, %s34
      %p31 = scmp.ge.s32.totalorder %s30, 6
      %s37 = sphi 0, %s49
      %s38 = sphi 0, %s45
      %s39 = sphi 0, %s37
      %s40 = sphi 0, %s38
      %s41 = sphi 0, %s39
      %s42 = sphi 0, %s40
      %s52 = sphi 0, %s54
      %s55 = sphi 0, %s52
      %s56 = sphi 0, %s55
      %s72 = sphi 0, %s56
      %s76 = sphi 0, %s76
      %s78 = sphi 0, %s76
      %s79 = sphi 0, %s78
      %s93 = sphi 0, %s79
      %s97 = sphi 0, %s97
      %s99 = sphi 0, %s97
      %s100 = sphi 0, %s99
      %s114 = sphi 0, %s100
      %s118 = sphi 0, %s118
      %s120 = sphi 0, %s118
      %s121 = sphi 0, %s120
      %s135 = sphi 0, %s121
      %s139 = sphi 0, %s139
      %s141 = sphi 0, %s139
      %s142 = sphi 0, %s141
      %s156 = sphi 0, %s142
      %s160 = sphi 0, %s160
      %s162 = sphi 0, %s160
      %s163 = sphi 0, %s162
      %s177 = sphi 0, %s163
      %s181 = sphi 0, %s181
      %s183 = sphi 0, %s181
      %s184 = sphi 0, %s183
      %s198 = sphi 0, %s184
      %s202 = sphi 0, %s202
      %s204 = sphi 0, %s202
      %s205 = sphi 0, %s204
      %s219 = sphi 0, %s205
      %s223 = sphi 0, %s223
      %s225 = sphi 0, %s223
      %s226 = sphi 0, %s225
      %s240 = sphi 0, %s226
      %s244 = sphi 0, %s244
      %s246 = sphi 0, %s244
      %s247 = sphi 0, %s246
      %s261 = sphi 0, %s247
      %s265 = sphi 0, %s265
      %s267 = sphi 0, %s265
      %s268 = sphi 0, %s267
      %s282 = sphi 0, %s268
      %s286 = sphi 0, %s286
      %s288 = sphi 0, %s286
      %s289 = sphi 0, %s288
      %s303 = sphi 0, %s289
      %s307 = sphi 0, %s307
      %s309 = sphi 0, %s307
      %s310 = sphi 0, %s309
      %s324 = sphi 0, %s310
      %s328 = sphi 0, %s328
      %s330 = sphi 0, %s328
      %s331 = sphi 0, %s330
      %s345 = sphi 0, %s331
      %s349 = sphi 0, %s349
      %s351 = sphi 0, %s349
      %s352 = sphi 0, %s351
      %s366 = sphi 0, %s352
      %s370 = sphi 0, %s370
      %s372 = sphi 0, %s370
      %s373 = sphi 0, %s372
      %s387 = sphi 0, %s373
      %s391 = sphi 0, %s391
      %s393 = sphi 0, %s391
      %s394 = sphi 0, %s393
      %s408 = sphi 0, %s394
      %s416 = sphi 0, %s418
      %s419 = sphi 0, %s416
      %s420 = sphi 0, %s419
      %s436 = sphi 0, %s420
    $region4: #{tpu_custom_call.1} parent=1 // loop_header_branch
      %33 = sbr.rel (%p31) target = $region8
    $region5: #{tpu_custom_call.1} parent=1 // loop_body
      %s35 = ssub.s32 %s30, 1
      %s36 = ssub.s32 %s30, 2
      %s43 = sadd.s32 1, %s38
      %p44 = scmp.ge.s32.totalorder %s43, 2
      %s45 = scalar_select %p44, 0, %s43
      %s46 = sadd.s32 1, %s37
      %s47 = scalar_select %p44, %s46, %s37
      %p48 = scmp.ge.s32.totalorder %s47, 2
      %s49 = scalar_select %p48, 0, %s47
      %s50 = ssub.s32 %s37, %s49
      %p51 = scmp.eq.s32.totalorder %s50, 0
      %s53 = sadd.s32 %s52, 1
      %s54 = scalar_select %p51, %s52, %s53
      %p57 = pneg %p51
      %p58 = scmp.eq.s32.totalorder %s30, 3
      %p59 = por %p57, %p58
      %p60 = scmp.ne.s32.totalorder %s52, %s55
      %p61 = scmp.eq.s32.totalorder %s30, 0
      %p62 = por %p60, %p61
      %p63 = scmp.ne.s32.totalorder %s52, %s55
      %p64 = scmp.eq.s32.totalorder %s35, 3
      %p65 = por %p63, %p64
      %p66 = scmp.ne.s32.totalorder %s55, %s56
      %p67 = scmp.eq.s32.totalorder %s35, 0
      %p68 = por %p66, %p67
      %p69 = scmp.ne.s32.totalorder %s55, %s56
      %p70 = scmp.eq.s32.totalorder %s36, 3
      %p71 = por %p69, %p70
      %p73 = scmp.ne.s32.totalorder %s56, %s72
      %p74 = scmp.eq.s32.totalorder %s36, 0
      %p75 = por %p73, %p74
      %s77 = sadd.s32 %s76, 1
      %p80 = scmp.eq.s32.totalorder %s30, 3
      %p81 = scmp.ne.s32.totalorder %s76, %s78
      %p82 = scmp.eq.s32.totalorder %s30, 0
      %p83 = por %p81, %p82
      %p84 = scmp.ne.s32.totalorder %s76, %s78
      %p85 = scmp.eq.s32.totalorder %s35, 3
      %p86 = por %p84, %p85
      %p87 = scmp.ne.s32.totalorder %s78, %s79
      %p88 = scmp.eq.s32.totalorder %s35, 0
      %p89 = por %p87, %p88
      %p90 = scmp.ne.s32.totalorder %s78, %s79
      %p91 = scmp.eq.s32.totalorder %s36, 3
      %p92 = por %p90, %p91
      %p94 = scmp.ne.s32.totalorder %s79, %s93
      %p95 = scmp.eq.s32.totalorder %s36, 0
      %p96 = por %p94, %p95
      %s98 = sadd.s32 %s97, 1
      %p101 = scmp.eq.s32.totalorder %s30, 3
      %p102 = scmp.ne.s32.totalorder %s97, %s99
      %p103 = scmp.eq.s32.totalorder %s30, 0
      %p104 = por %p102, %p103
      %p105 = scmp.ne.s32.totalorder %s97, %s99
      %p106 = scmp.eq.s32.totalorder %s35, 3
      %p107 = por %p105, %p106
      %p108 = scmp.ne.s32.totalorder %s99, %s100
      %p109 = scmp.eq.s32.totalorder %s35, 0
      %p110 = por %p108, %p109
      %p111 = scmp.ne.s32.totalorder %s99, %s100
      %p112 = scmp.eq.s32.totalorder %s36, 3
      %p113 = por %p111, %p112
      %p115 = scmp.ne.s32.totalorder %s100, %s114
      %p116 = scmp.eq.s32.totalorder %s36, 0
      %p117 = por %p115, %p116
      %s119 = sadd.s32 %s118, 1
      %p122 = scmp.eq.s32.totalorder %s30, 3
      %p123 = scmp.ne.s32.totalorder %s118, %s120
      %p124 = scmp.eq.s32.totalorder %s30, 0
      %p125 = por %p123, %p124
      %p126 = scmp.ne.s32.totalorder %s118, %s120
      %p127 = scmp.eq.s32.totalorder %s35, 3
      %p128 = por %p126, %p127
      %p129 = scmp.ne.s32.totalorder %s120, %s121
      %p130 = scmp.eq.s32.totalorder %s35, 0
      %p131 = por %p129, %p130
      %p132 = scmp.ne.s32.totalorder %s120, %s121
      %p133 = scmp.eq.s32.totalorder %s36, 3
      %p134 = por %p132, %p133
      %p136 = scmp.ne.s32.totalorder %s121, %s135
      %p137 = scmp.eq.s32.totalorder %s36, 0
      %p138 = por %p136, %p137
      %s140 = sadd.s32 %s139, 1
      %p143 = scmp.eq.s32.totalorder %s30, 3
      %p144 = scmp.ne.s32.totalorder %s139, %s141
      %p145 = scmp.eq.s32.totalorder %s30, 0
      %p146 = por %p144, %p145
      %p147 = scmp.ne.s32.totalorder %s139, %s141
      %p148 = scmp.eq.s32.totalorder %s35, 3
      %p149 = por %p147, %p148
      %p150 = scmp.ne.s32.totalorder %s141, %s142
      %p151 = scmp.eq.s32.totalorder %s35, 0
      %p152 = por %p150, %p151
      %p153 = scmp.ne.s32.totalorder %s141, %s142
      %p154 = scmp.eq.s32.totalorder %s36, 3
      %p155 = por %p153, %p154
      %p157 = scmp.ne.s32.totalorder %s142, %s156
      %p158 = scmp.eq.s32.totalorder %s36, 0
      %p159 = por %p157, %p158
      %s161 = sadd.s32 %s160, 1
      %p164 = scmp.eq.s32.totalorder %s30, 3
      %p165 = scmp.ne.s32.totalorder %s160, %s162
      %p166 = scmp.eq.s32.totalorder %s30, 0
      %p167 = por %p165, %p166
      %p168 = scmp.ne.s32.totalorder %s160, %s162
      %p169 = scmp.eq.s32.totalorder %s35, 3
      %p170 = por %p168, %p169
      %p171 = scmp.ne.s32.totalorder %s162, %s163
      %p172 = scmp.eq.s32.totalorder %s35, 0
      %p173 = por %p171, %p172
      %p174 = scmp.ne.s32.totalorder %s162, %s163
      %p175 = scmp.eq.s32.totalorder %s36, 3
      %p176 = por %p174, %p175
      %p178 = scmp.ne.s32.totalorder %s163, %s177
      %p179 = scmp.eq.s32.totalorder %s36, 0
      %p180 = por %p178, %p179
      %s182 = sadd.s32 %s181, 1
      %p185 = scmp.eq.s32.totalorder %s30, 3
      %p186 = scmp.ne.s32.totalorder %s181, %s183
      %p187 = scmp.eq.s32.totalorder %s30, 0
      %p188 = por %p186, %p187
      %p189 = scmp.ne.s32.totalorder %s181, %s183
      %p190 = scmp.eq.s32.totalorder %s35, 3
      %p191 = por %p189, %p190
      %p192 = scmp.ne.s32.totalorder %s183, %s184
      %p193 = scmp.eq.s32.totalorder %s35, 0
      %p194 = por %p192, %p193
      %p195 = scmp.ne.s32.totalorder %s183, %s184
      %p196 = scmp.eq.s32.totalorder %s36, 3
      %p197 = por %p195, %p196
      %p199 = scmp.ne.s32.totalorder %s184, %s198
      %p200 = scmp.eq.s32.totalorder %s36, 0
      %p201 = por %p199, %p200
      %s203 = sadd.s32 %s202, 1
      %p206 = scmp.eq.s32.totalorder %s30, 3
      %p207 = scmp.ne.s32.totalorder %s202, %s204
      %p208 = scmp.eq.s32.totalorder %s30, 0
      %p209 = por %p207, %p208
      %p210 = scmp.ne.s32.totalorder %s202, %s204
      %p211 = scmp.eq.s32.totalorder %s35, 3
      %p212 = por %p210, %p211
      %p213 = scmp.ne.s32.totalorder %s204, %s205
      %p214 = scmp.eq.s32.totalorder %s35, 0
      %p215 = por %p213, %p214
      %p216 = scmp.ne.s32.totalorder %s204, %s205
      %p217 = scmp.eq.s32.totalorder %s36, 3
      %p218 = por %p216, %p217
      %p220 = scmp.ne.s32.totalorder %s205, %s219
      %p221 = scmp.eq.s32.totalorder %s36, 0
      %p222 = por %p220, %p221
      %s224 = sadd.s32 %s223, 1
      %p227 = scmp.eq.s32.totalorder %s30, 3
      %p228 = scmp.ne.s32.totalorder %s223, %s225
      %p229 = scmp.eq.s32.totalorder %s30, 0
      %p230 = por %p228, %p229
      %p231 = scmp.ne.s32.totalorder %s223, %s225
      %p232 = scmp.eq.s32.totalorder %s35, 3
      %p233 = por %p231, %p232
      %p234 = scmp.ne.s32.totalorder %s225, %s226
      %p235 = scmp.eq.s32.totalorder %s35, 0
      %p236 = por %p234, %p235
      %p237 = scmp.ne.s32.totalorder %s225, %s226
      %p238 = scmp.eq.s32.totalorder %s36, 3
      %p239 = por %p237, %p238
      %p241 = scmp.ne.s32.totalorder %s226, %s240
      %p242 = scmp.eq.s32.totalorder %s36, 0
      %p243 = por %p241, %p242
      %s245 = sadd.s32 %s244, 1
      %p248 = scmp.eq.s32.totalorder %s30, 3
      %p249 = scmp.ne.s32.totalorder %s244, %s246
      %p250 = scmp.eq.s32.totalorder %s30, 0
      %p251 = por %p249, %p250
      %p252 = scmp.ne.s32.totalorder %s244, %s246
      %p253 = scmp.eq.s32.totalorder %s35, 3
      %p254 = por %p252, %p253
      %p255 = scmp.ne.s32.totalorder %s246, %s247
      %p256 = scmp.eq.s32.totalorder %s35, 0
      %p257 = por %p255, %p256
      %p258 = scmp.ne.s32.totalorder %s246, %s247
      %p259 = scmp.eq.s32.totalorder %s36, 3
      %p260 = por %p258, %p259
      %p262 = scmp.ne.s32.totalorder %s247, %s261
      %p263 = scmp.eq.s32.totalorder %s36, 0
      %p264 = por %p262, %p263
      %s266 = sadd.s32 %s265, 1
      %p269 = scmp.eq.s32.totalorder %s30, 3
      %p270 = scmp.ne.s32.totalorder %s265, %s267
      %p271 = scmp.eq.s32.totalorder %s30, 0
      %p272 = por %p270, %p271
      %p273 = scmp.ne.s32.totalorder %s265, %s267
      %p274 = scmp.eq.s32.totalorder %s35, 3
      %p275 = por %p273, %p274
      %p276 = scmp.ne.s32.totalorder %s267, %s268
      %p277 = scmp.eq.s32.totalorder %s35, 0
      %p278 = por %p276, %p277
      %p279 = scmp.ne.s32.totalorder %s267, %s268
      %p280 = scmp.eq.s32.totalorder %s36, 3
      %p281 = por %p279, %p280
      %p283 = scmp.ne.s32.totalorder %s268, %s282
      %p284 = scmp.eq.s32.totalorder %s36, 0
      %p285 = por %p283, %p284
      %s287 = sadd.s32 %s286, 1
      %p290 = scmp.eq.s32.totalorder %s30, 3
      %p291 = scmp.ne.s32.totalorder %s286, %s288
      %p292 = scmp.eq.s32.totalorder %s30, 0
      %p293 = por %p291, %p292
      %p294 = scmp.ne.s32.totalorder %s286, %s288
      %p295 = scmp.eq.s32.totalorder %s35, 3
      %p296 = por %p294, %p295
      %p297 = scmp.ne.s32.totalorder %s288, %s289
      %p298 = scmp.eq.s32.totalorder %s35, 0
      %p299 = por %p297, %p298
      %p300 = scmp.ne.s32.totalorder %s288, %s289
      %p301 = scmp.eq.s32.totalorder %s36, 3
      %p302 = por %p300, %p301
      %p304 = scmp.ne.s32.totalorder %s289, %s303
      %p305 = scmp.eq.s32.totalorder %s36, 0
      %p306 = por %p304, %p305
      %s308 = sadd.s32 %s307, 1
      %p311 = scmp.eq.s32.totalorder %s30, 3
      %p312 = scmp.ne.s32.totalorder %s307, %s309
      %p313 = scmp.eq.s32.totalorder %s30, 0
      %p314 = por %p312, %p313
      %p315 = scmp.ne.s32.totalorder %s307, %s309
      %p316 = scmp.eq.s32.totalorder %s35, 3
      %p317 = por %p315, %p316
      %p318 = scmp.ne.s32.totalorder %s309, %s310
      %p319 = scmp.eq.s32.totalorder %s35, 0
      %p320 = por %p318, %p319
      %p321 = scmp.ne.s32.totalorder %s309, %s310
      %p322 = scmp.eq.s32.totalorder %s36, 3
      %p323 = por %p321, %p322
      %p325 = scmp.ne.s32.totalorder %s310, %s324
      %p326 = scmp.eq.s32.totalorder %s36, 0
      %p327 = por %p325, %p326
      %s329 = sadd.s32 %s328, 1
      %p332 = scmp.eq.s32.totalorder %s30, 3
      %p333 = scmp.ne.s32.totalorder %s328, %s330
      %p334 = scmp.eq.s32.totalorder %s30, 0
      %p335 = por %p333, %p334
      %p336 = scmp.ne.s32.totalorder %s328, %s330
      %p337 = scmp.eq.s32.totalorder %s35, 3
      %p338 = por %p336, %p337
      %p339 = scmp.ne.s32.totalorder %s330, %s331
      %p340 = scmp.eq.s32.totalorder %s35, 0
      %p341 = por %p339, %p340
      %p342 = scmp.ne.s32.totalorder %s330, %s331
      %p343 = scmp.eq.s32.totalorder %s36, 3
      %p344 = por %p342, %p343
      %p346 = scmp.ne.s32.totalorder %s331, %s345
      %p347 = scmp.eq.s32.totalorder %s36, 0
      %p348 = por %p346, %p347
      %s350 = sadd.s32 %s349, 1
      %p353 = scmp.eq.s32.totalorder %s30, 3
      %p354 = scmp.ne.s32.totalorder %s349, %s351
      %p355 = scmp.eq.s32.totalorder %s30, 0
      %p356 = por %p354, %p355
      %p357 = scmp.ne.s32.totalorder %s349, %s351
      %p358 = scmp.eq.s32.totalorder %s35, 3
      %p359 = por %p357, %p358
      %p360 = scmp.ne.s32.totalorder %s351, %s352
      %p361 = scmp.eq.s32.totalorder %s35, 0
      %p362 = por %p360, %p361
      %p363 = scmp.ne.s32.totalorder %s351, %s352
      %p364 = scmp.eq.s32.totalorder %s36, 3
      %p365 = por %p363, %p364
      %p367 = scmp.ne.s32.totalorder %s352, %s366
      %p368 = scmp.eq.s32.totalorder %s36, 0
      %p369 = por %p367, %p368
      %s371 = sadd.s32 %s370, 1
      %p374 = scmp.eq.s32.totalorder %s30, 3
      %p375 = scmp.ne.s32.totalorder %s370, %s372
      %p376 = scmp.eq.s32.totalorder %s30, 0
      %p377 = por %p375, %p376
      %p378 = scmp.ne.s32.totalorder %s370, %s372
      %p379 = scmp.eq.s32.totalorder %s35, 3
      %p380 = por %p378, %p379
      %p381 = scmp.ne.s32.totalorder %s372, %s373
      %p382 = scmp.eq.s32.totalorder %s35, 0
      %p383 = por %p381, %p382
      %p384 = scmp.ne.s32.totalorder %s372, %s373
      %p385 = scmp.eq.s32.totalorder %s36, 3
      %p386 = por %p384, %p385
      %p388 = scmp.ne.s32.totalorder %s373, %s387
      %p389 = scmp.eq.s32.totalorder %s36, 0
      %p390 = por %p388, %p389
      %s392 = sadd.s32 %s391, 1
      %p395 = scmp.eq.s32.totalorder %s30, 3
      %p396 = scmp.ne.s32.totalorder %s391, %s393
      %p397 = scmp.eq.s32.totalorder %s30, 0
      %p398 = por %p396, %p397
      %p399 = scmp.ne.s32.totalorder %s391, %s393
      %p400 = scmp.eq.s32.totalorder %s35, 3
      %p401 = por %p399, %p400
      %p402 = scmp.ne.s32.totalorder %s393, %s394
      %p403 = scmp.eq.s32.totalorder %s35, 0
      %p404 = por %p402, %p403
      %p405 = scmp.ne.s32.totalorder %s393, %s394
      %p406 = scmp.eq.s32.totalorder %s36, 3
      %p407 = por %p405, %p406
      %p409 = scmp.ne.s32.totalorder %s394, %s408
      %p410 = scmp.eq.s32.totalorder %s36, 0
      %p411 = por %p409, %p410
      %s412 = ssub.s32 %s37, %s49
      %s413 = ssub.s32 %s38, %s45
      %s414 = sor.u32 %s412, %s413
      %p415 = scmp.eq.s32.totalorder %s414, 0
      %s417 = sadd.s32 %s416, 1
      %s418 = scalar_select %p415, %s416, %s417
      %p421 = pneg %p415
      %p422 = scmp.eq.s32.totalorder %s30, 3
      %p423 = por %p421, %p422
      %p424 = scmp.ne.s32.totalorder %s416, %s419
      %p425 = scmp.eq.s32.totalorder %s30, 0
      %p426 = por %p424, %p425
      %p427 = scmp.ne.s32.totalorder %s416, %s419
      %p428 = scmp.eq.s32.totalorder %s35, 3
      %p429 = por %p427, %p428
      %p430 = scmp.ne.s32.totalorder %s419, %s420
      %p431 = scmp.eq.s32.totalorder %s35, 0
      %p432 = por %p430, %p431
      %p433 = scmp.ne.s32.totalorder %s419, %s420
      %p434 = scmp.eq.s32.totalorder %s36, 3
      %p435 = por %p433, %p434
      %p437 = scmp.ne.s32.totalorder %s420, %s436
      %p438 = scmp.eq.s32.totalorder %s36, 0
      %p439 = por %p437, %p438
      %p440 = scmp.le.s32.totalorder 1, %s30
      %p441 = scmp.lt.s32.totalorder %s30, 5
      %p442 = pnand %p440, %p441
      %p443 = pneg %p442
      // Predicated region
      $region9: #{tpu_custom_call.1} parent=5 // pred_check
        _
      $region10: #{tpu_custom_call.1} parent=5 // pred_check_branch
        %445 = sbr.rel (%p442) target = $region12
      $region11: #{tpu_custom_call.1} parent=5 // pred_region
        %s446 = ssub.s32 %s30, 1
        // Predicated region
        $region13: #{tpu_custom_call.1} parent=11 // pred_check
          %p447 = pneg %p89
        $region14: #{tpu_custom_call.1} parent=11 // pred_check_branch
          %449 = sbr.rel (%p447) target = $region16
        $region15: #{tpu_custom_call.1} parent=11 // pred_region
          _
        $region16: #{tpu_custom_call.1} parent=11 // pred_fallthru
          _
        // Predicated region
        $region17: #{tpu_custom_call.1} parent=11 // pred_check
          %p450 = pneg %p110
        $region18: #{tpu_custom_call.1} parent=11 // pred_check_branch
          %452 = sbr.rel (%p450) target = $region20
        $region19: #{tpu_custom_call.1} parent=11 // pred_region
          %s454 = ssub.s32 16, 16
          %455 = vsyncadd [#allocation6], %s454
          %s457 = sshll.u32 [#allocation5], 4
          %s458 = int_to_ptr.vmem [resolvable:$true] %s457
          %460 = dma.hbm_to_vmem [thread:$0]  %s2, 16, %s458, [#allocation6]
        $region20: #{tpu_custom_call.1} parent=11 // pred_fallthru
          _
        // Predicated region
        $region21: #{tpu_custom_call.1} parent=11 // pred_check
          %p461 = pneg %p131
        $region22: #{tpu_custom_call.1} parent=11 // pred_check_branch
          %463 = sbr.rel (%p461) target = $region24
        $region23: #{tpu_custom_call.1} parent=11 // pred_region
          _
        $region24: #{tpu_custom_call.1} parent=11 // pred_fallthru
          _
        // Predicated region
        $region25: #{tpu_custom_call.1} parent=11 // pred_check
          %p464 = pneg %p152
        $region26: #{tpu_custom_call.1} parent=11 // pred_check_branch
          %466 = sbr.rel (%p464) target = $region28
        $region27: #{tpu_custom_call.1} parent=11 // pred_region
          %s468 = ssub.s32 16, 16
          %469 = vsyncadd [#allocation9], %s468
          %s471 = sshll.u32 [#allocation8], 4
          %s472 = int_to_ptr.vmem [resolvable:$true] %s471
          %474 = dma.hbm_to_vmem [thread:$0]  %s4, 16, %s472, [#allocation9]
        $region28: #{tpu_custom_call.1} parent=11 // pred_fallthru
          _
        // Predicated region
        $region29: #{tpu_custom_call.1} parent=11 // pred_check
          %p475 = pneg %p173
        $region30: #{tpu_custom_call.1} parent=11 // pred_check_branch
          %477 = sbr.rel (%p475) target = $region32
        $region31: #{tpu_custom_call.1} parent=11 // pred_region
          _
        $region32: #{tpu_custom_call.1} parent=11 // pred_fallthru
          _
        // Predicated region
        $region33: #{tpu_custom_call.1} parent=11 // pred_check
          %p478 = pneg %p194
        $region34: #{tpu_custom_call.1} parent=11 // pred_check_branch
          %480 = sbr.rel (%p478) target = $region36
        $region35: #{tpu_custom_call.1} parent=11 // pred_region
          %s482 = ssub.s32 16, 16
          %483 = vsyncadd [#allocation9], %s482
          %s485 = sshll.u32 [#allocation10], 4
          %s486 = int_to_ptr.vmem [resolvable:$true] %s485
          %488 = dma.hbm_to_vmem [thread:$0]  %s6, 16, %s486, [#allocation9]
        $region36: #{tpu_custom_call.1} parent=11 // pred_fallthru
          _
        // Predicated region
        $region37: #{tpu_custom_call.1} parent=11 // pred_check
          %p489 = pneg %p215
        $region38: #{tpu_custom_call.1} parent=11 // pred_check_branch
          %491 = sbr.rel (%p489) target = $region40
        $region39: #{tpu_custom_call.1} parent=11 // pred_region
          _
        $region40: #{tpu_custom_call.1} parent=11 // pred_fallthru
          _
        // Predicated region
        $region41: #{tpu_custom_call.1} parent=11 // pred_check
          %p492 = pneg %p236
        $region42: #{tpu_custom_call.1} parent=11 // pred_check_branch
          %494 = sbr.rel (%p492) target = $region44
        $region43: #{tpu_custom_call.1} parent=11 // pred_region
          %s496 = ssub.s32 16, 16
          %497 = vsyncadd [#allocation12], %s496
          %s499 = sshll.u32 [#allocation11], 4
          %s500 = int_to_ptr.vmem [resolvable:$true] %s499
          %502 = dma.hbm_to_vmem [thread:$0]  %s8, 16, %s500, [#allocation12]
        $region44: #{tpu_custom_call.1} parent=11 // pred_fallthru
          _
        // Predicated region
        $region45: #{tpu_custom_call.1} parent=11 // pred_check
          %p503 = pneg %p257
        $region46: #{tpu_custom_call.1} parent=11 // pred_check_branch
          %505 = sbr.rel (%p503) target = $region48
        $region47: #{tpu_custom_call.1} parent=11 // pred_region
          _
        $region48: #{tpu_custom_call.1} parent=11 // pred_fallthru
          _
        // Predicated region
        $region49: #{tpu_custom_call.1} parent=11 // pred_check
          %p506 = pneg %p278
        $region50: #{tpu_custom_call.1} parent=11 // pred_check_branch
          %508 = sbr.rel (%p506) target = $region52
        $region51: #{tpu_custom_call.1} parent=11 // pred_region
          %s510 = ssub.s32 16, 16
          %511 = vsyncadd [#allocation12], %s510
          %s513 = sshll.u32 [#allocation13], 4
          %s514 = int_to_ptr.vmem [resolvable:$true] %s513
          %516 = dma.hbm_to_vmem [thread:$0]  %s10, 16, %s514, [#allocation12]
        $region52: #{tpu_custom_call.1} parent=11 // pred_fallthru
          _
        // Predicated region
        $region53: #{tpu_custom_call.1} parent=11 // pred_check
          %p517 = pneg %p299
        $region54: #{tpu_custom_call.1} parent=11 // pred_check_branch
          %519 = sbr.rel (%p517) target = $region56
        $region55: #{tpu_custom_call.1} parent=11 // pred_region
          %s521 = ssub.s32 16, 16
          %522 = vsyncadd [#allocation15], %s521
          %s524 = sshll.u32 [#allocation14], 4
          %s525 = int_to_ptr.vmem [resolvable:$true] %s524
          %527 = dma.hbm_to_vmem [thread:$0]  %s11, 16, %s525, [#allocation15]
        $region56: #{tpu_custom_call.1} parent=11 // pred_fallthru
          _
        // Predicated region
        $region57: #{tpu_custom_call.1} parent=11 // pred_check
          %p528 = pneg %p320
        $region58: #{tpu_custom_call.1} parent=11 // pred_check_branch
          %530 = sbr.rel (%p528) target = $region60
        $region59: #{tpu_custom_call.1} parent=11 // pred_region
          %s532 = ssub.s32 16, 16
          %533 = vsyncadd [#allocation15], %s532
          %s535 = sshll.u32 [#allocation16], 4
          %s536 = int_to_ptr.vmem [resolvable:$true] %s535
          %538 = dma.hbm_to_vmem [thread:$0]  %s12, 16, %s536, [#allocation15]
        $region60: #{tpu_custom_call.1} parent=11 // pred_fallthru
          _
        // Predicated region
        $region61: #{tpu_custom_call.1} parent=11 // pred_check
          %p539 = pneg %p341
        $region62: #{tpu_custom_call.1} parent=11 // pred_check_branch
          %541 = sbr.rel (%p539) target = $region64
        $region63: #{tpu_custom_call.1} parent=11 // pred_region
          _
        $region64: #{tpu_custom_call.1} parent=11 // pred_fallthru
          _
        // Predicated region
        $region65: #{tpu_custom_call.1} parent=11 // pred_check
          %p542 = pneg %p362
        $region66: #{tpu_custom_call.1} parent=11 // pred_check_branch
          %544 = sbr.rel (%p542) target = $region68
        $region67: #{tpu_custom_call.1} parent=11 // pred_region
          _
        $region68: #{tpu_custom_call.1} parent=11 // pred_fallthru
          _
        // Predicated region
        $region69: #{tpu_custom_call.1} parent=11 // pred_check
          %p545 = pneg %p383
        $region70: #{tpu_custom_call.1} parent=11 // pred_check_branch
          %547 = sbr.rel (%p545) target = $region72
        $region71: #{tpu_custom_call.1} parent=11 // pred_region
          _
        $region72: #{tpu_custom_call.1} parent=11 // pred_fallthru
          _
        // Predicated region
        $region73: #{tpu_custom_call.1} parent=11 // pred_check
          %p548 = pneg %p404
        $region74: #{tpu_custom_call.1} parent=11 // pred_check_branch
          %550 = sbr.rel (%p548) target = $region76
        $region75: #{tpu_custom_call.1} parent=11 // pred_region
          _
        $region76: #{tpu_custom_call.1} parent=11 // pred_fallthru
          _
      $region12: #{tpu_custom_call.1} parent=5 // pred_fallthru
        _
      %p551 = scmp.lt.s32.totalorder %s30, 4
      // Predicated region
      $region77: #{tpu_custom_call.1} parent=5 // pred_check
        %p552 = pneg %p551
      $region78: #{tpu_custom_call.1} parent=5 // pred_check_branch
        %554 = sbr.rel (%p552) target = $region80
      $region79: #{tpu_custom_call.1} parent=5 // pred_region
        // Predicated region
        $region81: #{tpu_custom_call.1} parent=79 // pred_check
          %p555 = pneg %p62
        $region82: #{tpu_custom_call.1} parent=79 // pred_check_branch
          %557 = sbr.rel (%p555) target = $region84
        $region83: #{tpu_custom_call.1} parent=79 // pred_region
          %p558 = scmp.lt.s32.totalorder %s37, 1
          %s559 = scalar_select %p558, %s37, 1
          %s560 = smul.addr %s559, 2
          %s561 = smul.addr %s560, 8
          %s562 = scalar_lea.vmem %s0, %s561
        $region84: #{tpu_custom_call.1} parent=79 // pred_fallthru
          _
      $region80: #{tpu_custom_call.1} parent=5 // pred_fallthru
        _
      %p563 = scmp.le.s32.totalorder 1, %s30
      %p564 = scmp.lt.s32.totalorder %s30, 5
      %p565 = pnand %p563, %p564
      %p566 = pneg %p565
      // Predicated region
      $region85: #{tpu_custom_call.1} parent=5 // pred_check
        _
      $region86: #{tpu_custom_call.1} parent=5 // pred_check_branch
        %568 = sbr.rel (%p565) target = $region88
      $region87: #{tpu_custom_call.1} parent=5 // pred_region
        %s569 = ssub.s32 %s30, 1
        // Predicated region
        $region89: #{tpu_custom_call.1} parent=87 // pred_check
          %p570 = pneg %p110
        $region90: #{tpu_custom_call.1} parent=87 // pred_check_branch
          %572 = sbr.rel (%p570) target = $region92
        $region91: #{tpu_custom_call.1} parent=87 // pred_region
          %573 = dma.done [#allocation6], 16
        $region92: #{tpu_custom_call.1} parent=87 // pred_fallthru
          _
        // Predicated region
        $region93: #{tpu_custom_call.1} parent=87 // pred_check
          %p574 = pneg %p152
        $region94: #{tpu_custom_call.1} parent=87 // pred_check_branch
          %576 = sbr.rel (%p574) target = $region96
        $region95: #{tpu_custom_call.1} parent=87 // pred_region
          %577 = dma.done [#allocation9], 16
        $region96: #{tpu_custom_call.1} parent=87 // pred_fallthru
          _
        // Predicated region
        $region97: #{tpu_custom_call.1} parent=87 // pred_check
          %p578 = pneg %p194
        $region98: #{tpu_custom_call.1} parent=87 // pred_check_branch
          %580 = sbr.rel (%p578) target = $region100
        $region99: #{tpu_custom_call.1} parent=87 // pred_region
          %581 = dma.done [#allocation9], 16
        $region100: #{tpu_custom_call.1} parent=87 // pred_fallthru
          _
        // Predicated region
        $region101: #{tpu_custom_call.1} parent=87 // pred_check
          %p582 = pneg %p236
        $region102: #{tpu_custom_call.1} parent=87 // pred_check_branch
          %584 = sbr.rel (%p582) target = $region104
        $region103: #{tpu_custom_call.1} parent=87 // pred_region
          %585 = dma.done [#allocation12], 16
        $region104: #{tpu_custom_call.1} parent=87 // pred_fallthru
          _
        // Predicated region
        $region105: #{tpu_custom_call.1} parent=87 // pred_check
          %p586 = pneg %p278
        $region106: #{tpu_custom_call.1} parent=87 // pred_check_branch
          %588 = sbr.rel (%p586) target = $region108
        $region107: #{tpu_custom_call.1} parent=87 // pred_region
          %589 = dma.done [#allocation12], 16
        $region108: #{tpu_custom_call.1} parent=87 // pred_fallthru
          _
        // Predicated region
        $region109: #{tpu_custom_call.1} parent=87 // pred_check
          %p590 = pneg %p299
        $region110: #{tpu_custom_call.1} parent=87 // pred_check_branch
          %592 = sbr.rel (%p590) target = $region112
        $region111: #{tpu_custom_call.1} parent=87 // pred_region
          %593 = dma.done [#allocation15], 16
        $region112: #{tpu_custom_call.1} parent=87 // pred_fallthru
          _
        // Predicated region
        $region113: #{tpu_custom_call.1} parent=87 // pred_check
          %p594 = pneg %p320
        $region114: #{tpu_custom_call.1} parent=87 // pred_check_branch
          %596 = sbr.rel (%p594) target = $region116
        $region115: #{tpu_custom_call.1} parent=87 // pred_region
          %597 = dma.done [#allocation15], 16
        $region116: #{tpu_custom_call.1} parent=87 // pred_fallthru
          _
        %p598 = scmp.lt.s32.totalorder %s39, 1
        %s599 = scalar_select %p598, %s39, 1
        %s600 = smul.addr %s599, 2
        %s601 = smul.addr %s600, 8
        %s602 = scalar_lea.vmem %s0, %s601
        %p603 = pneg %p68
        %p604 = pneg %p65
        %p605 = pneg %p89
        %p606 = pneg %p86
        %p607 = pneg %p110
        %p608 = pneg %p107
        %p609 = pneg %p131
        %p610 = pneg %p128
        %p611 = pneg %p152
        %p612 = pneg %p149
        %p613 = pneg %p173
        %p614 = pneg %p170
        %p615 = pneg %p194
        %p616 = pneg %p191
        %p617 = pneg %p215
        %p618 = pneg %p212
        %p619 = pneg %p236
        %p620 = pneg %p233
        %p621 = pneg %p257
        %p622 = pneg %p254
        %p623 = pneg %p278
        %p624 = pneg %p275
        %p625 = pneg %p299
        %p626 = pneg %p296
        %p627 = pneg %p320
        %p628 = pneg %p317
        %p629 = pneg %p341
        %p630 = pneg %p338
        %p631 = pneg %p362
        %p632 = pneg %p359
        %p633 = pneg %p383
        %p634 = pneg %p380
        %p635 = pneg %p404
        %p636 = pneg %p401
        %p637 = pneg %p432
        %p638 = pneg %p429
        %s639 = sand.u32 %s419, 1
        %s640 = scalar_lea.sflag [#allocation7], %s639
        %s641 = sand.u32 %s419, 1
        %s642 = smul.addr %s641, 8
        %s643 = scalar_lea.vmem [#allocation17], %s642
        %p644 = scmp.lt.s32.totalorder %s39, 1
        %s645 = scalar_select %p644, %s39, 1
        %s646 = smul.addr %s645, 2
        %s647 = smul.addr %s646, 8
        %s648 = scalar_lea.vmem %s0, %s647
        %s650 = smul.u32 %s40, 8
        %p651 = scmp.eq.s32.totalorder %s40, 0
        // Predicated region
        $region117: #{tpu_custom_call.1} parent=87 // pred_check
          %p652 = pneg %p651
        $region118: #{tpu_custom_call.1} parent=87 // pred_check_branch
          %654 = sbr.rel (%p652) target = $region120
        $region119: #{tpu_custom_call.1} parent=87 // pred_region
          %v655 = vld [vmem:[%s648] sm:$0xff]
          %v656 = vld [vmem:[%s648 + $0x8] sm:$0xff]
          %v657 = vld [vmem:[%s1] sm:$0x1]
          %v658 = vld [vmem:[#allocation5] sm:$0x1]
          %vm659 = vcmask 261120
          %v660 = vsel %vm659, %v655, 0.0
          %661 = vadd.xlane.f32.xlu0 %v660
          %v662 = vpop.xlane.xlu0 %661
          %v663 = vsel %vm659, %v656, 0.0
          %664 = vadd.xlane.f32.xlu0 %v663
          %v665 = vpop.xlane.xlu0 %664
          %v666 = vrcp.pop 32.0
          %v667 = vmul.f32 %v662, %v666
          %v668 = vmul.f32 %v665, %v666
          %v669 = vsub.f32 %v655, %v667
          %v670 = vsub.f32 %v656, %v668
          %v671 = vmul.f32 %v669, %v669
          %v672 = vmul.f32 %v670, %v670
          %v673 = vsel %vm659, %v671, 0.0
          %674 = vadd.xlane.f32.xlu0 %v673
          %v675 = vpop.xlane.xlu0 %674
          %v676 = vsel %vm659, %v672, 0.0
          %677 = vadd.xlane.f32.xlu0 %v676
          %v678 = vpop.xlane.xlu0 %677
          %v679 = vmul.f32 %v675, %v666
          %v680 = vmul.f32 %v678, %v666
          %v681 = vadd.f32 %v679, 1e-05
          %v682 = vadd.f32 %v680, 1e-05
          %v683 = vrsqrt.pop %v681
          %v684 = vrsqrt.pop %v682
          %v685 = vmul.f32 %v669, %v683
          %v686 = vmul.f32 %v670, %v684
          %v688 = vlaneseq
          %v689 = vshrl.u32 %v688, 7
          %v690 = vsub.s32 0, %v689
          %v691 = vrot.slane %v657, %v690
          %v693 = vmul.f32 %v685, %v691
          %v694 = vmul.f32 %v686, %v691
          %v696 = vlaneseq
          %v697 = vshrl.u32 %v696, 7
          %v698 = vsub.s32 0, %v697
          %v699 = vrot.slane %v658, %v698
          %v701 = vadd.f32 %v693, %v699
          %v702 = vadd.f32 %v694, %v699
          %v703 = vpack.c.bf16 %v702, %v701
          %v704 = vld [vmem:[%s5] sm:$0xf]
          %v705 = vld [vmem:[%s5 + $0x4] sm:$0xf]
          %v706 = vld [vmem:[%s5 + $0x8] sm:$0xf]
          %v707 = vld [vmem:[%s5 + $0xc] sm:$0xf]
          %v708 = vld [vmem:[#allocation10] sm:$0x1]
          %v710 = vlaneseq
          %v711 = vshrl.u32 %v710, 7
          %v712 = vsub.s32 0, %v711
          %v713 = vrot.slane %v708, %v712
          %v719 = vunpack.c.l.b16 %v704
          %v720 = vunpack.c.l.b16 %v705
          %v721 = vunpack.c.l.b16 %v706
          %v722 = vunpack.c.l.b16 %v707
          %v723 = vpack.c.b16 %v720, %v719
          %v724 = vpack.c.b16 %v722, %v721
          %v728 = vsel %vm659, %v703, 0
          %730 = vmatprep.subr.bf16.mxu0 0
          %731 = vmatpush1.bf16.msra.mxu0 %v723
          %732 = vmatprep.subr.bf16.mxu0 0
          %733 = vmatpush1.bf16.msra.mxu0 %v724
          %734 = vmatprep.subr.bf16.mxu0 0
          %735 = vmatpush1.bf16.msra.mxu0 0
          %736 = vmatprep.subr.bf16.mxu0 0
          %737 = vmatpush1.bf16.msra.mxu0 0
          %738 = vmatprep.subr.bf16.mxu0 0
          %739 = vmatpush1.bf16.msra.mxu0 0
          %740 = vmatprep.subr.bf16.mxu0 0
          %741 = vmatpush1.bf16.msra.mxu0 0
          %742 = vmatprep.subr.bf16.mxu0 0
          %743 = vmatpush1.bf16.msra.mxu0 0
          %744 = vmatprep.subr.bf16.mxu0 0
          %745 = vmatpush1.bf16.msra.mxu0 0
          %746 = vmatprep.subr.bf16.mxu0 0
          %747 = vmatpush1.bf16.msra.mxu0 0
          %748 = vmatprep.subr.bf16.mxu0 0
          %749 = vmatpush1.bf16.msra.mxu0 0
          %750 = vmatprep.subr.bf16.mxu0 0
          %751 = vmatpush1.bf16.msra.mxu0 0
          %752 = vmatprep.subr.bf16.mxu0 0
          %753 = vmatpush1.bf16.msra.mxu0 0
          %754 = vmatprep.subr.bf16.mxu0 0
          %755 = vmatpush1.bf16.msra.mxu0 0
          %756 = vmatprep.subr.bf16.mxu0 0
          %757 = vmatpush1.bf16.msra.mxu0 0
          %758 = vmatprep.subr.bf16.mxu0 0
          %759 = vmatpush1.bf16.msra.mxu0 0
          %760 = vmatprep.subr.bf16.mxu0 0
          %761 = vmatpush1.bf16.msra.mxu0 0
          %762 = vmatprep.mubr.bf16.mxu0 0
          %763 = vmatmul.mubr.bf16.gmra.mrb[0].mxu0 %v728
          %v764 = vpop.f32.mrb[0].mxu0
          %v765 = vadd.f32 %v713, %v764
          %v766 = vpop.f32.mrb[0].mxu0
          %v767 = vpop.f32.mrb[0].mxu0
          %v768 = vadd.f32 %v713, %v767
          %v769 = vpop.f32.mrb[0].mxu0
          %770 = vdwg.mxu0
          %v771 = vpack.c.bf16 %v768, %v765
          %772 = vst.msk [vmem:[#allocation2] sm:$0xff] %vm659, %v771
          %v773 = vld [vmem:[%s7] sm:$0xf]
          %v774 = vld [vmem:[%s7 + $0x4] sm:$0xf]
          %v775 = vld [vmem:[%s7 + $0x8] sm:$0xf]
          %v776 = vld [vmem:[%s7 + $0xc] sm:$0xf]
          %v777 = vld [vmem:[#allocation11] sm:$0x1]
          %v779 = vlaneseq
          %v780 = vshrl.u32 %v779, 7
          %v781 = vsub.s32 0, %v780
          %v782 = vrot.slane %v777, %v781
          %v788 = vunpack.c.l.b16 %v773
          %v789 = vunpack.c.l.b16 %v774
          %v790 = vunpack.c.l.b16 %v775
          %v791 = vunpack.c.l.b16 %v776
          %v792 = vpack.c.b16 %v789, %v788
          %v793 = vpack.c.b16 %v791, %v790
          %796 = vmatprep.subr.bf16.mxu0 0
          %797 = vmatpush1.bf16.msra.mxu0 %v792
          %798 = vmatprep.subr.bf16.mxu0 0
          %799 = vmatpush1.bf16.msra.mxu0 %v793
          %800 = vmatprep.subr.bf16.mxu0 0
          %801 = vmatpush1.bf16.msra.mxu0 0
          %802 = vmatprep.subr.bf16.mxu0 0
          %803 = vmatpush1.bf16.msra.mxu0 0
          %804 = vmatprep.subr.bf16.mxu0 0
          %805 = vmatpush1.bf16.msra.mxu0 0
          %806 = vmatprep.subr.bf16.mxu0 0
          %807 = vmatpush1.bf16.msra.mxu0 0
          %808 = vmatprep.subr.bf16.mxu0 0
          %809 = vmatpush1.bf16.msra.mxu0 0
          %810 = vmatprep.subr.bf16.mxu0 0
          %811 = vmatpush1.bf16.msra.mxu0 0
          %812 = vmatprep.subr.bf16.mxu0 0
          %813 = vmatpush1.bf16.msra.mxu0 0
          %814 = vmatprep.subr.bf16.mxu0 0
          %815 = vmatpush1.bf16.msra.mxu0 0
          %816 = vmatprep.subr.bf16.mxu0 0
          %817 = vmatpush1.bf16.msra.mxu0 0
          %818 = vmatprep.subr.bf16.mxu0 0
          %819 = vmatpush1.bf16.msra.mxu0 0
          %820 = vmatprep.subr.bf16.mxu0 0
          %821 = vmatpush1.bf16.msra.mxu0 0
          %822 = vmatprep.subr.bf16.mxu0 0
          %823 = vmatpush1.bf16.msra.mxu0 0
          %824 = vmatprep.subr.bf16.mxu0 0
          %825 = vmatpush1.bf16.msra.mxu0 0
          %826 = vmatprep.subr.bf16.mxu0 0
          %827 = vmatpush1.bf16.msra.mxu0 0
          %828 = vmatprep.mubr.bf16.mxu0 0
          %829 = vmatmul.mubr.bf16.gmra.mrb[0].mxu0 %v728
          %v830 = vpop.f32.mrb[0].mxu0
          %v831 = vadd.f32 %v782, %v830
          %v832 = vpop.f32.mrb[0].mxu0
          %v833 = vpop.f32.mrb[0].mxu0
          %v834 = vadd.f32 %v782, %v833
          %v835 = vpop.f32.mrb[0].mxu0
          %836 = vdwg.mxu0
          %v837 = vpack.c.bf16 %v834, %v831
          %838 = vst.msk [vmem:[#allocation3] sm:$0xff] %vm659, %v837
        $region120: #{tpu_custom_call.1} parent=87 // pred_fallthru
          _
        %s839 = scalar_lea.vmem %s648, %s650
        %v840 = vld [vmem:[%s839] sm:$0xff]
        %v841 = vld [vmem:[%s1] sm:$0x1]
        %v842 = vld [vmem:[#allocation5] sm:$0x1]
        %vm843 = vcmask 261120
        %v844 = vsel %vm843, %v840, 0.0
        %845 = vadd.xlane.f32.xlu0 %v844
        %v846 = vpop.xlane.xlu0 %845
        %v847 = vrcp.pop 32.0
        %v848 = vmul.f32 %v846, %v847
        %v849 = vsub.f32 %v840, %v848
        %v850 = vmul.f32 %v849, %v849
        %v851 = vsel %vm843, %v850, 0.0
        %852 = vadd.xlane.f32.xlu0 %v851
        %v853 = vpop.xlane.xlu0 %852
        %v854 = vmul.f32 %v853, %v847
        %v855 = vadd.f32 %v854, 1e-05
        %v856 = vrsqrt.pop %v855
        %v857 = vmul.f32 %v849, %v856
        %v859 = vlaneseq
        %v860 = vshrl.u32 %v859, 7
        %v861 = vsub.s32 0, %v860
        %v862 = vrot.slane %v841, %v861
        %v864 = vmul.f32 %v857, %v862
        %v866 = vlaneseq
        %v867 = vshrl.u32 %v866, 7
        %v868 = vsub.s32 0, %v867
        %v869 = vrot.slane %v842, %v868
        %v871 = vadd.f32 %v864, %v869
        %v872 = vpack.c.bf16 %v871, %v871
        %v873 = vld [vmem:[%s3] sm:$0xf]
        %v874 = vld [vmem:[%s3 + $0x4] sm:$0xf]
        %v875 = vld [vmem:[%s3 + $0x8] sm:$0xf]
        %v876 = vld [vmem:[%s3 + $0xc] sm:$0xf]
        %v877 = vld [vmem:[#allocation8] sm:$0x1]
        %v879 = vlaneseq
        %v880 = vshrl.u32 %v879, 7
        %v881 = vsub.s32 0, %v880
        %v882 = vrot.slane %v877, %v881
        %v888 = vunpack.c.l.b16 %v873
        %v889 = vunpack.c.l.b16 %v874
        %v890 = vunpack.c.l.b16 %v875
        %v891 = vunpack.c.l.b16 %v876
        %v892 = vpack.c.b16 %v889, %v888
        %v893 = vpack.c.b16 %v891, %v890
        %v897 = vsel %vm843, %v872, 0
        %899 = vmatprep.subr.bf16.mxu0 0
        %900 = vmatpush1.bf16.msra.mxu0 %v892
        %901 = vmatprep.subr.bf16.mxu0 0
        %902 = vmatpush1.bf16.msra.mxu0 %v893
        %903 = vmatprep.subr.bf16.mxu0 0
        %904 = vmatpush1.bf16.msra.mxu0 0
        %905 = vmatprep.subr.bf16.mxu0 0
        %906 = vmatpush1.bf16.msra.mxu0 0
        %907 = vmatprep.subr.bf16.mxu0 0
        %908 = vmatpush1.bf16.msra.mxu0 0
        %909 = vmatprep.subr.bf16.mxu0 0
        %910 = vmatpush1.bf16.msra.mxu0 0
        %911 = vmatprep.subr.bf16.mxu0 0
        %912 = vmatpush1.bf16.msra.mxu0 0
        %913 = vmatprep.subr.bf16.mxu0 0
        %914 = vmatpush1.bf16.msra.mxu0 0
        %915 = vmatprep.subr.bf16.mxu0 0
        %916 = vmatpush1.bf16.msra.mxu0 0
        %917 = vmatprep.subr.bf16.mxu0 0
        %918 = vmatpush1.bf16.msra.mxu0 0
        %919 = vmatprep.subr.bf16.mxu0 0
        %920 = vmatpush1.bf16.msra.mxu0 0
        %921 = vmatprep.subr.bf16.mxu0 0
        %922 = vmatpush1.bf16.msra.mxu0 0
        %923 = vmatprep.subr.bf16.mxu0 0
        %924 = vmatpush1.bf16.msra.mxu0 0
        %925 = vmatprep.subr.bf16.mxu0 0
        %926 = vmatpush1.bf16.msra.mxu0 0
        %927 = vmatprep.subr.bf16.mxu0 0
        %928 = vmatpush1.bf16.msra.mxu0 0
        %929 = vmatprep.subr.bf16.mxu0 0
        %930 = vmatpush1.bf16.msra.mxu0 0
        %931 = vmatprep.mubr.bf16.mxu0 0
        %932 = vmatmul.mubr.bf16.gmra.mrb[0].mxu0 %v897
        %v933 = vpop.f32.mrb[0].mxu0
        %v934 = vadd.f32 %v882, %v933
        %v935 = vpop.f32.mrb[0].mxu0
        %v936 = vpop.f32.mrb[0].mxu0
        %v937 = vpop.f32.mrb[0].mxu0
        %938 = vdwg.mxu0
        %v939 = vpack.c.bf16 %v934, %v934
        %v940 = vld [vmem:[#allocation2] sm:$0xff]
        %v941 = vld [vmem:[#allocation3] sm:$0xff]
        %vm942 = vcmask 64512
        %v944 = vsel %vm942, %v939, 0
        %v947 = vsel %vm942, %v940, 0
        %949 = vmatprep.subr.bf16.mxu0 0
        %950 = vmatpush1.bf16.xpose.msra.mxu0 %v947
        %951 = vmatprep.subr.bf16.mxu0 0
        %952 = vmatpush1.bf16.xpose.msra.mxu0 0
        %953 = vmatprep.subr.bf16.mxu0 0
        %954 = vmatpush1.bf16.xpose.msra.mxu0 0
        %955 = vmatprep.subr.bf16.mxu0 0
        %956 = vmatpush1.bf16.xpose.msra.mxu0 0
        %957 = vmatprep.subr.bf16.mxu0 0
        %958 = vmatpush1.bf16.xpose.msra.mxu0 0
        %959 = vmatprep.subr.bf16.mxu0 0
        %960 = vmatpush1.bf16.xpose.msra.mxu0 0
        %961 = vmatprep.subr.bf16.mxu0 0
        %962 = vmatpush1.bf16.xpose.msra.mxu0 0
        %963 = vmatprep.subr.bf16.mxu0 0
        %964 = vmatpush1.bf16.xpose.msra.mxu0 0
        %965 = vmatprep.subr.bf16.mxu0 0
        %966 = vmatpush1.bf16.xpose.msra.mxu0 0
        %967 = vmatprep.subr.bf16.mxu0 0
        %968 = vmatpush1.bf16.xpose.msra.mxu0 0
        %969 = vmatprep.subr.bf16.mxu0 0
        %970 = vmatpush1.bf16.xpose.msra.mxu0 0
        %971 = vmatprep.subr.bf16.mxu0 0
        %972 = vmatpush1.bf16.xpose.msra.mxu0 0
        %973 = vmatprep.subr.bf16.mxu0 0
        %974 = vmatpush1.bf16.xpose.msra.mxu0 0
        %975 = vmatprep.subr.bf16.mxu0 0
        %976 = vmatpush1.bf16.xpose.msra.mxu0 0
        %977 = vmatprep.subr.bf16.mxu0 0
        %978 = vmatpush1.bf16.xpose.msra.mxu0 0
        %979 = vmatprep.subr.bf16.mxu0 0
        %980 = vmatpush1.bf16.xpose.msra.mxu0 0
        %981 = vmatprep.mubr.bf16.mxu0 0
        %982 = vmatmul.mubr.bf16.gmra.mrb[0].mxu0 %v944
        %v983 = vpop.f32.mrb[0].mxu0
        %v984 = vadd.f32 0.0, %v983
        %v985 = vpop.f32.mrb[0].mxu0
        %v986 = vpop.f32.mrb[0].mxu0
        %v987 = vpop.f32.mrb[0].mxu0
        %988 = vdwg.mxu0
        %vm989 = vcmask 130048
        %v990 = vsel %vm989, %v984, -inf
        %991 = vmax.xlane.f32.xlu0 %v990
        %v992 = vpop.xlane.xlu0 %991
        %v993 = vsub.f32 %v984, %v992
        %v994 = vmul.f32 %v993, 1.442695
        %v995 = vpow.pop %v994
        %v996 = vsel %vm989, %v995, 0.0
        %997 = vadd.xlane.f32.xlu0 %v996
        %v998 = vpop.xlane.xlu0 %997
        %v999 = vrcp.pop %v998
        %v1000 = vmul.f32 %v995, %v999
        %v1001 = vpack.c.bf16 %v1000, %v1000
        %v1003 = vsel %vm989, %v1001, 0
        %1005 = vmatprep.subr.bf16.mxu0 0
        %1006 = vmatpush1.bf16.msra.mxu0 %v941
        %1007 = vmatprep.subr.bf16.mxu0 0
        %1008 = vmatpush1.bf16.msra.mxu0 0
        %1009 = vmatprep.subr.bf16.mxu0 0
        %1010 = vmatpush1.bf16.msra.mxu0 0
        %1011 = vmatprep.subr.bf16.mxu0 0
        %1012 = vmatpush1.bf16.msra.mxu0 0
        %1013 = vmatprep.subr.bf16.mxu0 0
        %1014 = vmatpush1.bf16.msra.mxu0 0
        %1015 = vmatprep.subr.bf16.mxu0 0
        %1016 = vmatpush1.bf16.msra.mxu0 0
        %1017 = vmatprep.subr.bf16.mxu0 0
        %1018 = vmatpush1.bf16.msra.mxu0 0
        %1019 = vmatprep.subr.bf16.mxu0 0
        %1020 = vmatpush1.bf16.msra.mxu0 0
        %1021 = vmatprep.subr.bf16.mxu0 0
        %1022 = vmatpush1.bf16.msra.mxu0 0
        %1023 = vmatprep.subr.bf16.mxu0 0
        %1024 = vmatpush1.bf16.msra.mxu0 0
        %1025 = vmatprep.subr.bf16.mxu0 0
        %1026 = vmatpush1.bf16.msra.mxu0 0
        %1027 = vmatprep.subr.bf16.mxu0 0
        %1028 = vmatpush1.bf16.msra.mxu0 0
        %1029 = vmatprep.subr.bf16.mxu0 0
        %1030 = vmatpush1.bf16.msra.mxu0 0
        %1031 = vmatprep.subr.bf16.mxu0 0
        %1032 = vmatpush1.bf16.msra.mxu0 0
        %1033 = vmatprep.subr.bf16.mxu0 0
        %1034 = vmatpush1.bf16.msra.mxu0 0
        %1035 = vmatprep.subr.bf16.mxu0 0
        %1036 = vmatpush1.bf16.msra.mxu0 0
        %1037 = vmatprep.mubr.bf16.mxu0 0
        %1038 = vmatmul.mubr.bf16.gmra.mrb[0].mxu0 %v1003
        %v1039 = vpop.f32.mrb[0].mxu0
        %v1040 = vadd.f32 0.0, %v1039
        %v1041 = vpop.f32.mrb[0].mxu0
        %v1042 = vpop.f32.mrb[0].mxu0
        %v1043 = vpop.f32.mrb[0].mxu0
        %1044 = vdwg.mxu0
        %1045 = vst.msk [vmem:[#allocation4] sm:$0xff] %vm942, %v1040
        %1047 = vrot.lane.b32.xlu0 %v939, 120
        %v1048 = vpop.permute.xlu0 %1047
        %1050 = vrot.lane.b32.xlu0 %v940, 120
        %v1051 = vpop.permute.xlu0 %1050
        %v1053 = vsel %vm942, %v1048, 0
        %v1056 = vsel %vm942, %v1051, 0
        %1058 = vmatprep.subr.bf16.mxu0 0
        %1059 = vmatpush1.bf16.xpose.msra.mxu0 %v1056
        %1060 = vmatprep.subr.bf16.mxu0 0
        %1061 = vmatpush1.bf16.xpose.msra.mxu0 0
        %1062 = vmatprep.subr.bf16.mxu0 0
        %1063 = vmatpush1.bf16.xpose.msra.mxu0 0
        %1064 = vmatprep.subr.bf16.mxu0 0
        %1065 = vmatpush1.bf16.xpose.msra.mxu0 0
        %1066 = vmatprep.subr.bf16.mxu0 0
        %1067 = vmatpush1.bf16.xpose.msra.mxu0 0
        %1068 = vmatprep.subr.bf16.mxu0 0
        %1069 = vmatpush1.bf16.xpose.msra.mxu0 0
        %1070 = vmatprep.subr.bf16.mxu0 0
        %1071 = vmatpush1.bf16.xpose.msra.mxu0 0
        %1072 = vmatprep.subr.bf16.mxu0 0
        %1073 = vmatpush1.bf16.xpose.msra.mxu0 0
        %1074 = vmatprep.subr.bf16.mxu0 0
        %1075 = vmatpush1.bf16.xpose.msra.mxu0 0
        %1076 = vmatprep.subr.bf16.mxu0 0
        %1077 = vmatpush1.bf16.xpose.msra.mxu0 0
        %1078 = vmatprep.subr.bf16.mxu0 0
        %1079 = vmatpush1.bf16.xpose.msra.mxu0 0
        %1080 = vmatprep.subr.bf16.mxu0 0
        %1081 = vmatpush1.bf16.xpose.msra.mxu0 0
        %1082 = vmatprep.subr.bf16.mxu0 0
        %1083 = vmatpush1.bf16.xpose.msra.mxu0 0
        %1084 = vmatprep.subr.bf16.mxu0 0
        %1085 = vmatpush1.bf16.xpose.msra.mxu0 0
        %1086 = vmatprep.subr.bf16.mxu0 0
        %1087 = vmatpush1.bf16.xpose.msra.mxu0 0
        %1088 = vmatprep.subr.bf16.mxu0 0
        %1089 = vmatpush1.bf16.xpose.msra.mxu0 0
        %1090 = vmatprep.mubr.bf16.mxu0 0
        %1091 = vmatmul.mubr.bf16.gmra.mrb[0].mxu0 %v1053
        %v1092 = vpop.f32.mrb[0].mxu0
        %v1093 = vadd.f32 0.0, %v1092
        %v1094 = vpop.f32.mrb[0].mxu0
        %v1095 = vpop.f32.mrb[0].mxu0
        %v1096 = vpop.f32.mrb[0].mxu0
        %1097 = vdwg.mxu0
        %v1098 = vsel %vm989, %v1093, -inf
        %1099 = vmax.xlane.f32.xlu0 %v1098
        %v1100 = vpop.xlane.xlu0 %1099
        %v1101 = vsub.f32 %v1093, %v1100
        %v1102 = vmul.f32 %v1101, 1.442695
        %v1103 = vpow.pop %v1102
        %v1104 = vsel %vm989, %v1103, 0.0
        %1105 = vadd.xlane.f32.xlu0 %v1104
        %v1106 = vpop.xlane.xlu0 %1105
        %v1107 = vrcp.pop %v1106
        %v1108 = vmul.f32 %v1103, %v1107
        %v1109 = vpack.c.bf16 %v1108, %v1108
        %1111 = vrot.lane.b32.xlu0 %v941, 120
        %v1112 = vpop.permute.xlu0 %1111
        %v1115 = vsel %vm989, %v1109, 0
        %1117 = vmatprep.subr.bf16.mxu0 0
        %1118 = vmatpush1.bf16.msra.mxu0 %v1112
        %1119 = vmatprep.subr.bf16.mxu0 0
        %1120 = vmatpush1.bf16.msra.mxu0 0
        %1121 = vmatprep.subr.bf16.mxu0 0
        %1122 = vmatpush1.bf16.msra.mxu0 0
        %1123 = vmatprep.subr.bf16.mxu0 0
        %1124 = vmatpush1.bf16.msra.mxu0 0
        %1125 = vmatprep.subr.bf16.mxu0 0
        %1126 = vmatpush1.bf16.msra.mxu0 0
        %1127 = vmatprep.subr.bf16.mxu0 0
        %1128 = vmatpush1.bf16.msra.mxu0 0
        %1129 = vmatprep.subr.bf16.mxu0 0
        %1130 = vmatpush1.bf16.msra.mxu0 0
        %1131 = vmatprep.subr.bf16.mxu0 0
        %1132 = vmatpush1.bf16.msra.mxu0 0
        %1133 = vmatprep.subr.bf16.mxu0 0
        %1134 = vmatpush1.bf16.msra.mxu0 0
        %1135 = vmatprep.subr.bf16.mxu0 0
        %1136 = vmatpush1.bf16.msra.mxu0 0
        %1137 = vmatprep.subr.bf16.mxu0 0
        %1138 = vmatpush1.bf16.msra.mxu0 0
        %1139 = vmatprep.subr.bf16.mxu0 0
        %1140 = vmatpush1.bf16.msra.mxu0 0
        %1141 = vmatprep.subr.bf16.mxu0 0
        %1142 = vmatpush1.bf16.msra.mxu0 0
        %1143 = vmatprep.subr.bf16.mxu0 0
        %1144 = vmatpush1.bf16.msra.mxu0 0
        %1145 = vmatprep.subr.bf16.mxu0 0
        %1146 = vmatpush1.bf16.msra.mxu0 0
        %1147 = vmatprep.subr.bf16.mxu0 0
        %1148 = vmatpush1.bf16.msra.mxu0 0
        %1149 = vmatprep.mubr.bf16.mxu0 0
        %1150 = vmatmul.mubr.bf16.gmra.mrb[0].mxu0 %v1115
        %v1151 = vpop.f32.mrb[0].mxu0
        %v1152 = vadd.f32 0.0, %v1151
        %v1153 = vpop.f32.mrb[0].mxu0
        %v1154 = vpop.f32.mrb[0].mxu0
        %v1155 = vpop.f32.mrb[0].mxu0
        %1156 = vdwg.mxu0
        %1158 = vrot.lane.b32.xlu0 %v1152, 8
        %v1159 = vpop.permute.xlu0 %1158
        %vm1161 = vcmask 130112
        %1162 = vst.msk [vmem:[#allocation4] sm:$0xff] %vm1161, %v1159
        %1163 = vrot.lane.b32.xlu0 %v939, 112
        %v1164 = vpop.permute.xlu0 %1163
        %1165 = vrot.lane.b32.xlu0 %v940, 112
        %v1166 = vpop.permute.xlu0 %1165
        %v1168 = vsel %vm942, %v1164, 0
        %v1171 = vsel %vm942, %v1166, 0
        %1173 = vmatprep.subr.bf16.mxu0 0
        %1174 = vmatpush1.bf16.xpose.msra.mxu0 %v1171
        %1175 = vmatprep.subr.bf16.mxu0 0
        %1176 = vmatpush1.bf16.xpose.msra.mxu0 0
        %1177 = vmatprep.subr.bf16.mxu0 0
        %1178 = vmatpush1.bf16.xpose.msra.mxu0 0
        %1179 = vmatprep.subr.bf16.mxu0 0
        %1180 = vmatpush1.bf16.xpose.msra.mxu0 0
        %1181 = vmatprep.subr.bf16.mxu0 0
        %1182 = vmatpush1.bf16.xpose.msra.mxu0 0
        %1183 = vmatprep.subr.bf16.mxu0 0
        %1184 = vmatpush1.bf16.xpose.msra.mxu0 0
        %1185 = vmatprep.subr.bf16.mxu0 0
        %1186 = vmatpush1.bf16.xpose.msra.mxu0 0
        %1187 = vmatprep.subr.bf16.mxu0 0
        %1188 = vmatpush1.bf16.xpose.msra.mxu0 0
        %1189 = vmatprep.subr.bf16.mxu0 0
        %1190 = vmatpush1.bf16.xpose.msra.mxu0 0
        %1191 = vmatprep.subr.bf16.mxu0 0
        %1192 = vmatpush1.bf16.xpose.msra.mxu0 0
        %1193 = vmatprep.subr.bf16.mxu0 0
        %1194 = vmatpush1.bf16.xpose.msra.mxu0 0
        %1195 = vmatprep.subr.bf16.mxu0 0
        %1196 = vmatpush1.bf16.xpose.msra.mxu0 0
        %1197 = vmatprep.subr.bf16.mxu0 0
        %1198 = vmatpush1.bf16.xpose.msra.mxu0 0
        %1199 = vmatprep.subr.bf16.mxu0 0
        %1200 = vmatpush1.bf16.xpose.msra.mxu0 0
        %1201 = vmatprep.subr.bf16.mxu0 0
        %1202 = vmatpush1.bf16.xpose.msra.mxu0 0
        %1203 = vmatprep.subr.bf16.mxu0 0
        %1204 = vmatpush1.bf16.xpose.msra.mxu0 0
        %1205 = vmatprep.mubr.bf16.mxu0 0
        %1206 = vmatmul.mubr.bf16.gmra.mrb[0].mxu0 %v1168
        %v1207 = vpop.f32.mrb[0].mxu0
        %v1208 = vadd.f32 0.0, %v1207
        %v1209 = vpop.f32.mrb[0].mxu0
        %v1210 = vpop.f32.mrb[0].mxu0
        %v1211 = vpop.f32.mrb[0].mxu0
        %1212 = vdwg.mxu0
        %v1213 = vsel %vm989, %v1208, -inf
        %1214 = vmax.xlane.f32.xlu0 %v1213
        %v1215 = vpop.xlane.xlu0 %1214
        %v1216 = vsub.f32 %v1208, %v1215
        %v1217 = vmul.f32 %v1216, 1.442695
        %v1218 = vpow.pop %v1217
        %v1219 = vsel %vm989, %v1218, 0.0
        %1220 = vadd.xlane.f32.xlu0 %v1219
        %v1221 = vpop.xlane.xlu0 %1220
        %v1222 = vrcp.pop %v1221
        %v1223 = vmul.f32 %v1218, %v1222
        %v1224 = vpack.c.bf16 %v1223, %v1223
        %1225 = vrot.lane.b32.xlu0 %v941, 112
        %v1226 = vpop.permute.xlu0 %1225
        %v1229 = vsel %vm989, %v1224, 0
        %1231 = vmatprep.subr.bf16.mxu0 0
        %1232 = vmatpush1.bf16.msra.mxu0 %v1226
        %1233 = vmatprep.subr.bf16.mxu0 0
        %1234 = vmatpush1.bf16.msra.mxu0 0
        %1235 = vmatprep.subr.bf16.mxu0 0
        %1236 = vmatpush1.bf16.msra.mxu0 0
        %1237 = vmatprep.subr.bf16.mxu0 0
        %1238 = vmatpush1.bf16.msra.mxu0 0
        %1239 = vmatprep.subr.bf16.mxu0 0
        %1240 = vmatpush1.bf16.msra.mxu0 0
        %1241 = vmatprep.subr.bf16.mxu0 0
        %1242 = vmatpush1.bf16.msra.mxu0 0
        %1243 = vmatprep.subr.bf16.mxu0 0
        %1244 = vmatpush1.bf16.msra.mxu0 0
        %1245 = vmatprep.subr.bf16.mxu0 0
        %1246 = vmatpush1.bf16.msra.mxu0 0
        %1247 = vmatprep.subr.bf16.mxu0 0
        %1248 = vmatpush1.bf16.msra.mxu0 0
        %1249 = vmatprep.subr.bf16.mxu0 0
        %1250 = vmatpush1.bf16.msra.mxu0 0
        %1251 = vmatprep.subr.bf16.mxu0 0
        %1252 = vmatpush1.bf16.msra.mxu0 0
        %1253 = vmatprep.subr.bf16.mxu0 0
        %1254 = vmatpush1.bf16.msra.mxu0 0
        %1255 = vmatprep.subr.bf16.mxu0 0
        %1256 = vmatpush1.bf16.msra.mxu0 0
        %1257 = vmatprep.subr.bf16.mxu0 0
        %1258 = vmatpush1.bf16.msra.mxu0 0
        %1259 = vmatprep.subr.bf16.mxu0 0
        %1260 = vmatpush1.bf16.msra.mxu0 0
        %1261 = vmatprep.subr.bf16.mxu0 0
        %1262 = vmatpush1.bf16.msra.mxu0 0
        %1263 = vmatprep.mubr.bf16.mxu0 0
        %1264 = vmatmul.mubr.bf16.gmra.mrb[0].mxu0 %v1229
        %v1265 = vpop.f32.mrb[0].mxu0
        %v1266 = vadd.f32 0.0, %v1265
        %v1267 = vpop.f32.mrb[0].mxu0
        %v1268 = vpop.f32.mrb[0].mxu0
        %v1269 = vpop.f32.mrb[0].mxu0
        %1270 = vdwg.mxu0
        %1272 = vrot.lane.b32.xlu0 %v1266, 16
        %v1273 = vpop.permute.xlu0 %1272
        %vm1275 = vcmask 195712
        %1276 = vst.msk [vmem:[#allocation4] sm:$0xff] %vm1275, %v1273
        %1277 = vrot.lane.b32.xlu0 %v939, 104
        %v1278 = vpop.permute.xlu0 %1277
        %1279 = vrot.lane.b32.xlu0 %v940, 104
        %v1280 = vpop.permute.xlu0 %1279
        %v1282 = vsel %vm942, %v1278, 0
        %v1285 = vsel %vm942, %v1280, 0
        %1287 = vmatprep.subr.bf16.mxu0 0
        %1288 = vmatpush1.bf16.xpose.msra.mxu0 %v1285
        %1289 = vmatprep.subr.bf16.mxu0 0
        %1290 = vmatpush1.bf16.xpose.msra.mxu0 0
        %1291 = vmatprep.subr.bf16.mxu0 0
        %1292 = vmatpush1.bf16.xpose.msra.mxu0 0
        %1293 = vmatprep.subr.bf16.mxu0 0
        %1294 = vmatpush1.bf16.xpose.msra.mxu0 0
        %1295 = vmatprep.subr.bf16.mxu0 0
        %1296 = vmatpush1.bf16.xpose.msra.mxu0 0
        %1297 = vmatprep.subr.bf16.mxu0 0
        %1298 = vmatpush1.bf16.xpose.msra.mxu0 0
        %1299 = vmatprep.subr.bf16.mxu0 0
        %1300 = vmatpush1.bf16.xpose.msra.mxu0 0
        %1301 = vmatprep.subr.bf16.mxu0 0
        %1302 = vmatpush1.bf16.xpose.msra.mxu0 0
        %1303 = vmatprep.subr.bf16.mxu0 0
        %1304 = vmatpush1.bf16.xpose.msra.mxu0 0
        %1305 = vmatprep.subr.bf16.mxu0 0
        %1306 = vmatpush1.bf16.xpose.msra.mxu0 0
        %1307 = vmatprep.subr.bf16.mxu0 0
        %1308 = vmatpush1.bf16.xpose.msra.mxu0 0
        %1309 = vmatprep.subr.bf16.mxu0 0
        %1310 = vmatpush1.bf16.xpose.msra.mxu0 0
        %1311 = vmatprep.subr.bf16.mxu0 0
        %1312 = vmatpush1.bf16.xpose.msra.mxu0 0
        %1313 = vmatprep.subr.bf16.mxu0 0
        %1314 = vmatpush1.bf16.xpose.msra.mxu0 0
        %1315 = vmatprep.subr.bf16.mxu0 0
        %1316 = vmatpush1.bf16.xpose.msra.mxu0 0
        %1317 = vmatprep.subr.bf16.mxu0 0
        %1318 = vmatpush1.bf16.xpose.msra.mxu0 0
        %1319 = vmatprep.mubr.bf16.mxu0 0
        %1320 = vmatmul.mubr.bf16.gmra.mrb[0].mxu0 %v1282
        %v1321 = vpop.f32.mrb[0].mxu0
        %v1322 = vadd.f32 0.0, %v1321
        %v1323 = vpop.f32.mrb[0].mxu0
        %v1324 = vpop.f32.mrb[0].mxu0
        %v1325 = vpop.f32.mrb[0].mxu0
        %1326 = vdwg.mxu0
        %v1327 = vsel %vm989, %v1322, -inf
        %1328 = vmax.xlane.f32.xlu0 %v1327
        %v1329 = vpop.xlane.xlu0 %1328
        %v1330 = vsub.f32 %v1322, %v1329
        %v1331 = vmul.f32 %v1330, 1.442695
        %v1332 = vpow.pop %v1331
        %v1333 = vsel %vm989, %v1332, 0.0
        %1334 = vadd.xlane.f32.xlu0 %v1333
        %v1335 = vpop.xlane.xlu0 %1334
        %v1336 = vrcp.pop %v1335
        %v1337 = vmul.f32 %v1332, %v1336
        %v1338 = vpack.c.bf16 %v1337, %v1337
        %1339 = vrot.lane.b32.xlu0 %v941, 104
        %v1340 = vpop.permute.xlu0 %1339
        %v1343 = vsel %vm989, %v1338, 0
        %1345 = vmatprep.subr.bf16.mxu0 0
        %1346 = vmatpush1.bf16.msra.mxu0 %v1340
        %1347 = vmatprep.subr.bf16.mxu0 0
        %1348 = vmatpush1.bf16.msra.mxu0 0
        %1349 = vmatprep.subr.bf16.mxu0 0
        %1350 = vmatpush1.bf16.msra.mxu0 0
        %1351 = vmatprep.subr.bf16.mxu0 0
        %1352 = vmatpush1.bf16.msra.mxu0 0
        %1353 = vmatprep.subr.bf16.mxu0 0
        %1354 = vmatpush1.bf16.msra.mxu0 0
        %1355 = vmatprep.subr.bf16.mxu0 0
        %1356 = vmatpush1.bf16.msra.mxu0 0
        %1357 = vmatprep.subr.bf16.mxu0 0
        %1358 = vmatpush1.bf16.msra.mxu0 0
        %1359 = vmatprep.subr.bf16.mxu0 0
        %1360 = vmatpush1.bf16.msra.mxu0 0
        %1361 = vmatprep.subr.bf16.mxu0 0
        %1362 = vmatpush1.bf16.msra.mxu0 0
        %1363 = vmatprep.subr.bf16.mxu0 0
        %1364 = vmatpush1.bf16.msra.mxu0 0
        %1365 = vmatprep.subr.bf16.mxu0 0
        %1366 = vmatpush1.bf16.msra.mxu0 0
        %1367 = vmatprep.subr.bf16.mxu0 0
        %1368 = vmatpush1.bf16.msra.mxu0 0
        %1369 = vmatprep.subr.bf16.mxu0 0
        %1370 = vmatpush1.bf16.msra.mxu0 0
        %1371 = vmatprep.subr.bf16.mxu0 0
        %1372 = vmatpush1.bf16.msra.mxu0 0
        %1373 = vmatprep.subr.bf16.mxu0 0
        %1374 = vmatpush1.bf16.msra.mxu0 0
        %1375 = vmatprep.subr.bf16.mxu0 0
        %1376 = vmatpush1.bf16.msra.mxu0 0
        %1377 = vmatprep.mubr.bf16.mxu0 0
        %1378 = vmatmul.mubr.bf16.gmra.mrb[0].mxu0 %v1343
        %v1379 = vpop.f32.mrb[0].mxu0
        %v1380 = vadd.f32 0.0, %v1379
        %v1381 = vpop.f32.mrb[0].mxu0
        %v1382 = vpop.f32.mrb[0].mxu0
        %v1383 = vpop.f32.mrb[0].mxu0
        %1384 = vdwg.mxu0
        %1386 = vrot.lane.b32.xlu0 %v1380, 24
        %v1387 = vpop.permute.xlu0 %1386
        %vm1389 = vcmask 261312
        %1390 = vst.msk [vmem:[#allocation4] sm:$0xff] %vm1389, %v1387
        %v1391 = vld [vmem:[#allocation4] sm:$0xff]
        %v1392 = vpack.c.bf16 %v1391, %v1391
        %v1393 = vld [vmem:[%s9] sm:$0xf]
        %v1394 = vld [vmem:[%s9 + $0x4] sm:$0xf]
        %v1395 = vld [vmem:[%s9 + $0x8] sm:$0xf]
        %v1396 = vld [vmem:[%s9 + $0xc] sm:$0xf]
        %v1397 = vld [vmem:[#allocation13] sm:$0x1]
        %v1399 = vlaneseq
        %v1400 = vshrl.u32 %v1399, 7
        %v1401 = vsub.s32 0, %v1400
        %v1402 = vrot.slane %v1397, %v1401
        %v1408 = vunpack.c.l.b16 %v1393
        %v1409 = vunpack.c.l.b16 %v1394
        %v1410 = vunpack.c.l.b16 %v1395
        %v1411 = vunpack.c.l.b16 %v1396
        %v1412 = vpack.c.b16 %v1409, %v1408
        %v1413 = vpack.c.b16 %v1411, %v1410
        %v1417 = vsel %vm843, %v1392, 0
        %1419 = vmatprep.subr.bf16.mxu0 0
        %1420 = vmatpush1.bf16.msra.mxu0 %v1412
        %1421 = vmatprep.subr.bf16.mxu0 0
        %1422 = vmatpush1.bf16.msra.mxu0 %v1413
        %1423 = vmatprep.subr.bf16.mxu0 0
        %1424 = vmatpush1.bf16.msra.mxu0 0
        %1425 = vmatprep.subr.bf16.mxu0 0
        %1426 = vmatpush1.bf16.msra.mxu0 0
        %1427 = vmatprep.subr.bf16.mxu0 0
        %1428 = vmatpush1.bf16.msra.mxu0 0
        %1429 = vmatprep.subr.bf16.mxu0 0
        %1430 = vmatpush1.bf16.msra.mxu0 0
        %1431 = vmatprep.subr.bf16.mxu0 0
        %1432 = vmatpush1.bf16.msra.mxu0 0
        %1433 = vmatprep.subr.bf16.mxu0 0
        %1434 = vmatpush1.bf16.msra.mxu0 0
        %1435 = vmatprep.subr.bf16.mxu0 0
        %1436 = vmatpush1.bf16.msra.mxu0 0
        %1437 = vmatprep.subr.bf16.mxu0 0
        %1438 = vmatpush1.bf16.msra.mxu0 0
        %1439 = vmatprep.subr.bf16.mxu0 0
        %1440 = vmatpush1.bf16.msra.mxu0 0
        %1441 = vmatprep.subr.bf16.mxu0 0
        %1442 = vmatpush1.bf16.msra.mxu0 0
        %1443 = vmatprep.subr.bf16.mxu0 0
        %1444 = vmatpush1.bf16.msra.mxu0 0
        %1445 = vmatprep.subr.bf16.mxu0 0
        %1446 = vmatpush1.bf16.msra.mxu0 0
        %1447 = vmatprep.subr.bf16.mxu0 0
        %1448 = vmatpush1.bf16.msra.mxu0 0
        %1449 = vmatprep.subr.bf16.mxu0 0
        %1450 = vmatpush1.bf16.msra.mxu0 0
        %1451 = vmatprep.mubr.bf16.mxu0 0
        %1452 = vmatmul.mubr.bf16.gmra.mrb[0].mxu0 %v1417
        %v1453 = vpop.f32.mrb[0].mxu0
        %v1454 = vadd.f32 %v1402, %v1453
        %v1455 = vpop.f32.mrb[0].mxu0
        %v1456 = vpop.f32.mrb[0].mxu0
        %v1457 = vpop.f32.mrb[0].mxu0
        %1458 = vdwg.mxu0
        %v1459 = vadd.f32 %v840, %v1454
        %v1460 = vld [vmem:[#allocation14] sm:$0x1]
        %v1461 = vld [vmem:[#allocation16] sm:$0x1]
        %v1462 = vsel %vm843, %v1459, 0.0
        %1463 = vadd.xlane.f32.xlu0 %v1462
        %v1464 = vpop.xlane.xlu0 %1463
        %v1465 = vmul.f32 %v1464, %v847
        %v1466 = vsub.f32 %v1459, %v1465
        %v1467 = vmul.f32 %v1466, %v1466
        %v1468 = vsel %vm843, %v1467, 0.0
        %1469 = vadd.xlane.f32.xlu0 %v1468
        %v1470 = vpop.xlane.xlu0 %1469
        %v1471 = vmul.f32 %v1470, %v847
        %v1472 = vadd.f32 %v1471, 1e-05
        %v1473 = vrsqrt.pop %v1472
        %v1474 = vmul.f32 %v1466, %v1473
        %v1476 = vlaneseq
        %v1477 = vshrl.u32 %v1476, 7
        %v1478 = vsub.s32 0, %v1477
        %v1479 = vrot.slane %v1460, %v1478
        %v1481 = vmul.f32 %v1474, %v1479
        %v1483 = vlaneseq
        %v1484 = vshrl.u32 %v1483, 7
        %v1485 = vsub.s32 0, %v1484
        %v1486 = vrot.slane %v1461, %v1485
        %v1488 = vadd.f32 %v1481, %v1486
        %v1489 = vpack.c.bf16 %v1488, %v1488
        %v1490 = vld [vmem:[%s13] sm:$0xf]
        %v1491 = vld [vmem:[%s13 + $0x4] sm:$0xf]
        %v1492 = vld [vmem:[%s13 + $0x8] sm:$0xf]
        %v1493 = vld [vmem:[%s13 + $0xc] sm:$0xf]
        %v1494 = vld [vmem:[%s14] sm:$0x1]
        %v1496 = vlaneseq
        %v1497 = vshrl.u32 %v1496, 7
        %v1498 = vsub.s32 0, %v1497
        %v1499 = vrot.slane %v1494, %v1498
        %v1505 = vunpack.c.l.b16 %v1490
        %v1506 = vunpack.c.l.b16 %v1491
        %v1507 = vunpack.c.l.b16 %v1492
        %v1508 = vunpack.c.l.b16 %v1493
        %v1509 = vpack.c.b16 %v1506, %v1505
        %v1510 = vpack.c.b16 %v1508, %v1507
        %v1514 = vsel %vm843, %v1489, 0
        %1516 = vmatprep.subr.bf16.mxu0 0
        %1517 = vmatpush1.bf16.msra.mxu0 %v1509
        %1518 = vmatprep.subr.bf16.mxu0 0
        %1519 = vmatpush1.bf16.msra.mxu0 %v1510
        %1520 = vmatprep.subr.bf16.mxu0 0
        %1521 = vmatpush1.bf16.msra.mxu0 0
        %1522 = vmatprep.subr.bf16.mxu0 0
        %1523 = vmatpush1.bf16.msra.mxu0 0
        %1524 = vmatprep.subr.bf16.mxu0 0
        %1525 = vmatpush1.bf16.msra.mxu0 0
        %1526 = vmatprep.subr.bf16.mxu0 0
        %1527 = vmatpush1.bf16.msra.mxu0 0
        %1528 = vmatprep.subr.bf16.mxu0 0
        %1529 = vmatpush1.bf16.msra.mxu0 0
        %1530 = vmatprep.subr.bf16.mxu0 0
        %1531 = vmatpush1.bf16.msra.mxu0 0
        %1532 = vmatprep.subr.bf16.mxu0 0
        %1533 = vmatpush1.bf16.msra.mxu0 0
        %1534 = vmatprep.subr.bf16.mxu0 0
        %1535 = vmatpush1.bf16.msra.mxu0 0
        %1536 = vmatprep.subr.bf16.mxu0 0
        %1537 = vmatpush1.bf16.msra.mxu0 0
        %1538 = vmatprep.subr.bf16.mxu0 0
        %1539 = vmatpush1.bf16.msra.mxu0 0
        %1540 = vmatprep.subr.bf16.mxu0 0
        %1541 = vmatpush1.bf16.msra.mxu0 0
        %1542 = vmatprep.subr.bf16.mxu0 0
        %1543 = vmatpush1.bf16.msra.mxu0 0
        %1544 = vmatprep.subr.bf16.mxu0 0
        %1545 = vmatpush1.bf16.msra.mxu0 0
        %1546 = vmatprep.subr.bf16.mxu0 0
        %1547 = vmatpush1.bf16.msra.mxu0 0
        %1548 = vmatprep.mubr.bf16.mxu0 0
        %1549 = vmatmul.mubr.bf16.gmra.mrb[0].mxu0 %v1514
        %v1550 = vpop.f32.mrb[0].mxu0
        %v1551 = vadd.f32 %v1499, %v1550
        %v1552 = vpop.f32.mrb[0].mxu0
        %v1553 = vpop.f32.mrb[0].mxu0
        %v1554 = vpop.f32.mrb[0].mxu0
        %1555 = vdwg.mxu0
        %v1556 = vmul.f32 %v1551, 1.702
        %v1557 = vxor.u32 %v1556, 2147483648
        %v1558 = vmul.f32 %v1557, 1.442695
        %v1559 = vpow.pop %v1558
        %v1560 = vadd.f32 %v1559, 1.0
        %v1561 = vrcp.pop %v1560
        %v1562 = vmul.f32 1.0, %v1561
        %v1563 = vmul.f32 %v1551, %v1562
        %v1564 = vpack.c.bf16 %v1563, %v1563
        %v1565 = vld [vmem:[%s15] sm:$0xf]
        %v1566 = vld [vmem:[%s15 + $0x4] sm:$0xf]
        %v1567 = vld [vmem:[%s15 + $0x8] sm:$0xf]
        %v1568 = vld [vmem:[%s15 + $0xc] sm:$0xf]
        %v1569 = vld [vmem:[%s15 + $0x10] sm:$0xf]
        %v1570 = vld [vmem:[%s15 + $0x14] sm:$0xf]
        %v1571 = vld [vmem:[%s15 + $0x18] sm:$0xf]
        %v1572 = vld [vmem:[%s15 + $0x1c] sm:$0xf]
        %v1573 = vld [vmem:[%s15 + $0x20] sm:$0xf]
        %v1574 = vld [vmem:[%s15 + $0x24] sm:$0xf]
        %v1575 = vld [vmem:[%s15 + $0x28] sm:$0xf]
        %v1576 = vld [vmem:[%s15 + $0x2c] sm:$0xf]
        %v1577 = vld [vmem:[%s15 + $0x30] sm:$0xf]
        %v1578 = vld [vmem:[%s15 + $0x34] sm:$0xf]
        %v1579 = vld [vmem:[%s15 + $0x38] sm:$0xf]
        %v1580 = vld [vmem:[%s15 + $0x3c] sm:$0xf]
        %v1581 = vld [vmem:[%s16] sm:$0x1]
        %v1583 = vlaneseq
        %v1584 = vshrl.u32 %v1583, 7
        %v1585 = vsub.s32 0, %v1584
        %v1586 = vrot.slane %v1581, %v1585
        %v1604 = vunpack.c.l.b16 %v1565
        %v1605 = vunpack.c.l.b16 %v1566
        %v1606 = vunpack.c.l.b16 %v1567
        %v1607 = vunpack.c.l.b16 %v1568
        %v1608 = vunpack.c.l.b16 %v1569
        %v1609 = vunpack.c.l.b16 %v1570
        %v1610 = vunpack.c.l.b16 %v1571
        %v1611 = vunpack.c.l.b16 %v1572
        %v1612 = vunpack.c.l.b16 %v1573
        %v1613 = vunpack.c.l.b16 %v1574
        %v1614 = vunpack.c.l.b16 %v1575
        %v1615 = vunpack.c.l.b16 %v1576
        %v1616 = vunpack.c.l.b16 %v1577
        %v1617 = vunpack.c.l.b16 %v1578
        %v1618 = vunpack.c.l.b16 %v1579
        %v1619 = vunpack.c.l.b16 %v1580
        %v1620 = vpack.c.b16 %v1605, %v1604
        %v1621 = vpack.c.b16 %v1607, %v1606
        %v1622 = vpack.c.b16 %v1609, %v1608
        %v1623 = vpack.c.b16 %v1611, %v1610
        %v1624 = vpack.c.b16 %v1613, %v1612
        %v1625 = vpack.c.b16 %v1615, %v1614
        %v1626 = vpack.c.b16 %v1617, %v1616
        %v1627 = vpack.c.b16 %v1619, %v1618
        %1636 = vmatprep.subr.bf16.mxu0 0
        %1637 = vmatpush1.bf16.msra.mxu0 %v1620
        %1638 = vmatprep.subr.bf16.mxu0 0
        %1639 = vmatpush1.bf16.msra.mxu0 %v1621
        %1640 = vmatprep.subr.bf16.mxu0 0
        %1641 = vmatpush1.bf16.msra.mxu0 %v1622
        %1642 = vmatprep.subr.bf16.mxu0 0
        %1643 = vmatpush1.bf16.msra.mxu0 %v1623
        %1644 = vmatprep.subr.bf16.mxu0 0
        %1645 = vmatpush1.bf16.msra.mxu0 %v1624
        %1646 = vmatprep.subr.bf16.mxu0 0
        %1647 = vmatpush1.bf16.msra.mxu0 %v1625
        %1648 = vmatprep.subr.bf16.mxu0 0
        %1649 = vmatpush1.bf16.msra.mxu0 %v1626
        %1650 = vmatprep.subr.bf16.mxu0 0
        %1651 = vmatpush1.bf16.msra.mxu0 %v1627
        %1652 = vmatprep.subr.bf16.mxu0 0
        %1653 = vmatpush1.bf16.msra.mxu0 0
        %1654 = vmatprep.subr.bf16.mxu0 0
        %1655 = vmatpush1.bf16.msra.mxu0 0
        %1656 = vmatprep.subr.bf16.mxu0 0
        %1657 = vmatpush1.bf16.msra.mxu0 0
        %1658 = vmatprep.subr.bf16.mxu0 0
        %1659 = vmatpush1.bf16.msra.mxu0 0
        %1660 = vmatprep.subr.bf16.mxu0 0
        %1661 = vmatpush1.bf16.msra.mxu0 0
        %1662 = vmatprep.subr.bf16.mxu0 0
        %1663 = vmatpush1.bf16.msra.mxu0 0
        %1664 = vmatprep.subr.bf16.mxu0 0
        %1665 = vmatpush1.bf16.msra.mxu0 0
        %1666 = vmatprep.subr.bf16.mxu0 0
        %1667 = vmatpush1.bf16.msra.mxu0 0
        %1668 = vmatprep.mubr.bf16.mxu0 0
        %1669 = vmatmul.mubr.bf16.gmra.mrb[0].mxu0 %v1564
        %v1670 = vpop.f32.mrb[0].mxu0
        %v1671 = vadd.f32 %v1586, %v1670
        %v1672 = vpop.f32.mrb[0].mxu0
        %v1673 = vpop.f32.mrb[0].mxu0
        %v1674 = vpop.f32.mrb[0].mxu0
        %1675 = vdwg.mxu0
        %v1676 = vadd.f32 %v1459, %v1671
        %1677 = vst.msk [vmem:[%s643] sm:$0xff] %vm843, %v1676
        %s1678 = sand.u32 %s419, 1
        %s1679 = scalar_lea.sflag [#allocation7], %s1678
        %s1680 = sand.u32 %s419, 1
        %s1681 = smul.addr %s1680, 8
        %s1682 = scalar_lea.vmem [#allocation17], %s1681
        // Predicated region
        $region121: #{tpu_custom_call.1} parent=87 // pred_check
          %p1683 = pneg %p429
        $region122: #{tpu_custom_call.1} parent=87 // pred_check_branch
          %1685 = sbr.rel (%p1683) target = $region124
        $region123: #{tpu_custom_call.1} parent=87 // pred_region
          %s1687 = ssub.s32 128, 128
          %1688 = vsyncadd %s1679, %s1687
          %s1689 = smul.addr %s39, 2
          %s1690 = sadd.s32 %s40, %s1689
          %s1691 = smul.addr %s1690, 128
          %s1692 = scalar_lea.hbm %s17, %s1691
          %s1694 = sshll.u32 %s1682, 4
          %s1695 = int_to_ptr.vmem [resolvable:$true] %s1694
          %1697 = dma.vmem_to_hbm [thread:$0]  %s1695, 128, %s1692, %s1679
        $region124: #{tpu_custom_call.1} parent=87 // pred_fallthru
          _
      $region88: #{tpu_custom_call.1} parent=5 // pred_fallthru
        _
      %p1698 = scmp.le.s32.totalorder 2, %s30
      // Predicated region
      $region125: #{tpu_custom_call.1} parent=5 // pred_check
        %p1699 = pneg %p1698
      $region126: #{tpu_custom_call.1} parent=5 // pred_check_branch
        %1701 = sbr.rel (%p1699) target = $region128
      $region127: #{tpu_custom_call.1} parent=5 // pred_region
        %s1702 = ssub.s32 %s30, 2
        // Predicated region
        $region129: #{tpu_custom_call.1} parent=127 // pred_check
          %p1703 = pneg %p435
        $region130: #{tpu_custom_call.1} parent=127 // pred_check_branch
          %1705 = sbr.rel (%p1703) target = $region132
        $region131: #{tpu_custom_call.1} parent=127 // pred_region
          %s1706 = sand.u32 %s420, 1
          %s1707 = scalar_lea.sflag [#allocation7], %s1706
          %s1708 = sand.u32 %s420, 1
          %s1709 = smul.addr %s1708, 8
          %s1710 = scalar_lea.vmem [#allocation17], %s1709
          %1711 = dma.done %s1707, 128
        $region132: #{tpu_custom_call.1} parent=127 // pred_fallthru
          _
      $region128: #{tpu_custom_call.1} parent=5 // pred_fallthru
        _
    $region6: #{tpu_custom_call.1} parent=1 // loop_footer
      %s34 = sadd.s32 1, %s30
    $region7: #{tpu_custom_call.1} parent=1 // loop_footer_branch
      %29 = sbr.rel target = $region3
    $region8: #{tpu_custom_call.1} parent=1 // loop_exit
      _
    %1712 = vsyncpa [#allocation6], 1
    %s1713 = scalar_lea.sflag [#allocation6], 1
    %1714 = vsyncpa %s1713, 1
    %1715 = vsyncpa [#allocation9], 1
    %1716 = vsyncpa [#allocation12], 1
    %1717 = vsyncpa [#allocation15], 1
    %1718 = vsyncpa [#allocation7], 1
    %s1719 = scalar_lea.sflag [#allocation7], 1
    %1720 = vsyncpa %s1719, 1

</llo_original>
